<compile_context>
chip_gen: v6e
topology: v6e:2x2x1
jax: 0.10.0
libtpu: 0.0.40
codegen_flags: <defaults>
</compile_context>

<pallas_src>
import functools

import jax
import jax.numpy as jnp
from jax import lax
from jax.experimental import pallas as pl
from jax.experimental.pallas import tpu as pltpu


# ---------------------------------------------------------------------------
# Kernel body: batched input projection + interleaved BiLSTM recurrence +
# attention + linear head.  blk_ref is None when no mask is supplied.
# ---------------------------------------------------------------------------
def _bilstm_att_body(emb_ref,    # (T, TB, E)    bf16  embedded tokens, time-major
                     blk_ref,    # (T, TB, 1)    f32   block mask (1 = blocked) or None
                     wih_ref,    # (E, 8H)       bf16  [W_ih_f^T | W_ih_b^T]
                     bg_ref,     # (1, 8H)       f32   [b_f | b_b] (b_ih + b_hh)
                     whhf_ref,   # (H, 4H)       bf16  W_hh_f^T
                     whhb_ref,   # (H, 4H)       bf16  W_hh_b^T
                     watt_ref,   # (2, 1, H)     f32   attention weight halves
                     batt_ref,   # (1, 1)        f32   attention bias (SMEM scalar)
                     wof_ref,    # (H, n_tags)   f32   classifier head, fwd half
                     wob_ref,    # (H, n_tags)   f32   classifier head, bwd half
                     bout_ref,   # (1, n_tags)   f32
                     out_ref,    # (TB, n_tags)  f32   logits
                     att_ref,    # (TB, T)       f32   attentions (lane-dense)
                     gxf_ref,    # scratch (T, TB, 4H) f32   fwd input gates
                     gxb_ref,    # scratch (T, TB, 4H) f32   bwd input gates
                     hsf_ref,    # scratch (T, TB, H)  bf16  fwd hidden states
                     hsb_ref):   # scratch (T, TB, H)  bf16  bwd hidden states
    T, TB, E = emb_ref.shape
    H = whhf_ref.shape[0]
    G = 4 * H
    f32 = jnp.float32
    bf16 = jnp.bfloat16

    # ---- hoisted input projection: ONE batched matmul over all timesteps --
    # (T, TB, E) -> (T*TB, E) is a layout-free sublane stack (TB % 16 == 0).
    emb_flat = emb_ref[...].reshape(T * TB, E)
    gx = jnp.dot(emb_flat, wih_ref[...], preferred_element_type=f32) + bg_ref[...]
    gxf_ref[...] = gx[:, 0:G].reshape(T, TB, G)
    gxb_ref[...] = gx[:, G:2 * G].reshape(T, TB, G)

    # ---- interleaved bidirectional recurrence (only h @ W_hh^T per step) ---
    whh_f = whhf_ref[...]
    whh_b = whhb_ref[...]

    lane = lax.broadcasted_iota(jnp.int32, (TB, G), 1)
    g_lanes = (lane >= 2 * H) & (lane < 3 * H)               # tanh (g-gate) lanes
    # tanh-argument prescale: g-gate uses tanh(x), i/f/o use sigmoid(x) =
    # 0.5*tanh(x/2) + 0.5  -> a single EUP pass over the full (TB, 4H) vreg.
    pre = jnp.where(g_lanes, f32(1.0), f32(0.5))

    def cell(gx_t, h_prev, c_prev, whh):
        gates = gx_t + jnp.dot(h_prev, whh, preferred_element_type=f32)  # (TB, 4H)
        t = jnp.tanh(gates * pre)                            # one transcendental
        act = jnp.where(g_lanes, t, 0.5 * t + 0.5)
        i = act[:, 0:H]
        f = act[:, H:2 * H]
        g = act[:, 2 * H:3 * H]
        o = act[:, 3 * H:4 * H]
        c_new = f * c_prev + i * g
        h_new = (o * jnp.tanh(c_new)).astype(bf16)           # bf16 carry / storage
        return h_new, c_new

    h0 = jnp.zeros((TB, H), bf16)
    c0 = jnp.zeros((TB, H), f32)
    # Full unroll only when the per-step vreg footprint is small; otherwise 2
    # (keeps the fwd/bwd ILP without regalloc spills on the serial chain).
    unroll = True if (T <= 8 and TB * H <= 64 * 128) else 2

    def step(s, carry):
        h_f, c_f, h_b, c_b = carry
        t_b = T - 1 - s
        h_f, c_f = cell(gxf_ref[s], h_f, c_f, whh_f)          # fwd at time s
        h_b, c_b = cell(gxb_ref[t_b], h_b, c_b, whh_b)        # bwd at time T-1-s
        hsf_ref[s] = h_f
        hsb_ref[t_b] = h_b
        return (h_f, c_f, h_b, c_b)

    lax.fori_loop(0, T, step, (h0, c0, h0, c0), unroll=unroll)

    # ---- attention + classifier head (per-direction, no concat) -----------
    hs_f = hsf_ref[...]                                       # (T, TB, H) bf16
    hs_b = hsb_ref[...]
    w_f = watt_ref[0:1]                                       # (1, 1, H) f32
    w_b = watt_ref[1:2]

    scores = (jnp.sum(hs_f * w_f, axis=-1, keepdims=True)
              + jnp.sum(hs_b * w_b, axis=-1, keepdims=True)
              + batt_ref[0, 0])                               # (T, TB, 1) f32
    m = jnp.max(scores, axis=0, keepdims=True)
    e = jnp.exp(scores - m)
    att = e * pl.reciprocal(jnp.sum(e, axis=0, keepdims=True), approx=True)
    if blk_ref is not None:
        att = (1.0 - blk_ref[...]) * att                      # post-softmax, no renorm

    # Lane-dense attention output: (T, TB, 1) -> (T, TB) -> (TB, T).
    att_ref[...] = jnp.transpose(jnp.sum(att, axis=-1))

    ctx_f = jnp.sum(att * hs_f, axis=0)                       # (TB, H) f32
    ctx_b = jnp.sum(att * hs_b, axis=0)
    out_ref[...] = (jnp.dot(ctx_f, wof_ref[...], preferred_element_type=f32)
                    + jnp.dot(ctx_b, wob_ref[...], preferred_element_type=f32)
                    + bout_ref[...])


def _make_kernel(has_mask):
    if has_mask:
        def kernel(emb_ref, blk_ref, *rest):
            _bilstm_att_body(emb_ref, blk_ref, *rest)
    else:
        def kernel(emb_ref, *rest):
            _bilstm_att_body(emb_ref, None, *rest)
    return kernel


# ---------------------------------------------------------------------------
# One-time parameter repacking (pre-transposed, directions packed, bf16 casts).
# ---------------------------------------------------------------------------
def pack_params(params):
    H = params['whh_f'].shape[1]
    bf16, f32 = jnp.bfloat16, jnp.float32
    return {
        'embedding': params['embedding'].astype(f32),
        'w_ih_pk': jnp.concatenate([params['wih_f'].T, params['wih_b'].T],
                                   axis=1).astype(bf16),            # (E, 8H)
        'b_pk': jnp.concatenate([params['b_f'], params['b_b']],
                                axis=1).astype(f32),                # (1, 8H)
        'whh_f_t': params['whh_f'].T.astype(bf16),                  # (H, 4H)
        'whh_b_t': params['whh_b'].T.astype(bf16),
        'w_att': params['w_att'].reshape(2, 1, H).astype(f32),      # [fwd | bwd] halves
        'b_att': params['b_att'].astype(f32),                       # (1, 1)
        'w_out_f_t': params['w_out'][:, :H].T.astype(f32),          # (H, n_tags)
        'w_out_b_t': params['w_out'][:, H:].T.astype(f32),
        'b_out': params['b_out'].astype(f32),                       # (1, n_tags)
    }


# ---------------------------------------------------------------------------
# Wrapper: embedding gather (glue), batch padding, layout plumbing, pallas_call.
# ---------------------------------------------------------------------------
@functools.partial(jax.jit, static_argnames=("batch_tile",))
def bilstm_att_forward(packed, inp_ids, block_ids=None, *, batch_tile=None):
    B, T = inp_ids.shape
    E = packed['embedding'].shape[1]
    H = packed['whh_f_t'].shape[0]
    n_tags = packed['b_out'].shape[1]

    # Pad the batch to a multiple of 16 (bf16 sublane pack) so every in-kernel
    # (T,TB,*) <-> (T*TB,*) reshape is a layout-free sublane stack and every
    # tile obeys the (8,128)/(16,128) rules.
    BP = ((B + 15) // 16) * 16
    ids = inp_ids if BP == B else jnp.pad(inp_ids, ((0, BP - B), (0, 0)))

    # Batch grid axis: default keeps the whole (padded) batch in one grid step
    # (best on 1-TC chips); for large batches on v7x pass batch_tile=BP//2 to
    # split the independent recurrences across both TensorCores.
    TB = BP if batch_tile is None else batch_tile
    assert BP % TB == 0 and TB % 16 == 0, "batch_tile must divide the padded batch and be a multiple of 16"
    nb = BP // TB

    # Embedding lookup is a data-dependent gather -> XLA glue, done directly
    # in time-major layout (no (B,T,E) materialization + transpose).
    emb_tbe = jnp.take(packed['embedding'], ids.T, axis=0).astype(jnp.bfloat16)  # (T, BP, E)

    has_mask = block_ids is not None
    if has_mask:
        blk = block_ids.astype(jnp.float32)
        if BP != B:
            blk = jnp.pad(blk, ((0, BP - B), (0, 0)))
        blk = jnp.transpose(blk)[:, :, None]                                      # (T, BP, 1)

    def rep2(shape):
        return pl.BlockSpec(shape, lambda i: (0, 0))

    def rep3(shape):
        return pl.BlockSpec(shape, lambda i: (0, 0, 0))

    in_specs = [pl.BlockSpec((T, TB, E), lambda i: (0, i, 0))]       # emb (bf16)
    args = [emb_tbe]
    if has_mask:
        in_specs.append(pl.BlockSpec((T, TB, 1), lambda i: (0, i, 0)))
        args.append(blk)
    in_specs += [
        rep2((E, 8 * H)),                                   # packed W_ih^T
        rep2((1, 8 * H)),                                   # packed bias
        rep2((H, 4 * H)),                                   # W_hh_f^T
        rep2((H, 4 * H)),                                   # W_hh_b^T
        rep3((2, 1, H)),                                    # attention weight halves
        pl.BlockSpec((1, 1), lambda i: (0, 0),
                     memory_space=pltpu.MemorySpace.SMEM),  # attention bias scalar
        rep2((H, n_tags)),                                  # W_out fwd half
        rep2((H, n_tags)),                                  # W_out bwd half
        rep2((1, n_tags)),                                  # b_out
    ]
    args += [packed['w_ih_pk'], packed['b_pk'],
             packed['whh_f_t'], packed['whh_b_t'],
             packed['w_att'], packed['b_att'],
             packed['w_out_f_t'], packed['w_out_b_t'], packed['b_out']]

    out_specs = (
        pl.BlockSpec((TB, n_tags), lambda i: (i, 0)),       # logits
        pl.BlockSpec((TB, T), lambda i: (i, 0)),            # attentions (lane-dense)
    )
    out_shape = (jax.ShapeDtypeStruct((BP, n_tags), jnp.float32),
                 jax.ShapeDtypeStruct((BP, T), jnp.float32))

    scratch_shapes = [
        pltpu.VMEM((T, TB, 4 * H), jnp.float32),            # fwd input gates
        pltpu.VMEM((T, TB, 4 * H), jnp.float32),            # bwd input gates
        pltpu.VMEM((T, TB, H), jnp.bfloat16),               # fwd hidden states
        pltpu.VMEM((T, TB, H), jnp.bfloat16),               # bwd hidden states
    ]

    logits, att = pl.pallas_call(
        _make_kernel(has_mask),
        out_shape=out_shape,
        grid=(nb,),
        in_specs=in_specs,
        out_specs=out_specs,
        scratch_shapes=scratch_shapes,
        compiler_params=pltpu.CompilerParams(
            dimension_semantics=("parallel",),
            # 64 MiB is safe on every generation (== v7x per-core VMEM); on
            # v5e/v6e it can be raised toward ~100 MiB for very large tiles.
            vmem_limit_bytes=64 * 1024 * 1024),
    )(*args)

    return logits[:B], att[:B]


# ---------------------------------------------------------------------------
# Pure-JAX reference (full f32, HIGHEST precision) mirroring the PyTorch model.
# ---------------------------------------------------------------------------
def reference_forward(params, inp_ids, block_ids=None):
    prec = lax.Precision.HIGHEST
    emb = jnp.take(params['embedding'], inp_ids, axis=0)             # (B, T, E)
    B, T, _ = emb.shape
    H = params['whh_f'].shape[1]

    def lstm_dir(wih, whh, b, xs):                                   # xs: (T, B, E)
        def step(carry, x_t):
            h, c = carry
            gates = (jnp.dot(x_t, wih.T, precision=prec)
                     + jnp.dot(h, whh.T, precision=prec) + b)
            i = jax.nn.sigmoid(gates[:, 0:H])
            f = jax.nn.sigmoid(gates[:, H:2 * H])
            g = jnp.tanh(gates[:, 2 * H:3 * H])
            o = jax.nn.sigmoid(gates[:, 3 * H:4 * H])
            c = f * c + i * g
            h = o * jnp.tanh(c)
            return (h, c), h
        init = (jnp.zeros((B, H), jnp.float32), jnp.zeros((B, H), jnp.float32))
        _, hs = lax.scan(step, init, xs)
        return hs                                                    # (T, B, H)

    xs = jnp.transpose(emb, (1, 0, 2))
    hs_f = lstm_dir(params['wih_f'], params['whh_f'], params['b_f'][0], xs)
    hs_b = lstm_dir(params['wih_b'], params['whh_b'], params['b_b'][0], xs[::-1])[::-1]
    hs_bt = jnp.transpose(jnp.concatenate([hs_f, hs_b], axis=-1), (1, 0, 2))

    scores = (jnp.dot(hs_bt, params['w_att'][0], precision=prec)
              + params['b_att'][0, 0])                               # (B, T)
    att = jax.nn.softmax(scores, axis=-1)
    if block_ids is not None:
        att = (1.0 - block_ids) * att
    context = jnp.einsum('bt,bte->be', att, hs_bt, precision=prec)
    out = jnp.dot(context, params['w_out'].T, precision=prec) + params['b_out'][0]
    return out, att


# ---------------------------------------------------------------------------
# Deterministic parameter initialization (PyTorch-convention shapes).
# ---------------------------------------------------------------------------
def init_params(key, n_words, emb_dim, hid_dim, n_tags):
    ks = jax.random.split(key, 11)
    k_lstm = 1.0 / jnp.sqrt(hid_dim)
    k_att = 1.0 / jnp.sqrt(2 * hid_dim)

    def unif(k, shape, scale):
        return jax.random.uniform(k, shape, jnp.float32, -scale, scale)

    return {
        'embedding': jax.random.normal(ks[0], (n_words, emb_dim), jnp.float32),
        # LSTM weights, PyTorch layout (4H, in) / (4H, H), gate order i,f,g,o.
        'wih_f': unif(ks[1], (4 * hid_dim, emb_dim), k_lstm),
        'whh_f': unif(ks[2], (4 * hid_dim, hid_dim), k_lstm),
        'b_f':   unif(ks[3], (1, 4 * hid_dim), k_lstm),   # b_ih + b_hh combined
        'wih_b': unif(ks[4], (4 * hid_dim, emb_dim), k_lstm),
        'whh_b': unif(ks[5], (4 * hid_dim, hid_dim), k_lstm),
        'b_b':   unif(ks[6], (1, 4 * hid_dim), k_lstm),
        # weight_layer: Linear(2H, 1)
        'w_att': unif(ks[7], (1, 2 * hid_dim), k_att),
        'b_att': unif(ks[8], (1, 1), k_att),
        # linear: Linear(2H, n_tags)
        'w_out': unif(ks[9], (n_tags, 2 * hid_dim), k_att),
        'b_out': unif(ks[10], (1, n_tags), k_att),
    }


if __name__ == "__main__":
    VOCAB, EMB, HID, NTAGS = 50, 16, 32, 4
    B, T = 2, 8

    key = jax.random.PRNGKey(0)
    kp, ki, kb = jax.random.split(key, 3)
    params = init_params(kp, VOCAB, EMB, HID, NTAGS)
    packed = pack_params(params)

    inp_ids = jax.random.randint(ki, (B, T), 0, VOCAB, dtype=jnp.int32)
    block_ids = jax.random.bernoulli(kb, 0.25, (B, T)).astype(jnp.float32)

    # Case 1: with block_ids.  Case 2: block_ids=None (mask-free fast path).
    out1, att1 = bilstm_att_forward(packed, inp_ids, block_ids)
    jax.block_until_ready((out1, att1))
    out2, att2 = bilstm_att_forward(packed, inp_ids, None)
    jax.block_until_ready((out2, att2))

    ref_out1, ref_att1 = reference_forward(params, inp_ids, block_ids)
    ref_out2, ref_att2 = reference_forward(params, inp_ids, None)

    # Tolerance budget: bf16 matmul operands + bf16 hidden-state storage +
    # approximate EUP reciprocal in the softmax, vs a full-f32 HIGHEST
    # precision reference.
    TOL = dict(atol=1e-2, rtol=1e-2)
    assert jnp.allclose(out1, ref_out1, **TOL), "logits mismatch (masked)"
    assert jnp.allclose(att1, ref_att1, **TOL), "attention mismatch (masked)"
    assert jnp.allclose(out2, ref_out2, **TOL), "logits mismatch"
    assert jnp.allclose(att2, ref_att2, **TOL), "attention mismatch"

    print("KERNEL_OK")
</pallas_src>

<mosaic_0001>
module attributes {stable_mosaic.version = 11 : i64} {
  func.func @kernel(%arg0: i32, %arg1: memref<8x16x16xbf16, #tpu.memory_space<vmem>>, %arg2: memref<8x16x1xf32, #tpu.memory_space<vmem>>, %arg3: memref<16x256xbf16, #tpu.memory_space<vmem>>, %arg4: memref<1x256xf32, #tpu.memory_space<vmem>>, %arg5: memref<32x128xbf16, #tpu.memory_space<vmem>>, %arg6: memref<32x128xbf16, #tpu.memory_space<vmem>>, %arg7: memref<2x1x32xf32, #tpu.memory_space<vmem>>, %arg8: memref<1x1xf32, #tpu.memory_space<smem>>, %arg9: memref<32x4xf32, #tpu.memory_space<vmem>>, %arg10: memref<32x4xf32, #tpu.memory_space<vmem>>, %arg11: memref<1x4xf32, #tpu.memory_space<vmem>>, %arg12: memref<16x4xf32, #tpu.memory_space<vmem>>, %arg13: memref<16x8xf32, #tpu.memory_space<vmem>>, %arg14: memref<8x16x128xf32, #tpu.memory_space<vmem>>, %arg15: memref<8x16x128xf32, #tpu.memory_space<vmem>>, %arg16: memref<8x16x32xbf16, #tpu.memory_space<vmem>>, %arg17: memref<8x16x32xbf16, #tpu.memory_space<vmem>>) attributes {dimension_semantics = [#tpu.dimension_semantics<parallel>], iteration_bounds = array<i64: 1>, scalar_prefetch = 0 : i64, scratch_operands = 4 : i64, tpu.core_type = #tpu.core_type<tc>, window_params = [{transform_indices = @transform_0, window_bounds = array<i64: 8, 16, 16>}, {transform_indices = @transform_1, window_bounds = array<i64: 8, 16, 1>}, {pipeline_mode = #tpu.pipeline_mode<synchronous>, transform_indices = @transform_2, window_bounds = array<i64: 16, 256>}, {pipeline_mode = #tpu.pipeline_mode<synchronous>, transform_indices = @transform_3, window_bounds = array<i64: 1, 256>}, {pipeline_mode = #tpu.pipeline_mode<synchronous>, transform_indices = @transform_4, window_bounds = array<i64: 32, 128>}, {pipeline_mode = #tpu.pipeline_mode<synchronous>, transform_indices = @transform_5, window_bounds = array<i64: 32, 128>}, {pipeline_mode = #tpu.pipeline_mode<synchronous>, transform_indices = @transform_6, window_bounds = array<i64: 2, 1, 32>}, {transform_indices = @transform_7, window_bounds = array<i64: 1, 1>}, {pipeline_mode = #tpu.pipeline_mode<synchronous>, transform_indices = @transform_8, window_bounds = array<i64: 32, 4>}, {pipeline_mode = #tpu.pipeline_mode<synchronous>, transform_indices = @transform_9, window_bounds = array<i64: 32, 4>}, {pipeline_mode = #tpu.pipeline_mode<synchronous>, transform_indices = @transform_10, window_bounds = array<i64: 1, 4>}, {transform_indices = @transform_11, window_bounds = array<i64: 16, 4>}, {transform_indices = @transform_12, window_bounds = array<i64: 16, 8>}]} {
    %c0 = arith.constant 0 : index
    %c0_0 = arith.constant 0 : index
    %c0_1 = arith.constant 0 : index
    %0 = vector.load %arg1[%c0, %c0_0, %c0_1] : memref<8x16x16xbf16, #tpu.memory_space<vmem>>, vector<8x16x16xbf16>
    %1 = vector.shape_cast %0 : vector<8x16x16xbf16> to vector<128x16xbf16>
    %c0_2 = arith.constant 0 : index
    %c0_3 = arith.constant 0 : index
    %2 = vector.load %arg3[%c0_2, %c0_3] : memref<16x256xbf16, #tpu.memory_space<vmem>>, vector<16x256xbf16>
    %cst = arith.constant dense<0.000000e+00> : vector<128x256xf32>
    %3 = tpu.matmul %1, %2, %cst {dimension_numbers = #tpu.dot_dimension_numbers<[1], [0], [0], [1], [0, 0, 1, 1], [], []>} : vector<128x16xbf16>, vector<16x256xbf16>, vector<128x256xf32> -> vector<128x256xf32>
    %c0_4 = arith.constant 0 : index
    %c0_5 = arith.constant 0 : index
    %4 = vector.load %arg4[%c0_4, %c0_5] : memref<1x256xf32, #tpu.memory_space<vmem>>, vector<1x256xf32>
    %5 = vector.broadcast %4 : vector<1x256xf32> to vector<128x256xf32>
    %6 = arith.addf %3, %5 : vector<128x256xf32>
    %7 = vector.extract_strided_slice %6 {offsets = [0, 0], sizes = [128, 128], strides = [1, 1]} : vector<128x256xf32> to vector<128x128xf32>
    %8 = vector.shape_cast %7 : vector<128x128xf32> to vector<8x16x128xf32>
    %c0_6 = arith.constant 0 : index
    %c0_7 = arith.constant 0 : index
    %c0_8 = arith.constant 0 : index
    %9 = vector.load %arg14[%c0_6, %c0_7, %c0_8] : memref<8x16x128xf32, #tpu.memory_space<vmem>>, vector<8x16x128xf32>
    tpu.vector_store %arg14[%c0_6, %c0_7, %c0_8], %8 {strides = array<i32>} : memref<8x16x128xf32, #tpu.memory_space<vmem>>, vector<8x16x128xf32>,
    %10 = vector.extract_strided_slice %6 {offsets = [0, 128], sizes = [128, 128], strides = [1, 1]} : vector<128x256xf32> to vector<128x128xf32>
    %11 = vector.shape_cast %10 : vector<128x128xf32> to vector<8x16x128xf32>
    %c0_9 = arith.constant 0 : index
    %c0_10 = arith.constant 0 : index
    %c0_11 = arith.constant 0 : index
    %12 = vector.load %arg15[%c0_9, %c0_10, %c0_11] : memref<8x16x128xf32, #tpu.memory_space<vmem>>, vector<8x16x128xf32>
    tpu.vector_store %arg15[%c0_9, %c0_10, %c0_11], %11 {strides = array<i32>} : memref<8x16x128xf32, #tpu.memory_space<vmem>>, vector<8x16x128xf32>,
    %c0_12 = arith.constant 0 : index
    %c0_13 = arith.constant 0 : index
    %13 = vector.load %arg5[%c0_12, %c0_13] : memref<32x128xbf16, #tpu.memory_space<vmem>>, vector<32x128xbf16>
    %c0_14 = arith.constant 0 : index
    %c0_15 = arith.constant 0 : index
    %14 = vector.load %arg6[%c0_14, %c0_15] : memref<32x128xbf16, #tpu.memory_space<vmem>>, vector<32x128xbf16>
    %15 = tpu.iota {dimensions = array<i32: 1>} : vector<16x128xi32>
    %c64_i32 = arith.constant 64 : i32
    %16 = vector.broadcast %c64_i32 : i32 to vector<16x128xi32>
    %17 = arith.cmpi sge, %15, %16 : vector<16x128xi32>
    %c96_i32 = arith.constant 96 : i32
    %18 = vector.broadcast %c96_i32 : i32 to vector<16x128xi32>
    %19 = arith.cmpi slt, %15, %18 : vector<16x128xi32>
    %20 = arith.andi %17, %19 : vector<16x128xi1>
    %cst_16 = arith.constant 1.000000e+00 : f32
    %cst_17 = arith.constant 5.000000e-01 : f32
    %21 = vector.broadcast %cst_16 : f32 to vector<16x128xf32>
    %22 = vector.broadcast %cst_17 : f32 to vector<16x128xf32>
    %23 = arith.select %20, %21, %22 : vector<16x128xi1>, vector<16x128xf32>
    %cst_18 = arith.constant 0.000000e+00 : bf16
    %24 = vector.broadcast %cst_18 : bf16 to vector<16x32xbf16>
    %cst_19 = arith.constant 0.000000e+00 : f32
    %25 = vector.broadcast %cst_19 : f32 to vector<16x32xf32>
    %c0_i32 = arith.constant 0 : i32
    %c7_i32 = arith.constant 7 : i32
    %26 = arith.subi %c7_i32, %c0_i32 : i32
    %27 = arith.index_cast %c0_i32 : i32 to index
    %c0_20 = arith.constant 0 : index
    %c0_21 = arith.constant 0 : index
    %28 = vector.load %arg14[%27, %c0_20, %c0_21] : memref<8x16x128xf32, #tpu.memory_space<vmem>>, vector<1x16x128xf32>
    %29 = vector.shape_cast %28 : vector<1x16x128xf32> to vector<16x128xf32>
    %cst_22 = arith.constant dense<0.000000e+00> : vector<16x128xf32>
    %30 = tpu.matmul %24, %13, %cst_22 {dimension_numbers = #tpu.dot_dimension_numbers<[1], [0], [0], [1], [0, 0, 1, 1], [], []>} : vector<16x32xbf16>, vector<32x128xbf16>, vector<16x128xf32> -> vector<16x128xf32>
    %31 = arith.addf %29, %30 : vector<16x128xf32>
    %32 = arith.mulf %31, %23 : vector<16x128xf32>
    %33 = math.tanh %32 : vector<16x128xf32>
    %cst_23 = arith.constant 5.000000e-01 : f32
    %34 = vector.broadcast %cst_23 : f32 to vector<16x128xf32>
    %35 = arith.mulf %34, %33 : vector<16x128xf32>
    %cst_24 = arith.constant 5.000000e-01 : f32
    %36 = vector.broadcast %cst_24 : f32 to vector<16x128xf32>
    %37 = arith.addf %35, %36 : vector<16x128xf32>
    %38 = arith.select %20, %33, %37 : vector<16x128xi1>, vector<16x128xf32>
    %39 = vector.extract_strided_slice %38 {offsets = [0, 0], sizes = [16, 32], strides = [1, 1]} : vector<16x128xf32> to vector<16x32xf32>
    %40 = vector.extract_strided_slice %38 {offsets = [0, 32], sizes = [16, 32], strides = [1, 1]} : vector<16x128xf32> to vector<16x32xf32>
    %41 = vector.extract_strided_slice %38 {offsets = [0, 64], sizes = [16, 32], strides = [1, 1]} : vector<16x128xf32> to vector<16x32xf32>
    %42 = vector.extract_strided_slice %38 {offsets = [0, 96], sizes = [16, 32], strides = [1, 1]} : vector<16x128xf32> to vector<16x32xf32>
    %43 = arith.mulf %40, %25 : vector<16x32xf32>
    %44 = arith.mulf %39, %41 : vector<16x32xf32>
    %45 = arith.addf %43, %44 : vector<16x32xf32>
    %46 = math.tanh %45 : vector<16x32xf32>
    %47 = arith.mulf %42, %46 : vector<16x32xf32>
    %48 = arith.truncf %47 : vector<16x32xf32> to vector<16x32xbf16>
    %49 = arith.index_cast %26 : i32 to index
    %c0_25 = arith.constant 0 : index
    %c0_26 = arith.constant 0 : index
    %50 = vector.load %arg15[%49, %c0_25, %c0_26] : memref<8x16x128xf32, #tpu.memory_space<vmem>>, vector<1x16x128xf32>
    %51 = vector.shape_cast %50 : vector<1x16x128xf32> to vector<16x128xf32>
    %cst_27 = arith.constant dense<0.000000e+00> : vector<16x128xf32>
    %52 = tpu.matmul %24, %14, %cst_27 {dimension_numbers = #tpu.dot_dimension_numbers<[1], [0], [0], [1], [0, 0, 1, 1], [], []>} : vector<16x32xbf16>, vector<32x128xbf16>, vector<16x128xf32> -> vector<16x128xf32>
    %53 = arith.addf %51, %52 : vector<16x128xf32>
    %54 = arith.mulf %53, %23 : vector<16x128xf32>
    %55 = math.tanh %54 : vector<16x128xf32>
    %cst_28 = arith.constant 5.000000e-01 : f32
    %56 = vector.broadcast %cst_28 : f32 to vector<16x128xf32>
    %57 = arith.mulf %56, %55 : vector<16x128xf32>
    %cst_29 = arith.constant 5.000000e-01 : f32
    %58 = vector.broadcast %cst_29 : f32 to vector<16x128xf32>
    %59 = arith.addf %57, %58 : vector<16x128xf32>
    %60 = arith.select %20, %55, %59 : vector<16x128xi1>, vector<16x128xf32>
    %61 = vector.extract_strided_slice %60 {offsets = [0, 0], sizes = [16, 32], strides = [1, 1]} : vector<16x128xf32> to vector<16x32xf32>
    %62 = vector.extract_strided_slice %60 {offsets = [0, 32], sizes = [16, 32], strides = [1, 1]} : vector<16x128xf32> to vector<16x32xf32>
    %63 = vector.extract_strided_slice %60 {offsets = [0, 64], sizes = [16, 32], strides = [1, 1]} : vector<16x128xf32> to vector<16x32xf32>
    %64 = vector.extract_strided_slice %60 {offsets = [0, 96], sizes = [16, 32], strides = [1, 1]} : vector<16x128xf32> to vector<16x32xf32>
    %65 = arith.mulf %62, %25 : vector<16x32xf32>
    %66 = arith.mulf %61, %63 : vector<16x32xf32>
    %67 = arith.addf %65, %66 : vector<16x32xf32>
    %68 = math.tanh %67 : vector<16x32xf32>
    %69 = arith.mulf %64, %68 : vector<16x32xf32>
    %70 = arith.truncf %69 : vector<16x32xf32> to vector<16x32xbf16>
    %71 = arith.index_cast %c0_i32 : i32 to index
    %c0_30 = arith.constant 0 : index
    %c0_31 = arith.constant 0 : index
    %72 = vector.load %arg16[%71, %c0_30, %c0_31] : memref<8x16x32xbf16, #tpu.memory_space<vmem>>, vector<1x16x32xbf16>
    %73 = vector.shape_cast %72 : vector<1x16x32xbf16> to vector<16x32xbf16>
    %74 = vector.shape_cast %48 : vector<16x32xbf16> to vector<1x16x32xbf16>
    tpu.vector_store %arg16[%71, %c0_30, %c0_31], %74 {strides = array<i32>} : memref<8x16x32xbf16, #tpu.memory_space<vmem>>, vector<1x16x32xbf16>,
    %75 = arith.index_cast %26 : i32 to index
    %c0_32 = arith.constant 0 : index
    %c0_33 = arith.constant 0 : index
    %76 = vector.load %arg17[%75, %c0_32, %c0_33] : memref<8x16x32xbf16, #tpu.memory_space<vmem>>, vector<1x16x32xbf16>
    %77 = vector.shape_cast %76 : vector<1x16x32xbf16> to vector<16x32xbf16>
    %78 = vector.shape_cast %70 : vector<16x32xbf16> to vector<1x16x32xbf16>
    tpu.vector_store %arg17[%75, %c0_32, %c0_33], %78 {strides = array<i32>} : memref<8x16x32xbf16, #tpu.memory_space<vmem>>, vector<1x16x32xbf16>,
    %c1_i32 = arith.constant 1 : i32
    %c7_i32_34 = arith.constant 7 : i32
    %79 = arith.subi %c7_i32_34, %c1_i32 : i32
    %80 = arith.index_cast %c1_i32 : i32 to index
    %c0_35 = arith.constant 0 : index
    %c0_36 = arith.constant 0 : index
    %81 = vector.load %arg14[%80, %c0_35, %c0_36] : memref<8x16x128xf32, #tpu.memory_space<vmem>>, vector<1x16x128xf32>
    %82 = vector.shape_cast %81 : vector<1x16x128xf32> to vector<16x128xf32>
    %cst_37 = arith.constant dense<0.000000e+00> : vector<16x128xf32>
    %83 = tpu.matmul %48, %13, %cst_37 {dimension_numbers = #tpu.dot_dimension_numbers<[1], [0], [0], [1], [0, 0, 1, 1], [], []>} : vector<16x32xbf16>, vector<32x128xbf16>, vector<16x128xf32> -> vector<16x128xf32>
    %84 = arith.addf %82, %83 : vector<16x128xf32>
    %85 = arith.mulf %84, %23 : vector<16x128xf32>
    %86 = math.tanh %85 : vector<16x128xf32>
    %cst_38 = arith.constant 5.000000e-01 : f32
    %87 = vector.broadcast %cst_38 : f32 to vector<16x128xf32>
    %88 = arith.mulf %87, %86 : vector<16x128xf32>
    %cst_39 = arith.constant 5.000000e-01 : f32
    %89 = vector.broadcast %cst_39 : f32 to vector<16x128xf32>
    %90 = arith.addf %88, %89 : vector<16x128xf32>
    %91 = arith.select %20, %86, %90 : vector<16x128xi1>, vector<16x128xf32>
    %92 = vector.extract_strided_slice %91 {offsets = [0, 0], sizes = [16, 32], strides = [1, 1]} : vector<16x128xf32> to vector<16x32xf32>
    %93 = vector.extract_strided_slice %91 {offsets = [0, 32], sizes = [16, 32], strides = [1, 1]} : vector<16x128xf32> to vector<16x32xf32>
    %94 = vector.extract_strided_slice %91 {offsets = [0, 64], sizes = [16, 32], strides = [1, 1]} : vector<16x128xf32> to vector<16x32xf32>
    %95 = vector.extract_strided_slice %91 {offsets = [0, 96], sizes = [16, 32], strides = [1, 1]} : vector<16x128xf32> to vector<16x32xf32>
    %96 = arith.mulf %93, %45 : vector<16x32xf32>
    %97 = arith.mulf %92, %94 : vector<16x32xf32>
    %98 = arith.addf %96, %97 : vector<16x32xf32>
    %99 = math.tanh %98 : vector<16x32xf32>
    %100 = arith.mulf %95, %99 : vector<16x32xf32>
    %101 = arith.truncf %100 : vector<16x32xf32> to vector<16x32xbf16>
    %102 = arith.index_cast %79 : i32 to index
    %c0_40 = arith.constant 0 : index
    %c0_41 = arith.constant 0 : index
    %103 = vector.load %arg15[%102, %c0_40, %c0_41] : memref<8x16x128xf32, #tpu.memory_space<vmem>>, vector<1x16x128xf32>
    %104 = vector.shape_cast %103 : vector<1x16x128xf32> to vector<16x128xf32>
    %cst_42 = arith.constant dense<0.000000e+00> : vector<16x128xf32>
    %105 = tpu.matmul %70, %14, %cst_42 {dimension_numbers = #tpu.dot_dimension_numbers<[1], [0], [0], [1], [0, 0, 1, 1], [], []>} : vector<16x32xbf16>, vector<32x128xbf16>, vector<16x128xf32> -> vector<16x128xf32>
    %106 = arith.addf %104, %105 : vector<16x128xf32>
    %107 = arith.mulf %106, %23 : vector<16x128xf32>
    %108 = math.tanh %107 : vector<16x128xf32>
    %cst_43 = arith.constant 5.000000e-01 : f32
    %109 = vector.broadcast %cst_43 : f32 to vector<16x128xf32>
    %110 = arith.mulf %109, %108 : vector<16x128xf32>
    %cst_44 = arith.constant 5.000000e-01 : f32
    %111 = vector.broadcast %cst_44 : f32 to vector<16x128xf32>
    %112 = arith.addf %110, %111 : vector<16x128xf32>
    %113 = arith.select %20, %108, %112 : vector<16x128xi1>, vector<16x128xf32>
    %114 = vector.extract_strided_slice %113 {offsets = [0, 0], sizes = [16, 32], strides = [1, 1]} : vector<16x128xf32> to vector<16x32xf32>
    %115 = vector.extract_strided_slice %113 {offsets = [0, 32], sizes = [16, 32], strides = [1, 1]} : vector<16x128xf32> to vector<16x32xf32>
    %116 = vector.extract_strided_slice %113 {offsets = [0, 64], sizes = [16, 32], strides = [1, 1]} : vector<16x128xf32> to vector<16x32xf32>
    %117 = vector.extract_strided_slice %113 {offsets = [0, 96], sizes = [16, 32], strides = [1, 1]} : vector<16x128xf32> to vector<16x32xf32>
    %118 = arith.mulf %115, %67 : vector<16x32xf32>
    %119 = arith.mulf %114, %116 : vector<16x32xf32>
    %120 = arith.addf %118, %119 : vector<16x32xf32>
    %121 = math.tanh %120 : vector<16x32xf32>
    %122 = arith.mulf %117, %121 : vector<16x32xf32>
    %123 = arith.truncf %122 : vector<16x32xf32> to vector<16x32xbf16>
    %124 = arith.index_cast %c1_i32 : i32 to index
    %c0_45 = arith.constant 0 : index
    %c0_46 = arith.constant 0 : index
    %125 = vector.load %arg16[%124, %c0_45, %c0_46] : memref<8x16x32xbf16, #tpu.memory_space<vmem>>, vector<1x16x32xbf16>
    %126 = vector.shape_cast %125 : vector<1x16x32xbf16> to vector<16x32xbf16>
    %127 = vector.shape_cast %101 : vector<16x32xbf16> to vector<1x16x32xbf16>
    tpu.vector_store %arg16[%124, %c0_45, %c0_46], %127 {strides = array<i32>} : memref<8x16x32xbf16, #tpu.memory_space<vmem>>, vector<1x16x32xbf16>,
    %128 = arith.index_cast %79 : i32 to index
    %c0_47 = arith.constant 0 : index
    %c0_48 = arith.constant 0 : index
    %129 = vector.load %arg17[%128, %c0_47, %c0_48] : memref<8x16x32xbf16, #tpu.memory_space<vmem>>, vector<1x16x32xbf16>
    %130 = vector.shape_cast %129 : vector<1x16x32xbf16> to vector<16x32xbf16>
    %131 = vector.shape_cast %123 : vector<16x32xbf16> to vector<1x16x32xbf16>
    tpu.vector_store %arg17[%128, %c0_47, %c0_48], %131 {strides = array<i32>} : memref<8x16x32xbf16, #tpu.memory_space<vmem>>, vector<1x16x32xbf16>,
    %c2_i32 = arith.constant 2 : i32
    %c7_i32_49 = arith.constant 7 : i32
    %132 = arith.subi %c7_i32_49, %c2_i32 : i32
    %133 = arith.index_cast %c2_i32 : i32 to index
    %c0_50 = arith.constant 0 : index
    %c0_51 = arith.constant 0 : index
    %134 = vector.load %arg14[%133, %c0_50, %c0_51] : memref<8x16x128xf32, #tpu.memory_space<vmem>>, vector<1x16x128xf32>
    %135 = vector.shape_cast %134 : vector<1x16x128xf32> to vector<16x128xf32>
    %cst_52 = arith.constant dense<0.000000e+00> : vector<16x128xf32>
    %136 = tpu.matmul %101, %13, %cst_52 {dimension_numbers = #tpu.dot_dimension_numbers<[1], [0], [0], [1], [0, 0, 1, 1], [], []>} : vector<16x32xbf16>, vector<32x128xbf16>, vector<16x128xf32> -> vector<16x128xf32>
    %137 = arith.addf %135, %136 : vector<16x128xf32>
    %138 = arith.mulf %137, %23 : vector<16x128xf32>
    %139 = math.tanh %138 : vector<16x128xf32>
    %cst_53 = arith.constant 5.000000e-01 : f32
    %140 = vector.broadcast %cst_53 : f32 to vector<16x128xf32>
    %141 = arith.mulf %140, %139 : vector<16x128xf32>
    %cst_54 = arith.constant 5.000000e-01 : f32
    %142 = vector.broadcast %cst_54 : f32 to vector<16x128xf32>
    %143 = arith.addf %141, %142 : vector<16x128xf32>
    %144 = arith.select %20, %139, %143 : vector<16x128xi1>, vector<16x128xf32>
    %145 = vector.extract_strided_slice %144 {offsets = [0, 0], sizes = [16, 32], strides = [1, 1]} : vector<16x128xf32> to vector<16x32xf32>
    %146 = vector.extract_strided_slice %144 {offsets = [0, 32], sizes = [16, 32], strides = [1, 1]} : vector<16x128xf32> to vector<16x32xf32>
    %147 = vector.extract_strided_slice %144 {offsets = [0, 64], sizes = [16, 32], strides = [1, 1]} : vector<16x128xf32> to vector<16x32xf32>
    %148 = vector.extract_strided_slice %144 {offsets = [0, 96], sizes = [16, 32], strides = [1, 1]} : vector<16x128xf32> to vector<16x32xf32>
    %149 = arith.mulf %146, %98 : vector<16x32xf32>
    %150 = arith.mulf %145, %147 : vector<16x32xf32>
    %151 = arith.addf %149, %150 : vector<16x32xf32>
    %152 = math.tanh %151 : vector<16x32xf32>
    %153 = arith.mulf %148, %152 : vector<16x32xf32>
    %154 = arith.truncf %153 : vector<16x32xf32> to vector<16x32xbf16>
    %155 = arith.index_cast %132 : i32 to index
    %c0_55 = arith.constant 0 : index
    %c0_56 = arith.constant 0 : index
    %156 = vector.load %arg15[%155, %c0_55, %c0_56] : memref<8x16x128xf32, #tpu.memory_space<vmem>>, vector<1x16x128xf32>
    %157 = vector.shape_cast %156 : vector<1x16x128xf32> to vector<16x128xf32>
    %cst_57 = arith.constant dense<0.000000e+00> : vector<16x128xf32>
    %158 = tpu.matmul %123, %14, %cst_57 {dimension_numbers = #tpu.dot_dimension_numbers<[1], [0], [0], [1], [0, 0, 1, 1], [], []>} : vector<16x32xbf16>, vector<32x128xbf16>, vector<16x128xf32> -> vector<16x128xf32>
    %159 = arith.addf %157, %158 : vector<16x128xf32>
    %160 = arith.mulf %159, %23 : vector<16x128xf32>
    %161 = math.tanh %160 : vector<16x128xf32>
    %cst_58 = arith.constant 5.000000e-01 : f32
    %162 = vector.broadcast %cst_58 : f32 to vector<16x128xf32>
    %163 = arith.mulf %162, %161 : vector<16x128xf32>
    %cst_59 = arith.constant 5.000000e-01 : f32
    %164 = vector.broadcast %cst_59 : f32 to vector<16x128xf32>
    %165 = arith.addf %163, %164 : vector<16x128xf32>
    %166 = arith.select %20, %161, %165 : vector<16x128xi1>, vector<16x128xf32>
    %167 = vector.extract_strided_slice %166 {offsets = [0, 0], sizes = [16, 32], strides = [1, 1]} : vector<16x128xf32> to vector<16x32xf32>
    %168 = vector.extract_strided_slice %166 {offsets = [0, 32], sizes = [16, 32], strides = [1, 1]} : vector<16x128xf32> to vector<16x32xf32>
    %169 = vector.extract_strided_slice %166 {offsets = [0, 64], sizes = [16, 32], strides = [1, 1]} : vector<16x128xf32> to vector<16x32xf32>
    %170 = vector.extract_strided_slice %166 {offsets = [0, 96], sizes = [16, 32], strides = [1, 1]} : vector<16x128xf32> to vector<16x32xf32>
    %171 = arith.mulf %168, %120 : vector<16x32xf32>
    %172 = arith.mulf %167, %169 : vector<16x32xf32>
    %173 = arith.addf %171, %172 : vector<16x32xf32>
    %174 = math.tanh %173 : vector<16x32xf32>
    %175 = arith.mulf %170, %174 : vector<16x32xf32>
    %176 = arith.truncf %175 : vector<16x32xf32> to vector<16x32xbf16>
    %177 = arith.index_cast %c2_i32 : i32 to index
    %c0_60 = arith.constant 0 : index
    %c0_61 = arith.constant 0 : index
    %178 = vector.load %arg16[%177, %c0_60, %c0_61] : memref<8x16x32xbf16, #tpu.memory_space<vmem>>, vector<1x16x32xbf16>
    %179 = vector.shape_cast %178 : vector<1x16x32xbf16> to vector<16x32xbf16>
    %180 = vector.shape_cast %154 : vector<16x32xbf16> to vector<1x16x32xbf16>
    tpu.vector_store %arg16[%177, %c0_60, %c0_61], %180 {strides = array<i32>} : memref<8x16x32xbf16, #tpu.memory_space<vmem>>, vector<1x16x32xbf16>,
    %181 = arith.index_cast %132 : i32 to index
    %c0_62 = arith.constant 0 : index
    %c0_63 = arith.constant 0 : index
    %182 = vector.load %arg17[%181, %c0_62, %c0_63] : memref<8x16x32xbf16, #tpu.memory_space<vmem>>, vector<1x16x32xbf16>
    %183 = vector.shape_cast %182 : vector<1x16x32xbf16> to vector<16x32xbf16>
    %184 = vector.shape_cast %176 : vector<16x32xbf16> to vector<1x16x32xbf16>
    tpu.vector_store %arg17[%181, %c0_62, %c0_63], %184 {strides = array<i32>} : memref<8x16x32xbf16, #tpu.memory_space<vmem>>, vector<1x16x32xbf16>,
    %c3_i32 = arith.constant 3 : i32
    %c7_i32_64 = arith.constant 7 : i32
    %185 = arith.subi %c7_i32_64, %c3_i32 : i32
    %186 = arith.index_cast %c3_i32 : i32 to index
    %c0_65 = arith.constant 0 : index
    %c0_66 = arith.constant 0 : index
    %187 = vector.load %arg14[%186, %c0_65, %c0_66] : memref<8x16x128xf32, #tpu.memory_space<vmem>>, vector<1x16x128xf32>
    %188 = vector.shape_cast %187 : vector<1x16x128xf32> to vector<16x128xf32>
    %cst_67 = arith.constant dense<0.000000e+00> : vector<16x128xf32>
    %189 = tpu.matmul %154, %13, %cst_67 {dimension_numbers = #tpu.dot_dimension_numbers<[1], [0], [0], [1], [0, 0, 1, 1], [], []>} : vector<16x32xbf16>, vector<32x128xbf16>, vector<16x128xf32> -> vector<16x128xf32>
    %190 = arith.addf %188, %189 : vector<16x128xf32>
    %191 = arith.mulf %190, %23 : vector<16x128xf32>
    %192 = math.tanh %191 : vector<16x128xf32>
    %cst_68 = arith.constant 5.000000e-01 : f32
    %193 = vector.broadcast %cst_68 : f32 to vector<16x128xf32>
    %194 = arith.mulf %193, %192 : vector<16x128xf32>
    %cst_69 = arith.constant 5.000000e-01 : f32
    %195 = vector.broadcast %cst_69 : f32 to vector<16x128xf32>
    %196 = arith.addf %194, %195 : vector<16x128xf32>
    %197 = arith.select %20, %192, %196 : vector<16x128xi1>, vector<16x128xf32>
    %198 = vector.extract_strided_slice %197 {offsets = [0, 0], sizes = [16, 32], strides = [1, 1]} : vector<16x128xf32> to vector<16x32xf32>
    %199 = vector.extract_strided_slice %197 {offsets = [0, 32], sizes = [16, 32], strides = [1, 1]} : vector<16x128xf32> to vector<16x32xf32>
    %200 = vector.extract_strided_slice %197 {offsets = [0, 64], sizes = [16, 32], strides = [1, 1]} : vector<16x128xf32> to vector<16x32xf32>
    %201 = vector.extract_strided_slice %197 {offsets = [0, 96], sizes = [16, 32], strides = [1, 1]} : vector<16x128xf32> to vector<16x32xf32>
    %202 = arith.mulf %199, %151 : vector<16x32xf32>
    %203 = arith.mulf %198, %200 : vector<16x32xf32>
    %204 = arith.addf %202, %203 : vector<16x32xf32>
    %205 = math.tanh %204 : vector<16x32xf32>
    %206 = arith.mulf %201, %205 : vector<16x32xf32>
    %207 = arith.truncf %206 : vector<16x32xf32> to vector<16x32xbf16>
    %208 = arith.index_cast %185 : i32 to index
    %c0_70 = arith.constant 0 : index
    %c0_71 = arith.constant 0 : index
    %209 = vector.load %arg15[%208, %c0_70, %c0_71] : memref<8x16x128xf32, #tpu.memory_space<vmem>>, vector<1x16x128xf32>
    %210 = vector.shape_cast %209 : vector<1x16x128xf32> to vector<16x128xf32>
    %cst_72 = arith.constant dense<0.000000e+00> : vector<16x128xf32>
    %211 = tpu.matmul %176, %14, %cst_72 {dimension_numbers = #tpu.dot_dimension_numbers<[1], [0], [0], [1], [0, 0, 1, 1], [], []>} : vector<16x32xbf16>, vector<32x128xbf16>, vector<16x128xf32> -> vector<16x128xf32>
    %212 = arith.addf %210, %211 : vector<16x128xf32>
    %213 = arith.mulf %212, %23 : vector<16x128xf32>
    %214 = math.tanh %213 : vector<16x128xf32>
    %cst_73 = arith.constant 5.000000e-01 : f32
    %215 = vector.broadcast %cst_73 : f32 to vector<16x128xf32>
    %216 = arith.mulf %215, %214 : vector<16x128xf32>
    %cst_74 = arith.constant 5.000000e-01 : f32
    %217 = vector.broadcast %cst_74 : f32 to vector<16x128xf32>
    %218 = arith.addf %216, %217 : vector<16x128xf32>
    %219 = arith.select %20, %214, %218 : vector<16x128xi1>, vector<16x128xf32>
    %220 = vector.extract_strided_slice %219 {offsets = [0, 0], sizes = [16, 32], strides = [1, 1]} : vector<16x128xf32> to vector<16x32xf32>
    %221 = vector.extract_strided_slice %219 {offsets = [0, 32], sizes = [16, 32], strides = [1, 1]} : vector<16x128xf32> to vector<16x32xf32>
    %222 = vector.extract_strided_slice %219 {offsets = [0, 64], sizes = [16, 32], strides = [1, 1]} : vector<16x128xf32> to vector<16x32xf32>
    %223 = vector.extract_strided_slice %219 {offsets = [0, 96], sizes = [16, 32], strides = [1, 1]} : vector<16x128xf32> to vector<16x32xf32>
    %224 = arith.mulf %221, %173 : vector<16x32xf32>
    %225 = arith.mulf %220, %222 : vector<16x32xf32>
    %226 = arith.addf %224, %225 : vector<16x32xf32>
    %227 = math.tanh %226 : vector<16x32xf32>
    %228 = arith.mulf %223, %227 : vector<16x32xf32>
    %229 = arith.truncf %228 : vector<16x32xf32> to vector<16x32xbf16>
    %230 = arith.index_cast %c3_i32 : i32 to index
    %c0_75 = arith.constant 0 : index
    %c0_76 = arith.constant 0 : index
    %231 = vector.load %arg16[%230, %c0_75, %c0_76] : memref<8x16x32xbf16, #tpu.memory_space<vmem>>, vector<1x16x32xbf16>
    %232 = vector.shape_cast %231 : vector<1x16x32xbf16> to vector<16x32xbf16>
    %233 = vector.shape_cast %207 : vector<16x32xbf16> to vector<1x16x32xbf16>
    tpu.vector_store %arg16[%230, %c0_75, %c0_76], %233 {strides = array<i32>} : memref<8x16x32xbf16, #tpu.memory_space<vmem>>, vector<1x16x32xbf16>,
    %234 = arith.index_cast %185 : i32 to index
    %c0_77 = arith.constant 0 : index
    %c0_78 = arith.constant 0 : index
    %235 = vector.load %arg17[%234, %c0_77, %c0_78] : memref<8x16x32xbf16, #tpu.memory_space<vmem>>, vector<1x16x32xbf16>
    %236 = vector.shape_cast %235 : vector<1x16x32xbf16> to vector<16x32xbf16>
    %237 = vector.shape_cast %229 : vector<16x32xbf16> to vector<1x16x32xbf16>
    tpu.vector_store %arg17[%234, %c0_77, %c0_78], %237 {strides = array<i32>} : memref<8x16x32xbf16, #tpu.memory_space<vmem>>, vector<1x16x32xbf16>,
    %c4_i32 = arith.constant 4 : i32
    %c7_i32_79 = arith.constant 7 : i32
    %238 = arith.subi %c7_i32_79, %c4_i32 : i32
    %239 = arith.index_cast %c4_i32 : i32 to index
    %c0_80 = arith.constant 0 : index
    %c0_81 = arith.constant 0 : index
    %240 = vector.load %arg14[%239, %c0_80, %c0_81] : memref<8x16x128xf32, #tpu.memory_space<vmem>>, vector<1x16x128xf32>
    %241 = vector.shape_cast %240 : vector<1x16x128xf32> to vector<16x128xf32>
    %cst_82 = arith.constant dense<0.000000e+00> : vector<16x128xf32>
    %242 = tpu.matmul %207, %13, %cst_82 {dimension_numbers = #tpu.dot_dimension_numbers<[1], [0], [0], [1], [0, 0, 1, 1], [], []>} : vector<16x32xbf16>, vector<32x128xbf16>, vector<16x128xf32> -> vector<16x128xf32>
    %243 = arith.addf %241, %242 : vector<16x128xf32>
    %244 = arith.mulf %243, %23 : vector<16x128xf32>
    %245 = math.tanh %244 : vector<16x128xf32>
    %cst_83 = arith.constant 5.000000e-01 : f32
    %246 = vector.broadcast %cst_83 : f32 to vector<16x128xf32>
    %247 = arith.mulf %246, %245 : vector<16x128xf32>
    %cst_84 = arith.constant 5.000000e-01 : f32
    %248 = vector.broadcast %cst_84 : f32 to vector<16x128xf32>
    %249 = arith.addf %247, %248 : vector<16x128xf32>
    %250 = arith.select %20, %245, %249 : vector<16x128xi1>, vector<16x128xf32>
    %251 = vector.extract_strided_slice %250 {offsets = [0, 0], sizes = [16, 32], strides = [1, 1]} : vector<16x128xf32> to vector<16x32xf32>
    %252 = vector.extract_strided_slice %250 {offsets = [0, 32], sizes = [16, 32], strides = [1, 1]} : vector<16x128xf32> to vector<16x32xf32>
    %253 = vector.extract_strided_slice %250 {offsets = [0, 64], sizes = [16, 32], strides = [1, 1]} : vector<16x128xf32> to vector<16x32xf32>
    %254 = vector.extract_strided_slice %250 {offsets = [0, 96], sizes = [16, 32], strides = [1, 1]} : vector<16x128xf32> to vector<16x32xf32>
    %255 = arith.mulf %252, %204 : vector<16x32xf32>
    %256 = arith.mulf %251, %253 : vector<16x32xf32>
    %257 = arith.addf %255, %256 : vector<16x32xf32>
    %258 = math.tanh %257 : vector<16x32xf32>
    %259 = arith.mulf %254, %258 : vector<16x32xf32>
    %260 = arith.truncf %259 : vector<16x32xf32> to vector<16x32xbf16>
    %261 = arith.index_cast %238 : i32 to index
    %c0_85 = arith.constant 0 : index
    %c0_86 = arith.constant 0 : index
    %262 = vector.load %arg15[%261, %c0_85, %c0_86] : memref<8x16x128xf32, #tpu.memory_space<vmem>>, vector<1x16x128xf32>
    %263 = vector.shape_cast %262 : vector<1x16x128xf32> to vector<16x128xf32>
    %cst_87 = arith.constant dense<0.000000e+00> : vector<16x128xf32>
    %264 = tpu.matmul %229, %14, %cst_87 {dimension_numbers = #tpu.dot_dimension_numbers<[1], [0], [0], [1], [0, 0, 1, 1], [], []>} : vector<16x32xbf16>, vector<32x128xbf16>, vector<16x128xf32> -> vector<16x128xf32>
    %265 = arith.addf %263, %264 : vector<16x128xf32>
    %266 = arith.mulf %265, %23 : vector<16x128xf32>
    %267 = math.tanh %266 : vector<16x128xf32>
    %cst_88 = arith.constant 5.000000e-01 : f32
    %268 = vector.broadcast %cst_88 : f32 to vector<16x128xf32>
    %269 = arith.mulf %268, %267 : vector<16x128xf32>
    %cst_89 = arith.constant 5.000000e-01 : f32
    %270 = vector.broadcast %cst_89 : f32 to vector<16x128xf32>
    %271 = arith.addf %269, %270 : vector<16x128xf32>
    %272 = arith.select %20, %267, %271 : vector<16x128xi1>, vector<16x128xf32>
    %273 = vector.extract_strided_slice %272 {offsets = [0, 0], sizes = [16, 32], strides = [1, 1]} : vector<16x128xf32> to vector<16x32xf32>
    %274 = vector.extract_strided_slice %272 {offsets = [0, 32], sizes = [16, 32], strides = [1, 1]} : vector<16x128xf32> to vector<16x32xf32>
    %275 = vector.extract_strided_slice %272 {offsets = [0, 64], sizes = [16, 32], strides = [1, 1]} : vector<16x128xf32> to vector<16x32xf32>
    %276 = vector.extract_strided_slice %272 {offsets = [0, 96], sizes = [16, 32], strides = [1, 1]} : vector<16x128xf32> to vector<16x32xf32>
    %277 = arith.mulf %274, %226 : vector<16x32xf32>
    %278 = arith.mulf %273, %275 : vector<16x32xf32>
    %279 = arith.addf %277, %278 : vector<16x32xf32>
    %280 = math.tanh %279 : vector<16x32xf32>
    %281 = arith.mulf %276, %280 : vector<16x32xf32>
    %282 = arith.truncf %281 : vector<16x32xf32> to vector<16x32xbf16>
    %283 = arith.index_cast %c4_i32 : i32 to index
    %c0_90 = arith.constant 0 : index
    %c0_91 = arith.constant 0 : index
    %284 = vector.load %arg16[%283, %c0_90, %c0_91] : memref<8x16x32xbf16, #tpu.memory_space<vmem>>, vector<1x16x32xbf16>
    %285 = vector.shape_cast %284 : vector<1x16x32xbf16> to vector<16x32xbf16>
    %286 = vector.shape_cast %260 : vector<16x32xbf16> to vector<1x16x32xbf16>
    tpu.vector_store %arg16[%283, %c0_90, %c0_91], %286 {strides = array<i32>} : memref<8x16x32xbf16, #tpu.memory_space<vmem>>, vector<1x16x32xbf16>,
    %287 = arith.index_cast %238 : i32 to index
    %c0_92 = arith.constant 0 : index
    %c0_93 = arith.constant 0 : index
    %288 = vector.load %arg17[%287, %c0_92, %c0_93] : memref<8x16x32xbf16, #tpu.memory_space<vmem>>, vector<1x16x32xbf16>
    %289 = vector.shape_cast %288 : vector<1x16x32xbf16> to vector<16x32xbf16>
    %290 = vector.shape_cast %282 : vector<16x32xbf16> to vector<1x16x32xbf16>
    tpu.vector_store %arg17[%287, %c0_92, %c0_93], %290 {strides = array<i32>} : memref<8x16x32xbf16, #tpu.memory_space<vmem>>, vector<1x16x32xbf16>,
    %c5_i32 = arith.constant 5 : i32
    %c7_i32_94 = arith.constant 7 : i32
    %291 = arith.subi %c7_i32_94, %c5_i32 : i32
    %292 = arith.index_cast %c5_i32 : i32 to index
    %c0_95 = arith.constant 0 : index
    %c0_96 = arith.constant 0 : index
    %293 = vector.load %arg14[%292, %c0_95, %c0_96] : memref<8x16x128xf32, #tpu.memory_space<vmem>>, vector<1x16x128xf32>
    %294 = vector.shape_cast %293 : vector<1x16x128xf32> to vector<16x128xf32>
    %cst_97 = arith.constant dense<0.000000e+00> : vector<16x128xf32>
    %295 = tpu.matmul %260, %13, %cst_97 {dimension_numbers = #tpu.dot_dimension_numbers<[1], [0], [0], [1], [0, 0, 1, 1], [], []>} : vector<16x32xbf16>, vector<32x128xbf16>, vector<16x128xf32> -> vector<16x128xf32>
    %296 = arith.addf %294, %295 : vector<16x128xf32>
    %297 = arith.mulf %296, %23 : vector<16x128xf32>
    %298 = math.tanh %297 : vector<16x128xf32>
    %cst_98 = arith.constant 5.000000e-01 : f32
    %299 = vector.broadcast %cst_98 : f32 to vector<16x128xf32>
    %300 = arith.mulf %299, %298 : vector<16x128xf32>
    %cst_99 = arith.constant 5.000000e-01 : f32
    %301 = vector.broadcast %cst_99 : f32 to vector<16x128xf32>
    %302 = arith.addf %300, %301 : vector<16x128xf32>
    %303 = arith.select %20, %298, %302 : vector<16x128xi1>, vector<16x128xf32>
    %304 = vector.extract_strided_slice %303 {offsets = [0, 0], sizes = [16, 32], strides = [1, 1]} : vector<16x128xf32> to vector<16x32xf32>
    %305 = vector.extract_strided_slice %303 {offsets = [0, 32], sizes = [16, 32], strides = [1, 1]} : vector<16x128xf32> to vector<16x32xf32>
    %306 = vector.extract_strided_slice %303 {offsets = [0, 64], sizes = [16, 32], strides = [1, 1]} : vector<16x128xf32> to vector<16x32xf32>
    %307 = vector.extract_strided_slice %303 {offsets = [0, 96], sizes = [16, 32], strides = [1, 1]} : vector<16x128xf32> to vector<16x32xf32>
    %308 = arith.mulf %305, %257 : vector<16x32xf32>
    %309 = arith.mulf %304, %306 : vector<16x32xf32>
    %310 = arith.addf %308, %309 : vector<16x32xf32>
    %311 = math.tanh %310 : vector<16x32xf32>
    %312 = arith.mulf %307, %311 : vector<16x32xf32>
    %313 = arith.truncf %312 : vector<16x32xf32> to vector<16x32xbf16>
    %314 = arith.index_cast %291 : i32 to index
    %c0_100 = arith.constant 0 : index
    %c0_101 = arith.constant 0 : index
    %315 = vector.load %arg15[%314, %c0_100, %c0_101] : memref<8x16x128xf32, #tpu.memory_space<vmem>>, vector<1x16x128xf32>
    %316 = vector.shape_cast %315 : vector<1x16x128xf32> to vector<16x128xf32>
    %cst_102 = arith.constant dense<0.000000e+00> : vector<16x128xf32>
    %317 = tpu.matmul %282, %14, %cst_102 {dimension_numbers = #tpu.dot_dimension_numbers<[1], [0], [0], [1], [0, 0, 1, 1], [], []>} : vector<16x32xbf16>, vector<32x128xbf16>, vector<16x128xf32> -> vector<16x128xf32>
    %318 = arith.addf %316, %317 : vector<16x128xf32>
    %319 = arith.mulf %318, %23 : vector<16x128xf32>
    %320 = math.tanh %319 : vector<16x128xf32>
    %cst_103 = arith.constant 5.000000e-01 : f32
    %321 = vector.broadcast %cst_103 : f32 to vector<16x128xf32>
    %322 = arith.mulf %321, %320 : vector<16x128xf32>
    %cst_104 = arith.constant 5.000000e-01 : f32
    %323 = vector.broadcast %cst_104 : f32 to vector<16x128xf32>
    %324 = arith.addf %322, %323 : vector<16x128xf32>
    %325 = arith.select %20, %320, %324 : vector<16x128xi1>, vector<16x128xf32>
    %326 = vector.extract_strided_slice %325 {offsets = [0, 0], sizes = [16, 32], strides = [1, 1]} : vector<16x128xf32> to vector<16x32xf32>
    %327 = vector.extract_strided_slice %325 {offsets = [0, 32], sizes = [16, 32], strides = [1, 1]} : vector<16x128xf32> to vector<16x32xf32>
    %328 = vector.extract_strided_slice %325 {offsets = [0, 64], sizes = [16, 32], strides = [1, 1]} : vector<16x128xf32> to vector<16x32xf32>
    %329 = vector.extract_strided_slice %325 {offsets = [0, 96], sizes = [16, 32], strides = [1, 1]} : vector<16x128xf32> to vector<16x32xf32>
    %330 = arith.mulf %327, %279 : vector<16x32xf32>
    %331 = arith.mulf %326, %328 : vector<16x32xf32>
    %332 = arith.addf %330, %331 : vector<16x32xf32>
    %333 = math.tanh %332 : vector<16x32xf32>
    %334 = arith.mulf %329, %333 : vector<16x32xf32>
    %335 = arith.truncf %334 : vector<16x32xf32> to vector<16x32xbf16>
    %336 = arith.index_cast %c5_i32 : i32 to index
    %c0_105 = arith.constant 0 : index
    %c0_106 = arith.constant 0 : index
    %337 = vector.load %arg16[%336, %c0_105, %c0_106] : memref<8x16x32xbf16, #tpu.memory_space<vmem>>, vector<1x16x32xbf16>
    %338 = vector.shape_cast %337 : vector<1x16x32xbf16> to vector<16x32xbf16>
    %339 = vector.shape_cast %313 : vector<16x32xbf16> to vector<1x16x32xbf16>
    tpu.vector_store %arg16[%336, %c0_105, %c0_106], %339 {strides = array<i32>} : memref<8x16x32xbf16, #tpu.memory_space<vmem>>, vector<1x16x32xbf16>,
    %340 = arith.index_cast %291 : i32 to index
    %c0_107 = arith.constant 0 : index
    %c0_108 = arith.constant 0 : index
    %341 = vector.load %arg17[%340, %c0_107, %c0_108] : memref<8x16x32xbf16, #tpu.memory_space<vmem>>, vector<1x16x32xbf16>
    %342 = vector.shape_cast %341 : vector<1x16x32xbf16> to vector<16x32xbf16>
    %343 = vector.shape_cast %335 : vector<16x32xbf16> to vector<1x16x32xbf16>
    tpu.vector_store %arg17[%340, %c0_107, %c0_108], %343 {strides = array<i32>} : memref<8x16x32xbf16, #tpu.memory_space<vmem>>, vector<1x16x32xbf16>,
    %c6_i32 = arith.constant 6 : i32
    %c7_i32_109 = arith.constant 7 : i32
    %344 = arith.subi %c7_i32_109, %c6_i32 : i32
    %345 = arith.index_cast %c6_i32 : i32 to index
    %c0_110 = arith.constant 0 : index
    %c0_111 = arith.constant 0 : index
    %346 = vector.load %arg14[%345, %c0_110, %c0_111] : memref<8x16x128xf32, #tpu.memory_space<vmem>>, vector<1x16x128xf32>
    %347 = vector.shape_cast %346 : vector<1x16x128xf32> to vector<16x128xf32>
    %cst_112 = arith.constant dense<0.000000e+00> : vector<16x128xf32>
    %348 = tpu.matmul %313, %13, %cst_112 {dimension_numbers = #tpu.dot_dimension_numbers<[1], [0], [0], [1], [0, 0, 1, 1], [], []>} : vector<16x32xbf16>, vector<32x128xbf16>, vector<16x128xf32> -> vector<16x128xf32>
    %349 = arith.addf %347, %348 : vector<16x128xf32>
    %350 = arith.mulf %349, %23 : vector<16x128xf32>
    %351 = math.tanh %350 : vector<16x128xf32>
    %cst_113 = arith.constant 5.000000e-01 : f32
    %352 = vector.broadcast %cst_113 : f32 to vector<16x128xf32>
    %353 = arith.mulf %352, %351 : vector<16x128xf32>
    %cst_114 = arith.constant 5.000000e-01 : f32
    %354 = vector.broadcast %cst_114 : f32 to vector<16x128xf32>
    %355 = arith.addf %353, %354 : vector<16x128xf32>
    %356 = arith.select %20, %351, %355 : vector<16x128xi1>, vector<16x128xf32>
    %357 = vector.extract_strided_slice %356 {offsets = [0, 0], sizes = [16, 32], strides = [1, 1]} : vector<16x128xf32> to vector<16x32xf32>
    %358 = vector.extract_strided_slice %356 {offsets = [0, 32], sizes = [16, 32], strides = [1, 1]} : vector<16x128xf32> to vector<16x32xf32>
    %359 = vector.extract_strided_slice %356 {offsets = [0, 64], sizes = [16, 32], strides = [1, 1]} : vector<16x128xf32> to vector<16x32xf32>
    %360 = vector.extract_strided_slice %356 {offsets = [0, 96], sizes = [16, 32], strides = [1, 1]} : vector<16x128xf32> to vector<16x32xf32>
    %361 = arith.mulf %358, %310 : vector<16x32xf32>
    %362 = arith.mulf %357, %359 : vector<16x32xf32>
    %363 = arith.addf %361, %362 : vector<16x32xf32>
    %364 = math.tanh %363 : vector<16x32xf32>
    %365 = arith.mulf %360, %364 : vector<16x32xf32>
    %366 = arith.truncf %365 : vector<16x32xf32> to vector<16x32xbf16>
    %367 = arith.index_cast %344 : i32 to index
    %c0_115 = arith.constant 0 : index
    %c0_116 = arith.constant 0 : index
    %368 = vector.load %arg15[%367, %c0_115, %c0_116] : memref<8x16x128xf32, #tpu.memory_space<vmem>>, vector<1x16x128xf32>
    %369 = vector.shape_cast %368 : vector<1x16x128xf32> to vector<16x128xf32>
    %cst_117 = arith.constant dense<0.000000e+00> : vector<16x128xf32>
    %370 = tpu.matmul %335, %14, %cst_117 {dimension_numbers = #tpu.dot_dimension_numbers<[1], [0], [0], [1], [0, 0, 1, 1], [], []>} : vector<16x32xbf16>, vector<32x128xbf16>, vector<16x128xf32> -> vector<16x128xf32>
    %371 = arith.addf %369, %370 : vector<16x128xf32>
    %372 = arith.mulf %371, %23 : vector<16x128xf32>
    %373 = math.tanh %372 : vector<16x128xf32>
    %cst_118 = arith.constant 5.000000e-01 : f32
    %374 = vector.broadcast %cst_118 : f32 to vector<16x128xf32>
    %375 = arith.mulf %374, %373 : vector<16x128xf32>
    %cst_119 = arith.constant 5.000000e-01 : f32
    %376 = vector.broadcast %cst_119 : f32 to vector<16x128xf32>
    %377 = arith.addf %375, %376 : vector<16x128xf32>
    %378 = arith.select %20, %373, %377 : vector<16x128xi1>, vector<16x128xf32>
    %379 = vector.extract_strided_slice %378 {offsets = [0, 0], sizes = [16, 32], strides = [1, 1]} : vector<16x128xf32> to vector<16x32xf32>
    %380 = vector.extract_strided_slice %378 {offsets = [0, 32], sizes = [16, 32], strides = [1, 1]} : vector<16x128xf32> to vector<16x32xf32>
    %381 = vector.extract_strided_slice %378 {offsets = [0, 64], sizes = [16, 32], strides = [1, 1]} : vector<16x128xf32> to vector<16x32xf32>
    %382 = vector.extract_strided_slice %378 {offsets = [0, 96], sizes = [16, 32], strides = [1, 1]} : vector<16x128xf32> to vector<16x32xf32>
    %383 = arith.mulf %380, %332 : vector<16x32xf32>
    %384 = arith.mulf %379, %381 : vector<16x32xf32>
    %385 = arith.addf %383, %384 : vector<16x32xf32>
    %386 = math.tanh %385 : vector<16x32xf32>
    %387 = arith.mulf %382, %386 : vector<16x32xf32>
    %388 = arith.truncf %387 : vector<16x32xf32> to vector<16x32xbf16>
    %389 = arith.index_cast %c6_i32 : i32 to index
    %c0_120 = arith.constant 0 : index
    %c0_121 = arith.constant 0 : index
    %390 = vector.load %arg16[%389, %c0_120, %c0_121] : memref<8x16x32xbf16, #tpu.memory_space<vmem>>, vector<1x16x32xbf16>
    %391 = vector.shape_cast %390 : vector<1x16x32xbf16> to vector<16x32xbf16>
    %392 = vector.shape_cast %366 : vector<16x32xbf16> to vector<1x16x32xbf16>
    tpu.vector_store %arg16[%389, %c0_120, %c0_121], %392 {strides = array<i32>} : memref<8x16x32xbf16, #tpu.memory_space<vmem>>, vector<1x16x32xbf16>,
    %393 = arith.index_cast %344 : i32 to index
    %c0_122 = arith.constant 0 : index
    %c0_123 = arith.constant 0 : index
    %394 = vector.load %arg17[%393, %c0_122, %c0_123] : memref<8x16x32xbf16, #tpu.memory_space<vmem>>, vector<1x16x32xbf16>
    %395 = vector.shape_cast %394 : vector<1x16x32xbf16> to vector<16x32xbf16>
    %396 = vector.shape_cast %388 : vector<16x32xbf16> to vector<1x16x32xbf16>
    tpu.vector_store %arg17[%393, %c0_122, %c0_123], %396 {strides = array<i32>} : memref<8x16x32xbf16, #tpu.memory_space<vmem>>, vector<1x16x32xbf16>,
    %c7_i32_124 = arith.constant 7 : i32
    %c7_i32_125 = arith.constant 7 : i32
    %397 = arith.subi %c7_i32_125, %c7_i32_124 : i32
    %398 = arith.index_cast %c7_i32_124 : i32 to index
    %c0_126 = arith.constant 0 : index
    %c0_127 = arith.constant 0 : index
    %399 = vector.load %arg14[%398, %c0_126, %c0_127] : memref<8x16x128xf32, #tpu.memory_space<vmem>>, vector<1x16x128xf32>
    %400 = vector.shape_cast %399 : vector<1x16x128xf32> to vector<16x128xf32>
    %cst_128 = arith.constant dense<0.000000e+00> : vector<16x128xf32>
    %401 = tpu.matmul %366, %13, %cst_128 {dimension_numbers = #tpu.dot_dimension_numbers<[1], [0], [0], [1], [0, 0, 1, 1], [], []>} : vector<16x32xbf16>, vector<32x128xbf16>, vector<16x128xf32> -> vector<16x128xf32>
    %402 = arith.addf %400, %401 : vector<16x128xf32>
    %403 = arith.mulf %402, %23 : vector<16x128xf32>
    %404 = math.tanh %403 : vector<16x128xf32>
    %cst_129 = arith.constant 5.000000e-01 : f32
    %405 = vector.broadcast %cst_129 : f32 to vector<16x128xf32>
    %406 = arith.mulf %405, %404 : vector<16x128xf32>
    %cst_130 = arith.constant 5.000000e-01 : f32
    %407 = vector.broadcast %cst_130 : f32 to vector<16x128xf32>
    %408 = arith.addf %406, %407 : vector<16x128xf32>
    %409 = arith.select %20, %404, %408 : vector<16x128xi1>, vector<16x128xf32>
    %410 = vector.extract_strided_slice %409 {offsets = [0, 0], sizes = [16, 32], strides = [1, 1]} : vector<16x128xf32> to vector<16x32xf32>
    %411 = vector.extract_strided_slice %409 {offsets = [0, 32], sizes = [16, 32], strides = [1, 1]} : vector<16x128xf32> to vector<16x32xf32>
    %412 = vector.extract_strided_slice %409 {offsets = [0, 64], sizes = [16, 32], strides = [1, 1]} : vector<16x128xf32> to vector<16x32xf32>
    %413 = vector.extract_strided_slice %409 {offsets = [0, 96], sizes = [16, 32], strides = [1, 1]} : vector<16x128xf32> to vector<16x32xf32>
    %414 = arith.mulf %411, %363 : vector<16x32xf32>
    %415 = arith.mulf %410, %412 : vector<16x32xf32>
    %416 = arith.addf %414, %415 : vector<16x32xf32>
    %417 = math.tanh %416 : vector<16x32xf32>
    %418 = arith.mulf %413, %417 : vector<16x32xf32>
    %419 = arith.truncf %418 : vector<16x32xf32> to vector<16x32xbf16>
    %420 = arith.index_cast %397 : i32 to index
    %c0_131 = arith.constant 0 : index
    %c0_132 = arith.constant 0 : index
    %421 = vector.load %arg15[%420, %c0_131, %c0_132] : memref<8x16x128xf32, #tpu.memory_space<vmem>>, vector<1x16x128xf32>
    %422 = vector.shape_cast %421 : vector<1x16x128xf32> to vector<16x128xf32>
    %cst_133 = arith.constant dense<0.000000e+00> : vector<16x128xf32>
    %423 = tpu.matmul %388, %14, %cst_133 {dimension_numbers = #tpu.dot_dimension_numbers<[1], [0], [0], [1], [0, 0, 1, 1], [], []>} : vector<16x32xbf16>, vector<32x128xbf16>, vector<16x128xf32> -> vector<16x128xf32>
    %424 = arith.addf %422, %423 : vector<16x128xf32>
    %425 = arith.mulf %424, %23 : vector<16x128xf32>
    %426 = math.tanh %425 : vector<16x128xf32>
    %cst_134 = arith.constant 5.000000e-01 : f32
    %427 = vector.broadcast %cst_134 : f32 to vector<16x128xf32>
    %428 = arith.mulf %427, %426 : vector<16x128xf32>
    %cst_135 = arith.constant 5.000000e-01 : f32
    %429 = vector.broadcast %cst_135 : f32 to vector<16x128xf32>
    %430 = arith.addf %428, %429 : vector<16x128xf32>
    %431 = arith.select %20, %426, %430 : vector<16x128xi1>, vector<16x128xf32>
    %432 = vector.extract_strided_slice %431 {offsets = [0, 0], sizes = [16, 32], strides = [1, 1]} : vector<16x128xf32> to vector<16x32xf32>
    %433 = vector.extract_strided_slice %431 {offsets = [0, 32], sizes = [16, 32], strides = [1, 1]} : vector<16x128xf32> to vector<16x32xf32>
    %434 = vector.extract_strided_slice %431 {offsets = [0, 64], sizes = [16, 32], strides = [1, 1]} : vector<16x128xf32> to vector<16x32xf32>
    %435 = vector.extract_strided_slice %431 {offsets = [0, 96], sizes = [16, 32], strides = [1, 1]} : vector<16x128xf32> to vector<16x32xf32>
    %436 = arith.mulf %433, %385 : vector<16x32xf32>
    %437 = arith.mulf %432, %434 : vector<16x32xf32>
    %438 = arith.addf %436, %437 : vector<16x32xf32>
    %439 = math.tanh %438 : vector<16x32xf32>
    %440 = arith.mulf %435, %439 : vector<16x32xf32>
    %441 = arith.truncf %440 : vector<16x32xf32> to vector<16x32xbf16>
    %442 = arith.index_cast %c7_i32_124 : i32 to index
    %c0_136 = arith.constant 0 : index
    %c0_137 = arith.constant 0 : index
    %443 = vector.load %arg16[%442, %c0_136, %c0_137] : memref<8x16x32xbf16, #tpu.memory_space<vmem>>, vector<1x16x32xbf16>
    %444 = vector.shape_cast %443 : vector<1x16x32xbf16> to vector<16x32xbf16>
    %445 = vector.shape_cast %419 : vector<16x32xbf16> to vector<1x16x32xbf16>
    tpu.vector_store %arg16[%442, %c0_136, %c0_137], %445 {strides = array<i32>} : memref<8x16x32xbf16, #tpu.memory_space<vmem>>, vector<1x16x32xbf16>,
    %446 = arith.index_cast %397 : i32 to index
    %c0_138 = arith.constant 0 : index
    %c0_139 = arith.constant 0 : index
    %447 = vector.load %arg17[%446, %c0_138, %c0_139] : memref<8x16x32xbf16, #tpu.memory_space<vmem>>, vector<1x16x32xbf16>
    %448 = vector.shape_cast %447 : vector<1x16x32xbf16> to vector<16x32xbf16>
    %449 = vector.shape_cast %441 : vector<16x32xbf16> to vector<1x16x32xbf16>
    tpu.vector_store %arg17[%446, %c0_138, %c0_139], %449 {strides = array<i32>} : memref<8x16x32xbf16, #tpu.memory_space<vmem>>, vector<1x16x32xbf16>,
    %c8_i32 = arith.constant 8 : i32
    %c0_140 = arith.constant 0 : index
    %c0_141 = arith.constant 0 : index
    %c0_142 = arith.constant 0 : index
    %450 = vector.load %arg16[%c0_140, %c0_141, %c0_142] : memref<8x16x32xbf16, #tpu.memory_space<vmem>>, vector<8x16x32xbf16>
    %c0_143 = arith.constant 0 : index
    %c0_144 = arith.constant 0 : index
    %c0_145 = arith.constant 0 : index
    %451 = vector.load %arg17[%c0_143, %c0_144, %c0_145] : memref<8x16x32xbf16, #tpu.memory_space<vmem>>, vector<8x16x32xbf16>
    %c0_146 = arith.constant 0 : index
    %c0_147 = arith.constant 0 : index
    %c0_148 = arith.constant 0 : index
    %452 = vector.load %arg7[%c0_146, %c0_147, %c0_148] : memref<2x1x32xf32, #tpu.memory_space<vmem>>, vector<1x1x32xf32>
    %c1 = arith.constant 1 : index
    %c0_149 = arith.constant 0 : index
    %c0_150 = arith.constant 0 : index
    %453 = vector.load %arg7[%c1, %c0_149, %c0_150] : memref<2x1x32xf32, #tpu.memory_space<vmem>>, vector<1x1x32xf32>
    %454 = arith.extf %450 : vector<8x16x32xbf16> to vector<8x16x32xf32>
    %455 = vector.broadcast %452 : vector<1x1x32xf32> to vector<8x16x32xf32>
    %456 = arith.mulf %454, %455 : vector<8x16x32xf32>
    %cst_151 = arith.constant dense<0.000000e+00> : vector<8x16xf32>
    %457 = vector.multi_reduction <add>, %456, %cst_151 [2] : vector<8x16x32xf32> to vector<8x16xf32>
    %458 = vector.shape_cast %457 : vector<8x16xf32> to vector<8x16x1xf32>
    %459 = arith.extf %451 : vector<8x16x32xbf16> to vector<8x16x32xf32>
    %460 = vector.broadcast %453 : vector<1x1x32xf32> to vector<8x16x32xf32>
    %461 = arith.mulf %459, %460 : vector<8x16x32xf32>
    %cst_152 = arith.constant dense<0.000000e+00> : vector<8x16xf32>
    %462 = vector.multi_reduction <add>, %461, %cst_152 [2] : vector<8x16x32xf32> to vector<8x16xf32>
    %463 = vector.shape_cast %462 : vector<8x16xf32> to vector<8x16x1xf32>
    %464 = arith.addf %458, %463 : vector<8x16x1xf32>
    %c0_153 = arith.constant 0 : index
    %c0_154 = arith.constant 0 : index
    %465 = memref.load %arg8[%c0_153, %c0_154] : memref<1x1xf32, #tpu.memory_space<smem>>
    %466 = vector.broadcast %465 : f32 to vector<8x16x1xf32>
    %467 = arith.addf %464, %466 : vector<8x16x1xf32>
    %cst_155 = arith.constant dense<0xFF800000> : vector<16x1xf32>
    %468 = vector.multi_reduction <maximumf>, %467, %cst_155 [0] : vector<8x16x1xf32> to vector<16x1xf32>
    %469 = vector.shape_cast %468 : vector<16x1xf32> to vector<1x16x1xf32>
    %470 = vector.broadcast %469 : vector<1x16x1xf32> to vector<8x16x1xf32>
    %471 = arith.subf %467, %470 : vector<8x16x1xf32>
    %472 = math.exp %471 : vector<8x16x1xf32>
    %cst_156 = arith.constant dense<0.000000e+00> : vector<16x1xf32>
    %473 = vector.multi_reduction <add>, %472, %cst_156 [0] : vector<8x16x1xf32> to vector<16x1xf32>
    %474 = vector.shape_cast %473 : vector<16x1xf32> to vector<1x16x1xf32>
    %475 = tpu.reciprocal %474 {approx = true} : vector<1x16x1xf32> -> vector<1x16x1xf32>
    %476 = vector.broadcast %475 : vector<1x16x1xf32> to vector<8x16x1xf32>
    %477 = arith.mulf %472, %476 : vector<8x16x1xf32>
    %c0_157 = arith.constant 0 : index
    %c0_158 = arith.constant 0 : index
    %c0_159 = arith.constant 0 : index
    %478 = vector.load %arg2[%c0_157, %c0_158, %c0_159] : memref<8x16x1xf32, #tpu.memory_space<vmem>>, vector<8x16x1xf32>
    %cst_160 = arith.constant 1.000000e+00 : f32
    %479 = vector.broadcast %cst_160 : f32 to vector<8x16x1xf32>
    %480 = arith.subf %479, %478 : vector<8x16x1xf32>
    %481 = arith.mulf %480, %477 : vector<8x16x1xf32>
    %cst_161 = arith.constant dense<0.000000e+00> : vector<8x16xf32>
    %482 = vector.multi_reduction <add>, %481, %cst_161 [2] : vector<8x16x1xf32> to vector<8x16xf32>
    %483 = tpu.transpose %482, [1, 0] : vector<8x16xf32> -> vector<16x8xf32>
    %c0_162 = arith.constant 0 : index
    %c0_163 = arith.constant 0 : index
    %484 = vector.load %arg13[%c0_162, %c0_163] : memref<16x8xf32, #tpu.memory_space<vmem>>, vector<16x8xf32>
    tpu.vector_store %arg13[%c0_162, %c0_163], %483 {strides = array<i32>} : memref<16x8xf32, #tpu.memory_space<vmem>>, vector<16x8xf32>,
    %485 = arith.extf %450 : vector<8x16x32xbf16> to vector<8x16x32xf32>
    %486 = vector.broadcast %481 : vector<8x16x1xf32> to vector<8x16x32xf32>
    %487 = arith.mulf %486, %485 : vector<8x16x32xf32>
    %cst_164 = arith.constant dense<0.000000e+00> : vector<16x32xf32>
    %488 = vector.multi_reduction <add>, %487, %cst_164 [0] : vector<8x16x32xf32> to vector<16x32xf32>
    %489 = arith.extf %451 : vector<8x16x32xbf16> to vector<8x16x32xf32>
    %490 = vector.broadcast %481 : vector<8x16x1xf32> to vector<8x16x32xf32>
    %491 = arith.mulf %490, %489 : vector<8x16x32xf32>
    %cst_165 = arith.constant dense<0.000000e+00> : vector<16x32xf32>
    %492 = vector.multi_reduction <add>, %491, %cst_165 [0] : vector<8x16x32xf32> to vector<16x32xf32>
    %c0_166 = arith.constant 0 : index
    %c0_167 = arith.constant 0 : index
    %493 = vector.load %arg9[%c0_166, %c0_167] : memref<32x4xf32, #tpu.memory_space<vmem>>, vector<32x4xf32>
    %cst_168 = arith.constant dense<0.000000e+00> : vector<16x4xf32>
    %494 = tpu.matmul %488, %493, %cst_168 {dimension_numbers = #tpu.dot_dimension_numbers<[1], [0], [0], [1], [0, 0, 1, 1], [], []>} : vector<16x32xf32>, vector<32x4xf32>, vector<16x4xf32> -> vector<16x4xf32>
    %c0_169 = arith.constant 0 : index
    %c0_170 = arith.constant 0 : index
    %495 = vector.load %arg10[%c0_169, %c0_170] : memref<32x4xf32, #tpu.memory_space<vmem>>, vector<32x4xf32>
    %cst_171 = arith.constant dense<0.000000e+00> : vector<16x4xf32>
    %496 = tpu.matmul %492, %495, %cst_171 {dimension_numbers = #tpu.dot_dimension_numbers<[1], [0], [0], [1], [0, 0, 1, 1], [], []>} : vector<16x32xf32>, vector<32x4xf32>, vector<16x4xf32> -> vector<16x4xf32>
    %497 = arith.addf %494, %496 : vector<16x4xf32>
    %c0_172 = arith.constant 0 : index
    %c0_173 = arith.constant 0 : index
    %498 = vector.load %arg11[%c0_172, %c0_173] : memref<1x4xf32, #tpu.memory_space<vmem>>, vector<1x4xf32>
    %499 = vector.broadcast %498 : vector<1x4xf32> to vector<16x4xf32>
    %500 = arith.addf %497, %499 : vector<16x4xf32>
    %c0_174 = arith.constant 0 : index
    %c0_175 = arith.constant 0 : index
    %501 = vector.load %arg12[%c0_174, %c0_175] : memref<16x4xf32, #tpu.memory_space<vmem>>, vector<16x4xf32>
    tpu.vector_store %arg12[%c0_174, %c0_175], %500 {strides = array<i32>} : memref<16x4xf32, #tpu.memory_space<vmem>>, vector<16x4xf32>,
    return
  }
  func.func @transform_0(%arg0: i32) -> (i32, i32, i32) {
    %c0_i32 = arith.constant 0 : i32
    %c0_i32_0 = arith.constant 0 : i32
    %c0_i32_1 = arith.constant 0 : i32
    return %c0_i32, %arg0, %c0_i32_0 : i32, i32, i32
  }
  func.func @transform_1(%arg0: i32) -> (i32, i32, i32) {
    %c0_i32 = arith.constant 0 : i32
    %c0_i32_0 = arith.constant 0 : i32
    %c0_i32_1 = arith.constant 0 : i32
    return %c0_i32, %arg0, %c0_i32_0 : i32, i32, i32
  }
  func.func @transform_2(%arg0: i32) -> (i32, i32) {
    %c0_i32 = arith.constant 0 : i32
    %c0_i32_0 = arith.constant 0 : i32
    %c0_i32_1 = arith.constant 0 : i32
    return %c0_i32, %c0_i32_0 : i32, i32
  }
  func.func @transform_3(%arg0: i32) -> (i32, i32) {
    %c0_i32 = arith.constant 0 : i32
    %c0_i32_0 = arith.constant 0 : i32
    %c0_i32_1 = arith.constant 0 : i32
    return %c0_i32, %c0_i32_0 : i32, i32
  }
  func.func @transform_4(%arg0: i32) -> (i32, i32) {
    %c0_i32 = arith.constant 0 : i32
    %c0_i32_0 = arith.constant 0 : i32
    %c0_i32_1 = arith.constant 0 : i32
    return %c0_i32, %c0_i32_0 : i32, i32
  }
  func.func @transform_5(%arg0: i32) -> (i32, i32) {
    %c0_i32 = arith.constant 0 : i32
    %c0_i32_0 = arith.constant 0 : i32
    %c0_i32_1 = arith.constant 0 : i32
    return %c0_i32, %c0_i32_0 : i32, i32
  }
  func.func @transform_6(%arg0: i32) -> (i32, i32, i32) {
    %c0_i32 = arith.constant 0 : i32
    %c0_i32_0 = arith.constant 0 : i32
    %c0_i32_1 = arith.constant 0 : i32
    %c0_i32_2 = arith.constant 0 : i32
    return %c0_i32, %c0_i32_0, %c0_i32_1 : i32, i32, i32
  }
  func.func @transform_7(%arg0: i32) -> (i32, i32) {
    %c0_i32 = arith.constant 0 : i32
    %c0_i32_0 = arith.constant 0 : i32
    %c0_i32_1 = arith.constant 0 : i32
    return %c0_i32, %c0_i32_0 : i32, i32
  }
  func.func @transform_8(%arg0: i32) -> (i32, i32) {
    %c0_i32 = arith.constant 0 : i32
    %c0_i32_0 = arith.constant 0 : i32
    %c0_i32_1 = arith.constant 0 : i32
    return %c0_i32, %c0_i32_0 : i32, i32
  }
  func.func @transform_9(%arg0: i32) -> (i32, i32) {
    %c0_i32 = arith.constant 0 : i32
    %c0_i32_0 = arith.constant 0 : i32
    %c0_i32_1 = arith.constant 0 : i32
    return %c0_i32, %c0_i32_0 : i32, i32
  }
  func.func @transform_10(%arg0: i32) -> (i32, i32) {
    %c0_i32 = arith.constant 0 : i32
    %c0_i32_0 = arith.constant 0 : i32
    %c0_i32_1 = arith.constant 0 : i32
    return %c0_i32, %c0_i32_0 : i32, i32
  }
  func.func @transform_11(%arg0: i32) -> (i32, i32) {
    %c0_i32 = arith.constant 0 : i32
    %c0_i32_0 = arith.constant 0 : i32
    return %arg0, %c0_i32 : i32, i32
  }
  func.func @transform_12(%arg0: i32) -> (i32, i32) {
    %c0_i32 = arith.constant 0 : i32
    %c0_i32_0 = arith.constant 0 : i32
    return %arg0, %c0_i32 : i32, i32
  }
}

</mosaic_0001>

<llo_original>
// kernel: bilstm_att_forward.1
$region0: #{bilstm_att_forward.1}
  #allocation0 [shape = 'u32[]', space=smem, size = 0x4, offset = 0x4, fixed_abs, tag = 'smem constant byte address 0x4 - core index']
  #allocation1 [shape = 'u32[144,128]{1,0:T(1,128)}', space=vmem, size = 0x12000, scoped, tag = 'internal scratch']
  #allocation2 [shape = 'f32[8,16,128]{2,1,0:T(8,128)}', space=vmem, size = 0x10000, scoped, tag = 'scratch operand']
  #allocation3 [shape = 'f32[8,16,128]{2,1,0:T(8,128)}', space=vmem, size = 0x10000, scoped, tag = 'scratch operand']
  #allocation4 [shape = 'bf16[8,16,32]{2,1,0:T(8,128)(2,1)}', space=vmem, size = 0x8000, scoped, tag = 'scratch operand']
  #allocation5 [shape = 'bf16[8,16,32]{2,1,0:T(8,128)(2,1)}', space=vmem, size = 0x8000, scoped, tag = 'scratch operand']
  #allocation6 [shape = 'f32[1,1]{1,0:T(1,128)S(6)}', space=smem, size = 0x200, scoped, tag = 'scoped memory for bilstm_att_forward.1']
  %s0 = inlined_call_operand.vmem [shape: bf16[8,16,16], index: 0, kind: input, shape index: {}]
  %s1 = inlined_call_operand.vmem [shape: f32[8,16,1], index: 1, kind: input, shape index: {}]
  %s2 = inlined_call_operand.vmem [shape: bf16[16,256], index: 2, kind: input, shape index: {}]
  %s3 = inlined_call_operand.vmem [shape: f32[1,256], index: 3, kind: input, shape index: {}]
  %s4 = inlined_call_operand.vmem [shape: bf16[32,128], index: 4, kind: input, shape index: {}]
  %s5 = inlined_call_operand.vmem [shape: bf16[32,128], index: 5, kind: input, shape index: {}]
  %s6 = inlined_call_operand.vmem [shape: f32[2,1,32], index: 6, kind: input, shape index: {}]
  %s7 = inlined_call_operand.<no memory space> [shape: f32[1,1], index: 7, kind: input, shape index: {}]
  %s8 = inlined_call_operand.vmem [shape: f32[32,4], index: 8, kind: input, shape index: {}]
  %s9 = inlined_call_operand.vmem [shape: f32[32,4], index: 9, kind: input, shape index: {}]
  %s10 = inlined_call_operand.vmem [shape: f32[1,4], index: 10, kind: input, shape index: {}]
  %s11 = inlined_call_operand.vmem [shape: f32[16,4], index: 11, kind: output, shape index: {0}]
  %s12 = inlined_call_operand.vmem [shape: f32[16,8], index: 12, kind: output, shape index: {1}]
  %13 = xla_tuple %s11, %s12
  %s14 = sld [smem:[#allocation0]]
  $region62: #{bilstm_att_forward.1} parent=0
    _
  %s16 = ssub.s32 1, %s14
  %s17 = scalar_select 0, %s16, %s14
  %18 = sst [smem:[#allocation6]] %s7
  // Predicated region
  $region2: #{bilstm_att_forward.1} parent=0 // pred_check
    _
  $region3: #{bilstm_att_forward.1} parent=0 // pred_check_branch
    %20 = sbr.rel (0) target = $region5
  $region4: #{bilstm_att_forward.1} parent=0 // pred_region
    _
  $region5: #{bilstm_att_forward.1} parent=0 // pred_fallthru
    _
  // Predicated region
  $region6: #{bilstm_att_forward.1} parent=0 // pred_check
    _
  $region7: #{bilstm_att_forward.1} parent=0 // pred_check_branch
    %22 = sbr.rel (0) target = $region9
  $region8: #{bilstm_att_forward.1} parent=0 // pred_region
    _
  $region9: #{bilstm_att_forward.1} parent=0 // pred_fallthru
    _
  // Predicated region
  $region10: #{bilstm_att_forward.1} parent=0 // pred_check
    _
  $region11: #{bilstm_att_forward.1} parent=0 // pred_check_branch
    %24 = sbr.rel (0) target = $region13
  $region12: #{bilstm_att_forward.1} parent=0 // pred_region
    _
  $region13: #{bilstm_att_forward.1} parent=0 // pred_fallthru
    _
  // Predicated region
  $region14: #{bilstm_att_forward.1} parent=0 // pred_check
    _
  $region15: #{bilstm_att_forward.1} parent=0 // pred_check_branch
    %26 = sbr.rel (0) target = $region17
  $region16: #{bilstm_att_forward.1} parent=0 // pred_region
    _
  $region17: #{bilstm_att_forward.1} parent=0 // pred_fallthru
    _
  // Predicated region
  $region18: #{bilstm_att_forward.1} parent=0 // pred_check
    _
  $region19: #{bilstm_att_forward.1} parent=0 // pred_check_branch
    %28 = sbr.rel (0) target = $region21
  $region20: #{bilstm_att_forward.1} parent=0 // pred_region
    _
  $region21: #{bilstm_att_forward.1} parent=0 // pred_fallthru
    _
  // Predicated region
  $region22: #{bilstm_att_forward.1} parent=0 // pred_check
    _
  $region23: #{bilstm_att_forward.1} parent=0 // pred_check_branch
    %30 = sbr.rel (0) target = $region25
  $region24: #{bilstm_att_forward.1} parent=0 // pred_region
    _
  $region25: #{bilstm_att_forward.1} parent=0 // pred_fallthru
    _
  // Predicated region
  $region26: #{bilstm_att_forward.1} parent=0 // pred_check
    _
  $region27: #{bilstm_att_forward.1} parent=0 // pred_check_branch
    %32 = sbr.rel (0) target = $region29
  $region28: #{bilstm_att_forward.1} parent=0 // pred_region
    _
  $region29: #{bilstm_att_forward.1} parent=0 // pred_fallthru
    _
  // Predicated region
  $region30: #{bilstm_att_forward.1} parent=0 // pred_check
    _
  $region31: #{bilstm_att_forward.1} parent=0 // pred_check_branch
    %34 = sbr.rel (0) target = $region33
  $region32: #{bilstm_att_forward.1} parent=0 // pred_region
    _
  $region33: #{bilstm_att_forward.1} parent=0 // pred_fallthru
    _
  // Predicated region
  $region34: #{bilstm_att_forward.1} parent=0 // pred_check
    _
  $region35: #{bilstm_att_forward.1} parent=0 // pred_check_branch
    %36 = sbr.rel (0) target = $region37
  $region36: #{bilstm_att_forward.1} parent=0 // pred_region
    _
  $region37: #{bilstm_att_forward.1} parent=0 // pred_fallthru
    _
  // Predicated region
  $region38: #{bilstm_att_forward.1} parent=0 // pred_check
    _
  $region39: #{bilstm_att_forward.1} parent=0 // pred_check_branch
    %38 = sbr.rel (0) target = $region41
  $region40: #{bilstm_att_forward.1} parent=0 // pred_region
    _
  $region41: #{bilstm_att_forward.1} parent=0 // pred_fallthru
    _
  // Predicated region
  $region42: #{bilstm_att_forward.1} parent=0 // pred_check
    _
  $region43: #{bilstm_att_forward.1} parent=0 // pred_check_branch
    %40 = sbr.rel (0) target = $region45
  $region44: #{bilstm_att_forward.1} parent=0 // pred_region
    _
  $region45: #{bilstm_att_forward.1} parent=0 // pred_fallthru
    _
  %v42 = vld [vmem:[%s0] sm:$0xf]
  %v43 = vld [vmem:[%s0 + $0x4] sm:$0xf]
  %v44 = vld [vmem:[%s0 + $0x8] sm:$0xf]
  %v45 = vld [vmem:[%s0 + $0xc] sm:$0xf]
  %v46 = vld [vmem:[%s0 + $0x10] sm:$0xf]
  %v47 = vld [vmem:[%s0 + $0x14] sm:$0xf]
  %v48 = vld [vmem:[%s0 + $0x18] sm:$0xf]
  %v49 = vld [vmem:[%s0 + $0x1c] sm:$0xf]
  %v50 = vld [vmem:[%s0 + $0x20] sm:$0xf]
  %v51 = vld [vmem:[%s0 + $0x24] sm:$0xf]
  %v52 = vld [vmem:[%s0 + $0x28] sm:$0xf]
  %v53 = vld [vmem:[%s0 + $0x2c] sm:$0xf]
  %v54 = vld [vmem:[%s0 + $0x30] sm:$0xf]
  %v55 = vld [vmem:[%s0 + $0x34] sm:$0xf]
  %v56 = vld [vmem:[%s0 + $0x38] sm:$0xf]
  %v57 = vld [vmem:[%s0 + $0x3c] sm:$0xf]
  %v58 = vld [vmem:[%s2] sm:$0xff]
  %v59 = vld [vmem:[%s2 + $0x8] sm:$0xff]
  %v60 = vld [vmem:[%s3] sm:$0x3]
  %v62 = vlaneseq
  %v63 = vshrl.u32 %v62, 7
  %v64 = vsub.s32 0, %v63
  %v65 = vrot.slane %v60, %v64
  %v66 = vlaneseq
  %v67 = vshrl.u32 %v66, 7
  %v68 = vsub.s32 1, %v67
  %v69 = vrot.slane %v60, %v68
  %v88 = vunpack.c.l.b16 %v42
  %v89 = vunpack.c.l.b16 %v43
  %v90 = vunpack.c.l.b16 %v44
  %v91 = vunpack.c.l.b16 %v45
  %v92 = vunpack.c.l.b16 %v46
  %v93 = vunpack.c.l.b16 %v47
  %v94 = vunpack.c.l.b16 %v48
  %v95 = vunpack.c.l.b16 %v49
  %v96 = vunpack.c.l.b16 %v50
  %v97 = vunpack.c.l.b16 %v51
  %v98 = vunpack.c.l.b16 %v52
  %v99 = vunpack.c.l.b16 %v53
  %v100 = vunpack.c.l.b16 %v54
  %v101 = vunpack.c.l.b16 %v55
  %v102 = vunpack.c.l.b16 %v56
  %v103 = vunpack.c.l.b16 %v57
  %v104 = vpack.c.b16 %v89, %v88
  %v105 = vpack.c.b16 %v91, %v90
  %v106 = vpack.c.b16 %v93, %v92
  %v107 = vpack.c.b16 %v95, %v94
  %v108 = vpack.c.b16 %v97, %v96
  %v109 = vpack.c.b16 %v99, %v98
  %v110 = vpack.c.b16 %v101, %v100
  %v111 = vpack.c.b16 %v103, %v102
  %v114 = vunpack.c.l.b16 %v58
  %v115 = vunpack.c.h.b16 %v58
  %v116 = vunpack.c.l.b16 %v59
  %v117 = vunpack.c.h.b16 %v59
  %v118 = vpack.c.b16 %v116, %v114
  %v119 = vpack.c.b16 %v117, %v115
  %vm122 = vcmask 130048
  %v124 = vsel %vm122, %v104, 0
  %v127 = vsel %vm122, %v105, 0
  %v130 = vsel %vm122, %v106, 0
  %v133 = vsel %vm122, %v107, 0
  %v136 = vsel %vm122, %v108, 0
  %v139 = vsel %vm122, %v109, 0
  %v142 = vsel %vm122, %v110, 0
  %v145 = vsel %vm122, %v111, 0
  %147 = vmatprep.subr.bf16.mxu0 0
  %148 = vmatpush1.bf16.msra.mxu0 0
  %149 = vmatprep.subr.bf16.mxu0 0
  %150 = vmatpush1.bf16.msra.mxu0 0
  %151 = vmatprep.subr.bf16.mxu0 0
  %152 = vmatpush1.bf16.msra.mxu0 0
  %153 = vmatprep.subr.bf16.mxu0 0
  %154 = vmatpush1.bf16.msra.mxu0 0
  %155 = vmatprep.subr.bf16.mxu0 0
  %156 = vmatpush1.bf16.msra.mxu0 0
  %157 = vmatprep.subr.bf16.mxu0 0
  %158 = vmatpush1.bf16.msra.mxu0 0
  %159 = vmatprep.subr.bf16.mxu0 0
  %160 = vmatpush1.bf16.msra.mxu0 0
  %161 = vmatprep.subr.bf16.mxu0 %v119
  %162 = vmatpush1.bf16.msra.mxu0 %v118
  %163 = vmatprep.subr.bf16.mxu0 0
  %164 = vmatpush2.bf16.msra.mxu0 0
  %165 = vmatprep.subr.bf16.mxu0 0
  %166 = vmatpush2.bf16.msra.mxu0 0
  %167 = vmatprep.subr.bf16.mxu0 0
  %168 = vmatpush2.bf16.msra.mxu0 0
  %169 = vmatprep.subr.bf16.mxu0 0
  %170 = vmatpush2.bf16.msra.mxu0 0
  %171 = vmatprep.subr.bf16.mxu0 0
  %172 = vmatpush2.bf16.msra.mxu0 0
  %173 = vmatprep.subr.bf16.mxu0 0
  %174 = vmatpush2.bf16.msra.mxu0 0
  %175 = vmatprep.subr.bf16.mxu0 0
  %176 = vmatpush2.bf16.msra.mxu0 0
  %177 = vmatprep.subr.bf16.mxu0 0
  %178 = vmatpush2.bf16.msra.mxu0 0
  %179 = vmatprep.mubr.bf16.mxu0 0
  %180 = vmatmul.mubr.bf16.gmra.mxu0 %v124
  %v181 = vpop.f32.mrf.mxu0
  %v182 = vadd.f32 %v65, %v181
  %v183 = vpop.f32.mrf.mxu0
  %v184 = vadd.f32 %v69, %v183
  %v185 = vpop.f32.mrf.mxu0
  %v186 = vadd.f32 %v65, %v185
  %v187 = vpop.f32.mrf.mxu0
  %v188 = vadd.f32 %v69, %v187
  %189 = vmatprep.mubr.bf16.mxu0 0
  %190 = vmatmul.mubr.bf16.gmra.mxu0 %v127
  %v191 = vpop.f32.mrf.mxu0
  %v192 = vadd.f32 %v65, %v191
  %v193 = vpop.f32.mrf.mxu0
  %v194 = vadd.f32 %v69, %v193
  %v195 = vpop.f32.mrf.mxu0
  %v196 = vadd.f32 %v65, %v195
  %v197 = vpop.f32.mrf.mxu0
  %v198 = vadd.f32 %v69, %v197
  %199 = vmatprep.mubr.bf16.mxu0 0
  %200 = vmatmul.mubr.bf16.gmra.mxu0 %v130
  %v201 = vpop.f32.mrf.mxu0
  %v202 = vadd.f32 %v65, %v201
  %v203 = vpop.f32.mrf.mxu0
  %v204 = vadd.f32 %v69, %v203
  %v205 = vpop.f32.mrf.mxu0
  %v206 = vadd.f32 %v65, %v205
  %v207 = vpop.f32.mrf.mxu0
  %v208 = vadd.f32 %v69, %v207
  %209 = vmatprep.mubr.bf16.mxu0 0
  %210 = vmatmul.mubr.bf16.gmra.mxu0 %v133
  %v211 = vpop.f32.mrf.mxu0
  %v212 = vadd.f32 %v65, %v211
  %v213 = vpop.f32.mrf.mxu0
  %v214 = vadd.f32 %v69, %v213
  %v215 = vpop.f32.mrf.mxu0
  %v216 = vadd.f32 %v65, %v215
  %v217 = vpop.f32.mrf.mxu0
  %v218 = vadd.f32 %v69, %v217
  %219 = vmatprep.mubr.bf16.mxu0 0
  %220 = vmatmul.mubr.bf16.gmra.mxu0 %v136
  %v221 = vpop.f32.mrf.mxu0
  %v222 = vadd.f32 %v65, %v221
  %v223 = vpop.f32.mrf.mxu0
  %v224 = vadd.f32 %v69, %v223
  %v225 = vpop.f32.mrf.mxu0
  %v226 = vadd.f32 %v65, %v225
  %v227 = vpop.f32.mrf.mxu0
  %v228 = vadd.f32 %v69, %v227
  %229 = vmatprep.mubr.bf16.mxu0 0
  %230 = vmatmul.mubr.bf16.gmra.mxu0 %v139
  %v231 = vpop.f32.mrf.mxu0
  %v232 = vadd.f32 %v65, %v231
  %v233 = vpop.f32.mrf.mxu0
  %v234 = vadd.f32 %v69, %v233
  %v235 = vpop.f32.mrf.mxu0
  %v236 = vadd.f32 %v65, %v235
  %v237 = vpop.f32.mrf.mxu0
  %v238 = vadd.f32 %v69, %v237
  %239 = vmatprep.mubr.bf16.mxu0 0
  %240 = vmatmul.mubr.bf16.gmra.mxu0 %v142
  %v241 = vpop.f32.mrf.mxu0
  %v242 = vadd.f32 %v65, %v241
  %v243 = vpop.f32.mrf.mxu0
  %v244 = vadd.f32 %v69, %v243
  %v245 = vpop.f32.mrf.mxu0
  %v246 = vadd.f32 %v65, %v245
  %v247 = vpop.f32.mrf.mxu0
  %v248 = vadd.f32 %v69, %v247
  %249 = vmatprep.mubr.bf16.mxu0 0
  %250 = vmatmul.mubr.bf16.gmra.mxu0 %v145
  %v251 = vpop.f32.mrf.mxu0
  %v252 = vadd.f32 %v65, %v251
  %v253 = vpop.f32.mrf.mxu0
  %v254 = vadd.f32 %v69, %v253
  %v255 = vpop.f32.mrf.mxu0
  %v256 = vadd.f32 %v65, %v255
  %v257 = vpop.f32.mrf.mxu0
  %v258 = vadd.f32 %v69, %v257
  %259 = vdwg.mxu0
  %260 = vst [vmem:[#allocation2] sm:$0xff] %v182
  %261 = vst [vmem:[#allocation2 + $0x8] sm:$0xff] %v186
  %262 = vst [vmem:[#allocation2 + $0x10] sm:$0xff] %v192
  %263 = vst [vmem:[#allocation2 + $0x18] sm:$0xff] %v196
  %264 = vst [vmem:[#allocation2 + $0x20] sm:$0xff] %v202
  %265 = vst [vmem:[#allocation2 + $0x28] sm:$0xff] %v206
  %266 = vst [vmem:[#allocation2 + $0x30] sm:$0xff] %v212
  %267 = vst [vmem:[#allocation2 + $0x38] sm:$0xff] %v216
  %268 = vst [vmem:[#allocation2 + $0x40] sm:$0xff] %v222
  %269 = vst [vmem:[#allocation2 + $0x48] sm:$0xff] %v226
  %270 = vst [vmem:[#allocation2 + $0x50] sm:$0xff] %v232
  %271 = vst [vmem:[#allocation2 + $0x58] sm:$0xff] %v236
  %272 = vst [vmem:[#allocation2 + $0x60] sm:$0xff] %v242
  %273 = vst [vmem:[#allocation2 + $0x68] sm:$0xff] %v246
  %274 = vst [vmem:[#allocation2 + $0x70] sm:$0xff] %v252
  %275 = vst [vmem:[#allocation2 + $0x78] sm:$0xff] %v256
  %276 = vst [vmem:[#allocation3] sm:$0xff] %v184
  %277 = vst [vmem:[#allocation3 + $0x8] sm:$0xff] %v188
  %278 = vst [vmem:[#allocation3 + $0x10] sm:$0xff] %v194
  %279 = vst [vmem:[#allocation3 + $0x18] sm:$0xff] %v198
  %280 = vst [vmem:[#allocation3 + $0x20] sm:$0xff] %v204
  %281 = vst [vmem:[#allocation3 + $0x28] sm:$0xff] %v208
  %282 = vst [vmem:[#allocation3 + $0x30] sm:$0xff] %v214
  %283 = vst [vmem:[#allocation3 + $0x38] sm:$0xff] %v218
  %284 = vst [vmem:[#allocation3 + $0x40] sm:$0xff] %v224
  %285 = vst [vmem:[#allocation3 + $0x48] sm:$0xff] %v228
  %286 = vst [vmem:[#allocation3 + $0x50] sm:$0xff] %v234
  %287 = vst [vmem:[#allocation3 + $0x58] sm:$0xff] %v238
  %288 = vst [vmem:[#allocation3 + $0x60] sm:$0xff] %v244
  %289 = vst [vmem:[#allocation3 + $0x68] sm:$0xff] %v248
  %290 = vst [vmem:[#allocation3 + $0x70] sm:$0xff] %v254
  %291 = vst [vmem:[#allocation3 + $0x78] sm:$0xff] %v258
  %v292 = vld [vmem:[%s4] sm:$0xf]
  %v293 = vld [vmem:[%s4 + $0x4] sm:$0xf]
  %v294 = vld [vmem:[%s4 + $0x8] sm:$0xf]
  %v295 = vld [vmem:[%s4 + $0xc] sm:$0xf]
  %v296 = vld [vmem:[%s5] sm:$0xf]
  %v297 = vld [vmem:[%s5 + $0x4] sm:$0xf]
  %v298 = vld [vmem:[%s5 + $0x8] sm:$0xf]
  %v299 = vld [vmem:[%s5 + $0xc] sm:$0xf]
  %v300 = vlaneseq
  %v301 = vand.u32 %v300, 127
  %vm302 = vcmp.ge.s32.totalorder %v301, 64
  %vm303 = vcmp.lt.s32.totalorder %v301, 96
  %vm304 = vmand %vm302, %vm303
  %v305 = vsel %vm304, 1.0, 0.5
  %v306 = vld [vmem:[#allocation2] sm:$0xff]
  %v307 = vld [vmem:[#allocation2 + $0x8] sm:$0xff]
  %v312 = vunpack.c.l.b16 %v292
  %v313 = vunpack.c.l.b16 %v293
  %v314 = vunpack.c.l.b16 %v294
  %v315 = vunpack.c.l.b16 %v295
  %v316 = vpack.c.b16 %v313, %v312
  %v317 = vpack.c.b16 %v315, %v314
  %vm320 = vcmask 261120
  %v322 = vsel %vm320, 0, 0
  %324 = vmatprep.subr.bf16.mxu0 0
  %325 = vmatpush1.bf16.msra.mxu0 0
  %326 = vmatprep.subr.bf16.mxu0 0
  %327 = vmatpush1.bf16.msra.mxu0 0
  %328 = vmatprep.subr.bf16.mxu0 0
  %329 = vmatpush1.bf16.msra.mxu0 0
  %330 = vmatprep.subr.bf16.mxu0 0
  %331 = vmatpush1.bf16.msra.mxu0 0
  %332 = vmatprep.subr.bf16.mxu0 0
  %333 = vmatpush1.bf16.msra.mxu0 0
  %334 = vmatprep.subr.bf16.mxu0 0
  %335 = vmatpush1.bf16.msra.mxu0 0
  %336 = vmatprep.subr.bf16.mxu0 0
  %337 = vmatpush1.bf16.msra.mxu0 %v317
  %338 = vmatprep.subr.bf16.mxu0 0
  %339 = vmatpush1.bf16.msra.mxu0 %v316
  %340 = vmatprep.subr.bf16.mxu0 0
  %341 = vmatpush2.bf16.msra.mxu0 0
  %342 = vmatprep.subr.bf16.mxu0 0
  %343 = vmatpush2.bf16.msra.mxu0 0
  %344 = vmatprep.subr.bf16.mxu0 0
  %345 = vmatpush2.bf16.msra.mxu0 0
  %346 = vmatprep.subr.bf16.mxu0 0
  %347 = vmatpush2.bf16.msra.mxu0 0
  %348 = vmatprep.subr.bf16.mxu0 0
  %349 = vmatpush2.bf16.msra.mxu0 0
  %350 = vmatprep.subr.bf16.mxu0 0
  %351 = vmatpush2.bf16.msra.mxu0 0
  %352 = vmatprep.subr.bf16.mxu0 0
  %353 = vmatpush2.bf16.msra.mxu0 0
  %354 = vmatprep.subr.bf16.mxu0 0
  %355 = vmatpush2.bf16.msra.mxu0 0
  %356 = vmatprep.mubr.bf16.mxu0 0
  %357 = vmatmul.mubr.bf16.gmra.mxu0 %v322
  %v358 = vpop.f32.mrf.mxu0
  %v359 = vadd.f32 0.0, %v358
  %v360 = vpop.f32.mrf.mxu0
  %v361 = vpop.f32.mrf.mxu0
  %v362 = vadd.f32 0.0, %v361
  %v363 = vpop.f32.mrf.mxu0
  %364 = vdwg.mxu0
  %v365 = vadd.f32 %v306, %v359
  %v366 = vadd.f32 %v307, %v362
  %v367 = vmul.f32 %v365, %v305
  %v368 = vmul.f32 %v366, %v305
  %v369 = vtanh.pop %v367
  %v370 = vtanh.pop %v368
  %v371 = vmul.f32 %v369, 0.5
  %v372 = vmul.f32 %v370, 0.5
  %v373 = vadd.f32 %v371, 0.5
  %v374 = vadd.f32 %v372, 0.5
  %v375 = vsel %vm304, %v369, %v373
  %v376 = vsel %vm304, %v370, %v374
  %v377 = vmul.f32 %v375, 0.0
  %v378 = vmul.f32 %v376, 0.0
  %381 = vrot.lane.b32.xlu0 %v375, 64
  %v382 = vpop.permute.xlu0 %381
  %383 = vrot.lane.b32.xlu0 %v376, 64
  %v384 = vpop.permute.xlu0 %383
  %v387 = vmul.f32 %v375, %v382
  %v388 = vmul.f32 %v376, %v384
  %391 = vrot.lane.b32.xlu0 %v387, 32
  %v392 = vpop.permute.xlu0 %391
  %393 = vrot.lane.b32.xlu0 %v388, 32
  %v394 = vpop.permute.xlu0 %393
  %v397 = vadd.f32 %v377, %v392
  %v398 = vadd.f32 %v378, %v394
  %v399 = vtanh.pop %v397
  %v400 = vtanh.pop %v398
  %403 = vrot.lane.b32.xlu0 %v399, 64
  %v404 = vpop.permute.xlu0 %403
  %405 = vrot.lane.b32.xlu0 %v400, 64
  %v406 = vpop.permute.xlu0 %405
  %v409 = vmul.f32 %v375, %v404
  %v410 = vmul.f32 %v376, %v406
  %v411 = vpack.c.bf16 %v410, %v409
  %s412 = scalar_lea.vmem [#allocation3], 112
  %v413 = vld [vmem:[%s412] sm:$0xff]
  %v414 = vld [vmem:[%s412 + $0x8] sm:$0xff]
  %v419 = vunpack.c.l.b16 %v296
  %v420 = vunpack.c.l.b16 %v297
  %v421 = vunpack.c.l.b16 %v298
  %v422 = vunpack.c.l.b16 %v299
  %v423 = vpack.c.b16 %v420, %v419
  %v424 = vpack.c.b16 %v422, %v421
  %427 = vmatprep.subr.bf16.mxu0 0
  %428 = vmatpush1.bf16.msra.mxu0 0
  %429 = vmatprep.subr.bf16.mxu0 0
  %430 = vmatpush1.bf16.msra.mxu0 0
  %431 = vmatprep.subr.bf16.mxu0 0
  %432 = vmatpush1.bf16.msra.mxu0 0
  %433 = vmatprep.subr.bf16.mxu0 0
  %434 = vmatpush1.bf16.msra.mxu0 0
  %435 = vmatprep.subr.bf16.mxu0 0
  %436 = vmatpush1.bf16.msra.mxu0 0
  %437 = vmatprep.subr.bf16.mxu0 0
  %438 = vmatpush1.bf16.msra.mxu0 0
  %439 = vmatprep.subr.bf16.mxu0 0
  %440 = vmatpush1.bf16.msra.mxu0 %v424
  %441 = vmatprep.subr.bf16.mxu0 0
  %442 = vmatpush1.bf16.msra.mxu0 %v423
  %443 = vmatprep.subr.bf16.mxu0 0
  %444 = vmatpush2.bf16.msra.mxu0 0
  %445 = vmatprep.subr.bf16.mxu0 0
  %446 = vmatpush2.bf16.msra.mxu0 0
  %447 = vmatprep.subr.bf16.mxu0 0
  %448 = vmatpush2.bf16.msra.mxu0 0
  %449 = vmatprep.subr.bf16.mxu0 0
  %450 = vmatpush2.bf16.msra.mxu0 0
  %451 = vmatprep.subr.bf16.mxu0 0
  %452 = vmatpush2.bf16.msra.mxu0 0
  %453 = vmatprep.subr.bf16.mxu0 0
  %454 = vmatpush2.bf16.msra.mxu0 0
  %455 = vmatprep.subr.bf16.mxu0 0
  %456 = vmatpush2.bf16.msra.mxu0 0
  %457 = vmatprep.subr.bf16.mxu0 0
  %458 = vmatpush2.bf16.msra.mxu0 0
  %459 = vmatprep.mubr.bf16.mxu0 0
  %460 = vmatmul.mubr.bf16.gmra.mxu0 %v322
  %v461 = vpop.f32.mrf.mxu0
  %v462 = vadd.f32 0.0, %v461
  %v463 = vpop.f32.mrf.mxu0
  %v464 = vpop.f32.mrf.mxu0
  %v465 = vadd.f32 0.0, %v464
  %v466 = vpop.f32.mrf.mxu0
  %467 = vdwg.mxu0
  %v468 = vadd.f32 %v413, %v462
  %v469 = vadd.f32 %v414, %v465
  %v470 = vmul.f32 %v468, %v305
  %v471 = vmul.f32 %v469, %v305
  %v472 = vtanh.pop %v470
  %v473 = vtanh.pop %v471
  %v474 = vmul.f32 %v472, 0.5
  %v475 = vmul.f32 %v473, 0.5
  %v476 = vadd.f32 %v474, 0.5
  %v477 = vadd.f32 %v475, 0.5
  %v478 = vsel %vm304, %v472, %v476
  %v479 = vsel %vm304, %v473, %v477
  %v480 = vmul.f32 %v478, 0.0
  %v481 = vmul.f32 %v479, 0.0
  %484 = vrot.lane.b32.xlu0 %v478, 64
  %v485 = vpop.permute.xlu0 %484
  %486 = vrot.lane.b32.xlu0 %v479, 64
  %v487 = vpop.permute.xlu0 %486
  %v490 = vmul.f32 %v478, %v485
  %v491 = vmul.f32 %v479, %v487
  %494 = vrot.lane.b32.xlu0 %v490, 32
  %v495 = vpop.permute.xlu0 %494
  %496 = vrot.lane.b32.xlu0 %v491, 32
  %v497 = vpop.permute.xlu0 %496
  %v500 = vadd.f32 %v480, %v495
  %v501 = vadd.f32 %v481, %v497
  %v502 = vtanh.pop %v500
  %v503 = vtanh.pop %v501
  %506 = vrot.lane.b32.xlu0 %v502, 64
  %v507 = vpop.permute.xlu0 %506
  %508 = vrot.lane.b32.xlu0 %v503, 64
  %v509 = vpop.permute.xlu0 %508
  %v512 = vmul.f32 %v478, %v507
  %v513 = vmul.f32 %v479, %v509
  %v514 = vpack.c.bf16 %v513, %v512
  %v516 = vunpack.c.l.b16 %v411
  %v517 = vunpack.c.h.b16 %v411
  %v518 = vpack.c.b16 %v516, %v516
  %v519 = vpack.c.b16 %v517, %v517
  %520 = vrot.lane.b32.xlu0 %v518, 32
  %v521 = vpop.permute.xlu0 %520
  %522 = vrot.lane.b32.xlu0 %v519, 32
  %v523 = vpop.permute.xlu0 %522
  %vm526 = vcmask 257024
  %527 = vst.msk [vmem:[#allocation4] sm:$0xf] %vm526, %v521
  %528 = vst.msk [vmem:[#allocation4 + $0x4] sm:$0xf] %vm526, %v523
  %v530 = vunpack.c.l.b16 %v514
  %v531 = vunpack.c.h.b16 %v514
  %v532 = vpack.c.b16 %v530, %v530
  %v533 = vpack.c.b16 %v531, %v531
  %534 = vrot.lane.b32.xlu0 %v532, 32
  %v535 = vpop.permute.xlu0 %534
  %536 = vrot.lane.b32.xlu0 %v533, 32
  %v537 = vpop.permute.xlu0 %536
  %s540 = scalar_lea.vmem [#allocation5], 56
  %541 = vst.msk [vmem:[%s540] sm:$0xf] %vm526, %v535
  %542 = vst.msk [vmem:[%s540 + $0x4] sm:$0xf] %vm526, %v537
  %s543 = scalar_lea.vmem [#allocation2], 16
  %v544 = vld [vmem:[%s543] sm:$0xff]
  %v545 = vld [vmem:[%s543 + $0x8] sm:$0xff]
  %546 = vrot.lane.b32.xlu0 %v411, 32
  %v547 = vpop.permute.xlu0 %546
  %v549 = vsel %vm320, %v547, 0
  %551 = vmatprep.subr.bf16.mxu0 0
  %552 = vmatpush1.bf16.msra.mxu0 0
  %553 = vmatprep.subr.bf16.mxu0 0
  %554 = vmatpush1.bf16.msra.mxu0 0
  %555 = vmatprep.subr.bf16.mxu0 0
  %556 = vmatpush1.bf16.msra.mxu0 0
  %557 = vmatprep.subr.bf16.mxu0 0
  %558 = vmatpush1.bf16.msra.mxu0 0
  %559 = vmatprep.subr.bf16.mxu0 0
  %560 = vmatpush1.bf16.msra.mxu0 0
  %561 = vmatprep.subr.bf16.mxu0 0
  %562 = vmatpush1.bf16.msra.mxu0 0
  %563 = vmatprep.subr.bf16.mxu0 0
  %564 = vmatpush1.bf16.msra.mxu0 %v317
  %565 = vmatprep.subr.bf16.mxu0 0
  %566 = vmatpush1.bf16.msra.mxu0 %v316
  %567 = vmatprep.subr.bf16.mxu0 0
  %568 = vmatpush2.bf16.msra.mxu0 0
  %569 = vmatprep.subr.bf16.mxu0 0
  %570 = vmatpush2.bf16.msra.mxu0 0
  %571 = vmatprep.subr.bf16.mxu0 0
  %572 = vmatpush2.bf16.msra.mxu0 0
  %573 = vmatprep.subr.bf16.mxu0 0
  %574 = vmatpush2.bf16.msra.mxu0 0
  %575 = vmatprep.subr.bf16.mxu0 0
  %576 = vmatpush2.bf16.msra.mxu0 0
  %577 = vmatprep.subr.bf16.mxu0 0
  %578 = vmatpush2.bf16.msra.mxu0 0
  %579 = vmatprep.subr.bf16.mxu0 0
  %580 = vmatpush2.bf16.msra.mxu0 0
  %581 = vmatprep.subr.bf16.mxu0 0
  %582 = vmatpush2.bf16.msra.mxu0 0
  %583 = vmatprep.mubr.bf16.mxu0 0
  %584 = vmatmul.mubr.bf16.gmra.mxu0 %v549
  %v585 = vpop.f32.mrf.mxu0
  %v586 = vadd.f32 0.0, %v585
  %v587 = vpop.f32.mrf.mxu0
  %v588 = vpop.f32.mrf.mxu0
  %v589 = vadd.f32 0.0, %v588
  %v590 = vpop.f32.mrf.mxu0
  %591 = vdwg.mxu0
  %v592 = vadd.f32 %v544, %v586
  %v593 = vadd.f32 %v545, %v589
  %v594 = vmul.f32 %v592, %v305
  %v595 = vmul.f32 %v593, %v305
  %v596 = vtanh.pop %v594
  %v597 = vtanh.pop %v595
  %v598 = vmul.f32 %v596, 0.5
  %v599 = vmul.f32 %v597, 0.5
  %v600 = vadd.f32 %v598, 0.5
  %v601 = vadd.f32 %v599, 0.5
  %v602 = vsel %vm304, %v596, %v600
  %v603 = vsel %vm304, %v597, %v601
  %v604 = vmul.f32 %v602, %v397
  %v605 = vmul.f32 %v603, %v398
  %608 = vrot.lane.b32.xlu0 %v602, 64
  %v609 = vpop.permute.xlu0 %608
  %610 = vrot.lane.b32.xlu0 %v603, 64
  %v611 = vpop.permute.xlu0 %610
  %v614 = vmul.f32 %v602, %v609
  %v615 = vmul.f32 %v603, %v611
  %618 = vrot.lane.b32.xlu0 %v614, 32
  %v619 = vpop.permute.xlu0 %618
  %620 = vrot.lane.b32.xlu0 %v615, 32
  %v621 = vpop.permute.xlu0 %620
  %v624 = vadd.f32 %v604, %v619
  %v625 = vadd.f32 %v605, %v621
  %v626 = vtanh.pop %v624
  %v627 = vtanh.pop %v625
  %630 = vrot.lane.b32.xlu0 %v626, 64
  %v631 = vpop.permute.xlu0 %630
  %632 = vrot.lane.b32.xlu0 %v627, 64
  %v633 = vpop.permute.xlu0 %632
  %v636 = vmul.f32 %v602, %v631
  %v637 = vmul.f32 %v603, %v633
  %v638 = vpack.c.bf16 %v637, %v636
  %s639 = scalar_lea.vmem [#allocation3], 96
  %v640 = vld [vmem:[%s639] sm:$0xff]
  %v641 = vld [vmem:[%s639 + $0x8] sm:$0xff]
  %642 = vrot.lane.b32.xlu0 %v514, 32
  %v643 = vpop.permute.xlu0 %642
  %v645 = vsel %vm320, %v643, 0
  %647 = vmatprep.subr.bf16.mxu0 0
  %648 = vmatpush1.bf16.msra.mxu0 0
  %649 = vmatprep.subr.bf16.mxu0 0
  %650 = vmatpush1.bf16.msra.mxu0 0
  %651 = vmatprep.subr.bf16.mxu0 0
  %652 = vmatpush1.bf16.msra.mxu0 0
  %653 = vmatprep.subr.bf16.mxu0 0
  %654 = vmatpush1.bf16.msra.mxu0 0
  %655 = vmatprep.subr.bf16.mxu0 0
  %656 = vmatpush1.bf16.msra.mxu0 0
  %657 = vmatprep.subr.bf16.mxu0 0
  %658 = vmatpush1.bf16.msra.mxu0 0
  %659 = vmatprep.subr.bf16.mxu0 0
  %660 = vmatpush1.bf16.msra.mxu0 %v424
  %661 = vmatprep.subr.bf16.mxu0 0
  %662 = vmatpush1.bf16.msra.mxu0 %v423
  %663 = vmatprep.subr.bf16.mxu0 0
  %664 = vmatpush2.bf16.msra.mxu0 0
  %665 = vmatprep.subr.bf16.mxu0 0
  %666 = vmatpush2.bf16.msra.mxu0 0
  %667 = vmatprep.subr.bf16.mxu0 0
  %668 = vmatpush2.bf16.msra.mxu0 0
  %669 = vmatprep.subr.bf16.mxu0 0
  %670 = vmatpush2.bf16.msra.mxu0 0
  %671 = vmatprep.subr.bf16.mxu0 0
  %672 = vmatpush2.bf16.msra.mxu0 0
  %673 = vmatprep.subr.bf16.mxu0 0
  %674 = vmatpush2.bf16.msra.mxu0 0
  %675 = vmatprep.subr.bf16.mxu0 0
  %676 = vmatpush2.bf16.msra.mxu0 0
  %677 = vmatprep.subr.bf16.mxu0 0
  %678 = vmatpush2.bf16.msra.mxu0 0
  %679 = vmatprep.mubr.bf16.mxu0 0
  %680 = vmatmul.mubr.bf16.gmra.mxu0 %v645
  %v681 = vpop.f32.mrf.mxu0
  %v682 = vadd.f32 0.0, %v681
  %v683 = vpop.f32.mrf.mxu0
  %v684 = vpop.f32.mrf.mxu0
  %v685 = vadd.f32 0.0, %v684
  %v686 = vpop.f32.mrf.mxu0
  %687 = vdwg.mxu0
  %v688 = vadd.f32 %v640, %v682
  %v689 = vadd.f32 %v641, %v685
  %v690 = vmul.f32 %v688, %v305
  %v691 = vmul.f32 %v689, %v305
  %v692 = vtanh.pop %v690
  %v693 = vtanh.pop %v691
  %v694 = vmul.f32 %v692, 0.5
  %v695 = vmul.f32 %v693, 0.5
  %v696 = vadd.f32 %v694, 0.5
  %v697 = vadd.f32 %v695, 0.5
  %v698 = vsel %vm304, %v692, %v696
  %v699 = vsel %vm304, %v693, %v697
  %v700 = vmul.f32 %v698, %v500
  %v701 = vmul.f32 %v699, %v501
  %704 = vrot.lane.b32.xlu0 %v698, 64
  %v705 = vpop.permute.xlu0 %704
  %706 = vrot.lane.b32.xlu0 %v699, 64
  %v707 = vpop.permute.xlu0 %706
  %v710 = vmul.f32 %v698, %v705
  %v711 = vmul.f32 %v699, %v707
  %714 = vrot.lane.b32.xlu0 %v710, 32
  %v715 = vpop.permute.xlu0 %714
  %716 = vrot.lane.b32.xlu0 %v711, 32
  %v717 = vpop.permute.xlu0 %716
  %v720 = vadd.f32 %v700, %v715
  %v721 = vadd.f32 %v701, %v717
  %v722 = vtanh.pop %v720
  %v723 = vtanh.pop %v721
  %726 = vrot.lane.b32.xlu0 %v722, 64
  %v727 = vpop.permute.xlu0 %726
  %728 = vrot.lane.b32.xlu0 %v723, 64
  %v729 = vpop.permute.xlu0 %728
  %v732 = vmul.f32 %v698, %v727
  %v733 = vmul.f32 %v699, %v729
  %v734 = vpack.c.bf16 %v733, %v732
  %v736 = vunpack.c.l.b16 %v638
  %v737 = vunpack.c.h.b16 %v638
  %v738 = vpack.c.b16 %v736, %v736
  %v739 = vpack.c.b16 %v737, %v737
  %740 = vrot.lane.b32.xlu0 %v738, 32
  %v741 = vpop.permute.xlu0 %740
  %742 = vrot.lane.b32.xlu0 %v739, 32
  %v743 = vpop.permute.xlu0 %742
  %s746 = scalar_lea.vmem [#allocation4], 8
  %747 = vst.msk [vmem:[%s746] sm:$0xf] %vm526, %v741
  %748 = vst.msk [vmem:[%s746 + $0x4] sm:$0xf] %vm526, %v743
  %v750 = vunpack.c.l.b16 %v734
  %v751 = vunpack.c.h.b16 %v734
  %v752 = vpack.c.b16 %v750, %v750
  %v753 = vpack.c.b16 %v751, %v751
  %754 = vrot.lane.b32.xlu0 %v752, 32
  %v755 = vpop.permute.xlu0 %754
  %756 = vrot.lane.b32.xlu0 %v753, 32
  %v757 = vpop.permute.xlu0 %756
  %s760 = scalar_lea.vmem [#allocation5], 48
  %761 = vst.msk [vmem:[%s760] sm:$0xf] %vm526, %v755
  %762 = vst.msk [vmem:[%s760 + $0x4] sm:$0xf] %vm526, %v757
  %s763 = scalar_lea.vmem [#allocation2], 32
  %v764 = vld [vmem:[%s763] sm:$0xff]
  %v765 = vld [vmem:[%s763 + $0x8] sm:$0xff]
  %766 = vrot.lane.b32.xlu0 %v638, 32
  %v767 = vpop.permute.xlu0 %766
  %v769 = vsel %vm320, %v767, 0
  %771 = vmatprep.subr.bf16.mxu0 0
  %772 = vmatpush1.bf16.msra.mxu0 0
  %773 = vmatprep.subr.bf16.mxu0 0
  %774 = vmatpush1.bf16.msra.mxu0 0
  %775 = vmatprep.subr.bf16.mxu0 0
  %776 = vmatpush1.bf16.msra.mxu0 0
  %777 = vmatprep.subr.bf16.mxu0 0
  %778 = vmatpush1.bf16.msra.mxu0 0
  %779 = vmatprep.subr.bf16.mxu0 0
  %780 = vmatpush1.bf16.msra.mxu0 0
  %781 = vmatprep.subr.bf16.mxu0 0
  %782 = vmatpush1.bf16.msra.mxu0 0
  %783 = vmatprep.subr.bf16.mxu0 0
  %784 = vmatpush1.bf16.msra.mxu0 %v317
  %785 = vmatprep.subr.bf16.mxu0 0
  %786 = vmatpush1.bf16.msra.mxu0 %v316
  %787 = vmatprep.subr.bf16.mxu0 0
  %788 = vmatpush2.bf16.msra.mxu0 0
  %789 = vmatprep.subr.bf16.mxu0 0
  %790 = vmatpush2.bf16.msra.mxu0 0
  %791 = vmatprep.subr.bf16.mxu0 0
  %792 = vmatpush2.bf16.msra.mxu0 0
  %793 = vmatprep.subr.bf16.mxu0 0
  %794 = vmatpush2.bf16.msra.mxu0 0
  %795 = vmatprep.subr.bf16.mxu0 0
  %796 = vmatpush2.bf16.msra.mxu0 0
  %797 = vmatprep.subr.bf16.mxu0 0
  %798 = vmatpush2.bf16.msra.mxu0 0
  %799 = vmatprep.subr.bf16.mxu0 0
  %800 = vmatpush2.bf16.msra.mxu0 0
  %801 = vmatprep.subr.bf16.mxu0 0
  %802 = vmatpush2.bf16.msra.mxu0 0
  %803 = vmatprep.mubr.bf16.mxu0 0
  %804 = vmatmul.mubr.bf16.gmra.mxu0 %v769
  %v805 = vpop.f32.mrf.mxu0
  %v806 = vadd.f32 0.0, %v805
  %v807 = vpop.f32.mrf.mxu0
  %v808 = vpop.f32.mrf.mxu0
  %v809 = vadd.f32 0.0, %v808
  %v810 = vpop.f32.mrf.mxu0
  %811 = vdwg.mxu0
  %v812 = vadd.f32 %v764, %v806
  %v813 = vadd.f32 %v765, %v809
  %v814 = vmul.f32 %v812, %v305
  %v815 = vmul.f32 %v813, %v305
  %v816 = vtanh.pop %v814
  %v817 = vtanh.pop %v815
  %v818 = vmul.f32 %v816, 0.5
  %v819 = vmul.f32 %v817, 0.5
  %v820 = vadd.f32 %v818, 0.5
  %v821 = vadd.f32 %v819, 0.5
  %v822 = vsel %vm304, %v816, %v820
  %v823 = vsel %vm304, %v817, %v821
  %v824 = vmul.f32 %v822, %v624
  %v825 = vmul.f32 %v823, %v625
  %828 = vrot.lane.b32.xlu0 %v822, 64
  %v829 = vpop.permute.xlu0 %828
  %830 = vrot.lane.b32.xlu0 %v823, 64
  %v831 = vpop.permute.xlu0 %830
  %v834 = vmul.f32 %v822, %v829
  %v835 = vmul.f32 %v823, %v831
  %838 = vrot.lane.b32.xlu0 %v834, 32
  %v839 = vpop.permute.xlu0 %838
  %840 = vrot.lane.b32.xlu0 %v835, 32
  %v841 = vpop.permute.xlu0 %840
  %v844 = vadd.f32 %v824, %v839
  %v845 = vadd.f32 %v825, %v841
  %v846 = vtanh.pop %v844
  %v847 = vtanh.pop %v845
  %850 = vrot.lane.b32.xlu0 %v846, 64
  %v851 = vpop.permute.xlu0 %850
  %852 = vrot.lane.b32.xlu0 %v847, 64
  %v853 = vpop.permute.xlu0 %852
  %v856 = vmul.f32 %v822, %v851
  %v857 = vmul.f32 %v823, %v853
  %v858 = vpack.c.bf16 %v857, %v856
  %s859 = scalar_lea.vmem [#allocation3], 80
  %v860 = vld [vmem:[%s859] sm:$0xff]
  %v861 = vld [vmem:[%s859 + $0x8] sm:$0xff]
  %862 = vrot.lane.b32.xlu0 %v734, 32
  %v863 = vpop.permute.xlu0 %862
  %v865 = vsel %vm320, %v863, 0
  %867 = vmatprep.subr.bf16.mxu0 0
  %868 = vmatpush1.bf16.msra.mxu0 0
  %869 = vmatprep.subr.bf16.mxu0 0
  %870 = vmatpush1.bf16.msra.mxu0 0
  %871 = vmatprep.subr.bf16.mxu0 0
  %872 = vmatpush1.bf16.msra.mxu0 0
  %873 = vmatprep.subr.bf16.mxu0 0
  %874 = vmatpush1.bf16.msra.mxu0 0
  %875 = vmatprep.subr.bf16.mxu0 0
  %876 = vmatpush1.bf16.msra.mxu0 0
  %877 = vmatprep.subr.bf16.mxu0 0
  %878 = vmatpush1.bf16.msra.mxu0 0
  %879 = vmatprep.subr.bf16.mxu0 0
  %880 = vmatpush1.bf16.msra.mxu0 %v424
  %881 = vmatprep.subr.bf16.mxu0 0
  %882 = vmatpush1.bf16.msra.mxu0 %v423
  %883 = vmatprep.subr.bf16.mxu0 0
  %884 = vmatpush2.bf16.msra.mxu0 0
  %885 = vmatprep.subr.bf16.mxu0 0
  %886 = vmatpush2.bf16.msra.mxu0 0
  %887 = vmatprep.subr.bf16.mxu0 0
  %888 = vmatpush2.bf16.msra.mxu0 0
  %889 = vmatprep.subr.bf16.mxu0 0
  %890 = vmatpush2.bf16.msra.mxu0 0
  %891 = vmatprep.subr.bf16.mxu0 0
  %892 = vmatpush2.bf16.msra.mxu0 0
  %893 = vmatprep.subr.bf16.mxu0 0
  %894 = vmatpush2.bf16.msra.mxu0 0
  %895 = vmatprep.subr.bf16.mxu0 0
  %896 = vmatpush2.bf16.msra.mxu0 0
  %897 = vmatprep.subr.bf16.mxu0 0
  %898 = vmatpush2.bf16.msra.mxu0 0
  %899 = vmatprep.mubr.bf16.mxu0 0
  %900 = vmatmul.mubr.bf16.gmra.mxu0 %v865
  %v901 = vpop.f32.mrf.mxu0
  %v902 = vadd.f32 0.0, %v901
  %v903 = vpop.f32.mrf.mxu0
  %v904 = vpop.f32.mrf.mxu0
  %v905 = vadd.f32 0.0, %v904
  %v906 = vpop.f32.mrf.mxu0
  %907 = vdwg.mxu0
  %v908 = vadd.f32 %v860, %v902
  %v909 = vadd.f32 %v861, %v905
  %v910 = vmul.f32 %v908, %v305
  %v911 = vmul.f32 %v909, %v305
  %v912 = vtanh.pop %v910
  %v913 = vtanh.pop %v911
  %v914 = vmul.f32 %v912, 0.5
  %v915 = vmul.f32 %v913, 0.5
  %v916 = vadd.f32 %v914, 0.5
  %v917 = vadd.f32 %v915, 0.5
  %v918 = vsel %vm304, %v912, %v916
  %v919 = vsel %vm304, %v913, %v917
  %v920 = vmul.f32 %v918, %v720
  %v921 = vmul.f32 %v919, %v721
  %924 = vrot.lane.b32.xlu0 %v918, 64
  %v925 = vpop.permute.xlu0 %924
  %926 = vrot.lane.b32.xlu0 %v919, 64
  %v927 = vpop.permute.xlu0 %926
  %v930 = vmul.f32 %v918, %v925
  %v931 = vmul.f32 %v919, %v927
  %934 = vrot.lane.b32.xlu0 %v930, 32
  %v935 = vpop.permute.xlu0 %934
  %936 = vrot.lane.b32.xlu0 %v931, 32
  %v937 = vpop.permute.xlu0 %936
  %v940 = vadd.f32 %v920, %v935
  %v941 = vadd.f32 %v921, %v937
  %v942 = vtanh.pop %v940
  %v943 = vtanh.pop %v941
  %946 = vrot.lane.b32.xlu0 %v942, 64
  %v947 = vpop.permute.xlu0 %946
  %948 = vrot.lane.b32.xlu0 %v943, 64
  %v949 = vpop.permute.xlu0 %948
  %v952 = vmul.f32 %v918, %v947
  %v953 = vmul.f32 %v919, %v949
  %v954 = vpack.c.bf16 %v953, %v952
  %v956 = vunpack.c.l.b16 %v858
  %v957 = vunpack.c.h.b16 %v858
  %v958 = vpack.c.b16 %v956, %v956
  %v959 = vpack.c.b16 %v957, %v957
  %960 = vrot.lane.b32.xlu0 %v958, 32
  %v961 = vpop.permute.xlu0 %960
  %962 = vrot.lane.b32.xlu0 %v959, 32
  %v963 = vpop.permute.xlu0 %962
  %s966 = scalar_lea.vmem [#allocation4], 16
  %967 = vst.msk [vmem:[%s966] sm:$0xf] %vm526, %v961
  %968 = vst.msk [vmem:[%s966 + $0x4] sm:$0xf] %vm526, %v963
  %v970 = vunpack.c.l.b16 %v954
  %v971 = vunpack.c.h.b16 %v954
  %v972 = vpack.c.b16 %v970, %v970
  %v973 = vpack.c.b16 %v971, %v971
  %974 = vrot.lane.b32.xlu0 %v972, 32
  %v975 = vpop.permute.xlu0 %974
  %976 = vrot.lane.b32.xlu0 %v973, 32
  %v977 = vpop.permute.xlu0 %976
  %s980 = scalar_lea.vmem [#allocation5], 40
  %981 = vst.msk [vmem:[%s980] sm:$0xf] %vm526, %v975
  %982 = vst.msk [vmem:[%s980 + $0x4] sm:$0xf] %vm526, %v977
  %s983 = scalar_lea.vmem [#allocation2], 48
  %v984 = vld [vmem:[%s983] sm:$0xff]
  %v985 = vld [vmem:[%s983 + $0x8] sm:$0xff]
  %986 = vrot.lane.b32.xlu0 %v858, 32
  %v987 = vpop.permute.xlu0 %986
  %v989 = vsel %vm320, %v987, 0
  %991 = vmatprep.subr.bf16.mxu0 0
  %992 = vmatpush1.bf16.msra.mxu0 0
  %993 = vmatprep.subr.bf16.mxu0 0
  %994 = vmatpush1.bf16.msra.mxu0 0
  %995 = vmatprep.subr.bf16.mxu0 0
  %996 = vmatpush1.bf16.msra.mxu0 0
  %997 = vmatprep.subr.bf16.mxu0 0
  %998 = vmatpush1.bf16.msra.mxu0 0
  %999 = vmatprep.subr.bf16.mxu0 0
  %1000 = vmatpush1.bf16.msra.mxu0 0
  %1001 = vmatprep.subr.bf16.mxu0 0
  %1002 = vmatpush1.bf16.msra.mxu0 0
  %1003 = vmatprep.subr.bf16.mxu0 0
  %1004 = vmatpush1.bf16.msra.mxu0 %v317
  %1005 = vmatprep.subr.bf16.mxu0 0
  %1006 = vmatpush1.bf16.msra.mxu0 %v316
  %1007 = vmatprep.subr.bf16.mxu0 0
  %1008 = vmatpush2.bf16.msra.mxu0 0
  %1009 = vmatprep.subr.bf16.mxu0 0
  %1010 = vmatpush2.bf16.msra.mxu0 0
  %1011 = vmatprep.subr.bf16.mxu0 0
  %1012 = vmatpush2.bf16.msra.mxu0 0
  %1013 = vmatprep.subr.bf16.mxu0 0
  %1014 = vmatpush2.bf16.msra.mxu0 0
  %1015 = vmatprep.subr.bf16.mxu0 0
  %1016 = vmatpush2.bf16.msra.mxu0 0
  %1017 = vmatprep.subr.bf16.mxu0 0
  %1018 = vmatpush2.bf16.msra.mxu0 0
  %1019 = vmatprep.subr.bf16.mxu0 0
  %1020 = vmatpush2.bf16.msra.mxu0 0
  %1021 = vmatprep.subr.bf16.mxu0 0
  %1022 = vmatpush2.bf16.msra.mxu0 0
  %1023 = vmatprep.mubr.bf16.mxu0 0
  %1024 = vmatmul.mubr.bf16.gmra.mxu0 %v989
  %v1025 = vpop.f32.mrf.mxu0
  %v1026 = vadd.f32 0.0, %v1025
  %v1027 = vpop.f32.mrf.mxu0
  %v1028 = vpop.f32.mrf.mxu0
  %v1029 = vadd.f32 0.0, %v1028
  %v1030 = vpop.f32.mrf.mxu0
  %1031 = vdwg.mxu0
  %v1032 = vadd.f32 %v984, %v1026
  %v1033 = vadd.f32 %v985, %v1029
  %v1034 = vmul.f32 %v1032, %v305
  %v1035 = vmul.f32 %v1033, %v305
  %v1036 = vtanh.pop %v1034
  %v1037 = vtanh.pop %v1035
  %v1038 = vmul.f32 %v1036, 0.5
  %v1039 = vmul.f32 %v1037, 0.5
  %v1040 = vadd.f32 %v1038, 0.5
  %v1041 = vadd.f32 %v1039, 0.5
  %v1042 = vsel %vm304, %v1036, %v1040
  %v1043 = vsel %vm304, %v1037, %v1041
  %v1044 = vmul.f32 %v1042, %v844
  %v1045 = vmul.f32 %v1043, %v845
  %1048 = vrot.lane.b32.xlu0 %v1042, 64
  %v1049 = vpop.permute.xlu0 %1048
  %1050 = vrot.lane.b32.xlu0 %v1043, 64
  %v1051 = vpop.permute.xlu0 %1050
  %v1054 = vmul.f32 %v1042, %v1049
  %v1055 = vmul.f32 %v1043, %v1051
  %1058 = vrot.lane.b32.xlu0 %v1054, 32
  %v1059 = vpop.permute.xlu0 %1058
  %1060 = vrot.lane.b32.xlu0 %v1055, 32
  %v1061 = vpop.permute.xlu0 %1060
  %v1064 = vadd.f32 %v1044, %v1059
  %v1065 = vadd.f32 %v1045, %v1061
  %v1066 = vtanh.pop %v1064
  %v1067 = vtanh.pop %v1065
  %1070 = vrot.lane.b32.xlu0 %v1066, 64
  %v1071 = vpop.permute.xlu0 %1070
  %1072 = vrot.lane.b32.xlu0 %v1067, 64
  %v1073 = vpop.permute.xlu0 %1072
  %v1076 = vmul.f32 %v1042, %v1071
  %v1077 = vmul.f32 %v1043, %v1073
  %v1078 = vpack.c.bf16 %v1077, %v1076
  %s1079 = scalar_lea.vmem [#allocation3], 64
  %v1080 = vld [vmem:[%s1079] sm:$0xff]
  %v1081 = vld [vmem:[%s1079 + $0x8] sm:$0xff]
  %1082 = vrot.lane.b32.xlu0 %v954, 32
  %v1083 = vpop.permute.xlu0 %1082
  %v1085 = vsel %vm320, %v1083, 0
  %1087 = vmatprep.subr.bf16.mxu0 0
  %1088 = vmatpush1.bf16.msra.mxu0 0
  %1089 = vmatprep.subr.bf16.mxu0 0
  %1090 = vmatpush1.bf16.msra.mxu0 0
  %1091 = vmatprep.subr.bf16.mxu0 0
  %1092 = vmatpush1.bf16.msra.mxu0 0
  %1093 = vmatprep.subr.bf16.mxu0 0
  %1094 = vmatpush1.bf16.msra.mxu0 0
  %1095 = vmatprep.subr.bf16.mxu0 0
  %1096 = vmatpush1.bf16.msra.mxu0 0
  %1097 = vmatprep.subr.bf16.mxu0 0
  %1098 = vmatpush1.bf16.msra.mxu0 0
  %1099 = vmatprep.subr.bf16.mxu0 0
  %1100 = vmatpush1.bf16.msra.mxu0 %v424
  %1101 = vmatprep.subr.bf16.mxu0 0
  %1102 = vmatpush1.bf16.msra.mxu0 %v423
  %1103 = vmatprep.subr.bf16.mxu0 0
  %1104 = vmatpush2.bf16.msra.mxu0 0
  %1105 = vmatprep.subr.bf16.mxu0 0
  %1106 = vmatpush2.bf16.msra.mxu0 0
  %1107 = vmatprep.subr.bf16.mxu0 0
  %1108 = vmatpush2.bf16.msra.mxu0 0
  %1109 = vmatprep.subr.bf16.mxu0 0
  %1110 = vmatpush2.bf16.msra.mxu0 0
  %1111 = vmatprep.subr.bf16.mxu0 0
  %1112 = vmatpush2.bf16.msra.mxu0 0
  %1113 = vmatprep.subr.bf16.mxu0 0
  %1114 = vmatpush2.bf16.msra.mxu0 0
  %1115 = vmatprep.subr.bf16.mxu0 0
  %1116 = vmatpush2.bf16.msra.mxu0 0
  %1117 = vmatprep.subr.bf16.mxu0 0
  %1118 = vmatpush2.bf16.msra.mxu0 0
  %1119 = vmatprep.mubr.bf16.mxu0 0
  %1120 = vmatmul.mubr.bf16.gmra.mxu0 %v1085
  %v1121 = vpop.f32.mrf.mxu0
  %v1122 = vadd.f32 0.0, %v1121
  %v1123 = vpop.f32.mrf.mxu0
  %v1124 = vpop.f32.mrf.mxu0
  %v1125 = vadd.f32 0.0, %v1124
  %v1126 = vpop.f32.mrf.mxu0
  %1127 = vdwg.mxu0
  %v1128 = vadd.f32 %v1080, %v1122
  %v1129 = vadd.f32 %v1081, %v1125
  %v1130 = vmul.f32 %v1128, %v305
  %v1131 = vmul.f32 %v1129, %v305
  %v1132 = vtanh.pop %v1130
  %v1133 = vtanh.pop %v1131
  %v1134 = vmul.f32 %v1132, 0.5
  %v1135 = vmul.f32 %v1133, 0.5
  %v1136 = vadd.f32 %v1134, 0.5
  %v1137 = vadd.f32 %v1135, 0.5
  %v1138 = vsel %vm304, %v1132, %v1136
  %v1139 = vsel %vm304, %v1133, %v1137
  %v1140 = vmul.f32 %v1138, %v940
  %v1141 = vmul.f32 %v1139, %v941
  %1144 = vrot.lane.b32.xlu0 %v1138, 64
  %v1145 = vpop.permute.xlu0 %1144
  %1146 = vrot.lane.b32.xlu0 %v1139, 64
  %v1147 = vpop.permute.xlu0 %1146
  %v1150 = vmul.f32 %v1138, %v1145
  %v1151 = vmul.f32 %v1139, %v1147
  %1154 = vrot.lane.b32.xlu0 %v1150, 32
  %v1155 = vpop.permute.xlu0 %1154
  %1156 = vrot.lane.b32.xlu0 %v1151, 32
  %v1157 = vpop.permute.xlu0 %1156
  %v1160 = vadd.f32 %v1140, %v1155
  %v1161 = vadd.f32 %v1141, %v1157
  %v1162 = vtanh.pop %v1160
  %v1163 = vtanh.pop %v1161
  %1166 = vrot.lane.b32.xlu0 %v1162, 64
  %v1167 = vpop.permute.xlu0 %1166
  %1168 = vrot.lane.b32.xlu0 %v1163, 64
  %v1169 = vpop.permute.xlu0 %1168
  %v1172 = vmul.f32 %v1138, %v1167
  %v1173 = vmul.f32 %v1139, %v1169
  %v1174 = vpack.c.bf16 %v1173, %v1172
  %v1176 = vunpack.c.l.b16 %v1078
  %v1177 = vunpack.c.h.b16 %v1078
  %v1178 = vpack.c.b16 %v1176, %v1176
  %v1179 = vpack.c.b16 %v1177, %v1177
  %1180 = vrot.lane.b32.xlu0 %v1178, 32
  %v1181 = vpop.permute.xlu0 %1180
  %1182 = vrot.lane.b32.xlu0 %v1179, 32
  %v1183 = vpop.permute.xlu0 %1182
  %s1186 = scalar_lea.vmem [#allocation4], 24
  %1187 = vst.msk [vmem:[%s1186] sm:$0xf] %vm526, %v1181
  %1188 = vst.msk [vmem:[%s1186 + $0x4] sm:$0xf] %vm526, %v1183
  %v1190 = vunpack.c.l.b16 %v1174
  %v1191 = vunpack.c.h.b16 %v1174
  %v1192 = vpack.c.b16 %v1190, %v1190
  %v1193 = vpack.c.b16 %v1191, %v1191
  %1194 = vrot.lane.b32.xlu0 %v1192, 32
  %v1195 = vpop.permute.xlu0 %1194
  %1196 = vrot.lane.b32.xlu0 %v1193, 32
  %v1197 = vpop.permute.xlu0 %1196
  %s1200 = scalar_lea.vmem [#allocation5], 32
  %1201 = vst.msk [vmem:[%s1200] sm:$0xf] %vm526, %v1195
  %1202 = vst.msk [vmem:[%s1200 + $0x4] sm:$0xf] %vm526, %v1197
  %s1203 = scalar_lea.vmem [#allocation2], 64
  %v1204 = vld [vmem:[%s1203] sm:$0xff]
  %v1205 = vld [vmem:[%s1203 + $0x8] sm:$0xff]
  %1206 = vrot.lane.b32.xlu0 %v1078, 32
  %v1207 = vpop.permute.xlu0 %1206
  %v1209 = vsel %vm320, %v1207, 0
  %1211 = vmatprep.subr.bf16.mxu0 0
  %1212 = vmatpush1.bf16.msra.mxu0 0
  %1213 = vmatprep.subr.bf16.mxu0 0
  %1214 = vmatpush1.bf16.msra.mxu0 0
  %1215 = vmatprep.subr.bf16.mxu0 0
  %1216 = vmatpush1.bf16.msra.mxu0 0
  %1217 = vmatprep.subr.bf16.mxu0 0
  %1218 = vmatpush1.bf16.msra.mxu0 0
  %1219 = vmatprep.subr.bf16.mxu0 0
  %1220 = vmatpush1.bf16.msra.mxu0 0
  %1221 = vmatprep.subr.bf16.mxu0 0
  %1222 = vmatpush1.bf16.msra.mxu0 0
  %1223 = vmatprep.subr.bf16.mxu0 0
  %1224 = vmatpush1.bf16.msra.mxu0 %v317
  %1225 = vmatprep.subr.bf16.mxu0 0
  %1226 = vmatpush1.bf16.msra.mxu0 %v316
  %1227 = vmatprep.subr.bf16.mxu0 0
  %1228 = vmatpush2.bf16.msra.mxu0 0
  %1229 = vmatprep.subr.bf16.mxu0 0
  %1230 = vmatpush2.bf16.msra.mxu0 0
  %1231 = vmatprep.subr.bf16.mxu0 0
  %1232 = vmatpush2.bf16.msra.mxu0 0
  %1233 = vmatprep.subr.bf16.mxu0 0
  %1234 = vmatpush2.bf16.msra.mxu0 0
  %1235 = vmatprep.subr.bf16.mxu0 0
  %1236 = vmatpush2.bf16.msra.mxu0 0
  %1237 = vmatprep.subr.bf16.mxu0 0
  %1238 = vmatpush2.bf16.msra.mxu0 0
  %1239 = vmatprep.subr.bf16.mxu0 0
  %1240 = vmatpush2.bf16.msra.mxu0 0
  %1241 = vmatprep.subr.bf16.mxu0 0
  %1242 = vmatpush2.bf16.msra.mxu0 0
  %1243 = vmatprep.mubr.bf16.mxu0 0
  %1244 = vmatmul.mubr.bf16.gmra.mxu0 %v1209
  %v1245 = vpop.f32.mrf.mxu0
  %v1246 = vadd.f32 0.0, %v1245
  %v1247 = vpop.f32.mrf.mxu0
  %v1248 = vpop.f32.mrf.mxu0
  %v1249 = vadd.f32 0.0, %v1248
  %v1250 = vpop.f32.mrf.mxu0
  %1251 = vdwg.mxu0
  %v1252 = vadd.f32 %v1204, %v1246
  %v1253 = vadd.f32 %v1205, %v1249
  %v1254 = vmul.f32 %v1252, %v305
  %v1255 = vmul.f32 %v1253, %v305
  %v1256 = vtanh.pop %v1254
  %v1257 = vtanh.pop %v1255
  %v1258 = vmul.f32 %v1256, 0.5
  %v1259 = vmul.f32 %v1257, 0.5
  %v1260 = vadd.f32 %v1258, 0.5
  %v1261 = vadd.f32 %v1259, 0.5
  %v1262 = vsel %vm304, %v1256, %v1260
  %v1263 = vsel %vm304, %v1257, %v1261
  %v1264 = vmul.f32 %v1262, %v1064
  %v1265 = vmul.f32 %v1263, %v1065
  %1268 = vrot.lane.b32.xlu0 %v1262, 64
  %v1269 = vpop.permute.xlu0 %1268
  %1270 = vrot.lane.b32.xlu0 %v1263, 64
  %v1271 = vpop.permute.xlu0 %1270
  %v1274 = vmul.f32 %v1262, %v1269
  %v1275 = vmul.f32 %v1263, %v1271
  %1278 = vrot.lane.b32.xlu0 %v1274, 32
  %v1279 = vpop.permute.xlu0 %1278
  %1280 = vrot.lane.b32.xlu0 %v1275, 32
  %v1281 = vpop.permute.xlu0 %1280
  %v1284 = vadd.f32 %v1264, %v1279
  %v1285 = vadd.f32 %v1265, %v1281
  %v1286 = vtanh.pop %v1284
  %v1287 = vtanh.pop %v1285
  %1290 = vrot.lane.b32.xlu0 %v1286, 64
  %v1291 = vpop.permute.xlu0 %1290
  %1292 = vrot.lane.b32.xlu0 %v1287, 64
  %v1293 = vpop.permute.xlu0 %1292
  %v1296 = vmul.f32 %v1262, %v1291
  %v1297 = vmul.f32 %v1263, %v1293
  %v1298 = vpack.c.bf16 %v1297, %v1296
  %s1299 = scalar_lea.vmem [#allocation3], 48
  %v1300 = vld [vmem:[%s1299] sm:$0xff]
  %v1301 = vld [vmem:[%s1299 + $0x8] sm:$0xff]
  %1302 = vrot.lane.b32.xlu0 %v1174, 32
  %v1303 = vpop.permute.xlu0 %1302
  %v1305 = vsel %vm320, %v1303, 0
  %1307 = vmatprep.subr.bf16.mxu0 0
  %1308 = vmatpush1.bf16.msra.mxu0 0
  %1309 = vmatprep.subr.bf16.mxu0 0
  %1310 = vmatpush1.bf16.msra.mxu0 0
  %1311 = vmatprep.subr.bf16.mxu0 0
  %1312 = vmatpush1.bf16.msra.mxu0 0
  %1313 = vmatprep.subr.bf16.mxu0 0
  %1314 = vmatpush1.bf16.msra.mxu0 0
  %1315 = vmatprep.subr.bf16.mxu0 0
  %1316 = vmatpush1.bf16.msra.mxu0 0
  %1317 = vmatprep.subr.bf16.mxu0 0
  %1318 = vmatpush1.bf16.msra.mxu0 0
  %1319 = vmatprep.subr.bf16.mxu0 0
  %1320 = vmatpush1.bf16.msra.mxu0 %v424
  %1321 = vmatprep.subr.bf16.mxu0 0
  %1322 = vmatpush1.bf16.msra.mxu0 %v423
  %1323 = vmatprep.subr.bf16.mxu0 0
  %1324 = vmatpush2.bf16.msra.mxu0 0
  %1325 = vmatprep.subr.bf16.mxu0 0
  %1326 = vmatpush2.bf16.msra.mxu0 0
  %1327 = vmatprep.subr.bf16.mxu0 0
  %1328 = vmatpush2.bf16.msra.mxu0 0
  %1329 = vmatprep.subr.bf16.mxu0 0
  %1330 = vmatpush2.bf16.msra.mxu0 0
  %1331 = vmatprep.subr.bf16.mxu0 0
  %1332 = vmatpush2.bf16.msra.mxu0 0
  %1333 = vmatprep.subr.bf16.mxu0 0
  %1334 = vmatpush2.bf16.msra.mxu0 0
  %1335 = vmatprep.subr.bf16.mxu0 0
  %1336 = vmatpush2.bf16.msra.mxu0 0
  %1337 = vmatprep.subr.bf16.mxu0 0
  %1338 = vmatpush2.bf16.msra.mxu0 0
  %1339 = vmatprep.mubr.bf16.mxu0 0
  %1340 = vmatmul.mubr.bf16.gmra.mxu0 %v1305
  %v1341 = vpop.f32.mrf.mxu0
  %v1342 = vadd.f32 0.0, %v1341
  %v1343 = vpop.f32.mrf.mxu0
  %v1344 = vpop.f32.mrf.mxu0
  %v1345 = vadd.f32 0.0, %v1344
  %v1346 = vpop.f32.mrf.mxu0
  %1347 = vdwg.mxu0
  %v1348 = vadd.f32 %v1300, %v1342
  %v1349 = vadd.f32 %v1301, %v1345
  %v1350 = vmul.f32 %v1348, %v305
  %v1351 = vmul.f32 %v1349, %v305
  %v1352 = vtanh.pop %v1350
  %v1353 = vtanh.pop %v1351
  %v1354 = vmul.f32 %v1352, 0.5
  %v1355 = vmul.f32 %v1353, 0.5
  %v1356 = vadd.f32 %v1354, 0.5
  %v1357 = vadd.f32 %v1355, 0.5
  %v1358 = vsel %vm304, %v1352, %v1356
  %v1359 = vsel %vm304, %v1353, %v1357
  %v1360 = vmul.f32 %v1358, %v1160
  %v1361 = vmul.f32 %v1359, %v1161
  %1364 = vrot.lane.b32.xlu0 %v1358, 64
  %v1365 = vpop.permute.xlu0 %1364
  %1366 = vrot.lane.b32.xlu0 %v1359, 64
  %v1367 = vpop.permute.xlu0 %1366
  %v1370 = vmul.f32 %v1358, %v1365
  %v1371 = vmul.f32 %v1359, %v1367
  %1374 = vrot.lane.b32.xlu0 %v1370, 32
  %v1375 = vpop.permute.xlu0 %1374
  %1376 = vrot.lane.b32.xlu0 %v1371, 32
  %v1377 = vpop.permute.xlu0 %1376
  %v1380 = vadd.f32 %v1360, %v1375
  %v1381 = vadd.f32 %v1361, %v1377
  %v1382 = vtanh.pop %v1380
  %v1383 = vtanh.pop %v1381
  %1386 = vrot.lane.b32.xlu0 %v1382, 64
  %v1387 = vpop.permute.xlu0 %1386
  %1388 = vrot.lane.b32.xlu0 %v1383, 64
  %v1389 = vpop.permute.xlu0 %1388
  %v1392 = vmul.f32 %v1358, %v1387
  %v1393 = vmul.f32 %v1359, %v1389
  %v1394 = vpack.c.bf16 %v1393, %v1392
  %v1396 = vunpack.c.l.b16 %v1298
  %v1397 = vunpack.c.h.b16 %v1298
  %v1398 = vpack.c.b16 %v1396, %v1396
  %v1399 = vpack.c.b16 %v1397, %v1397
  %1400 = vrot.lane.b32.xlu0 %v1398, 32
  %v1401 = vpop.permute.xlu0 %1400
  %1402 = vrot.lane.b32.xlu0 %v1399, 32
  %v1403 = vpop.permute.xlu0 %1402
  %s1406 = scalar_lea.vmem [#allocation4], 32
  %1407 = vst.msk [vmem:[%s1406] sm:$0xf] %vm526, %v1401
  %1408 = vst.msk [vmem:[%s1406 + $0x4] sm:$0xf] %vm526, %v1403
  %v1410 = vunpack.c.l.b16 %v1394
  %v1411 = vunpack.c.h.b16 %v1394
  %v1412 = vpack.c.b16 %v1410, %v1410
  %v1413 = vpack.c.b16 %v1411, %v1411
  %1414 = vrot.lane.b32.xlu0 %v1412, 32
  %v1415 = vpop.permute.xlu0 %1414
  %1416 = vrot.lane.b32.xlu0 %v1413, 32
  %v1417 = vpop.permute.xlu0 %1416
  %s1420 = scalar_lea.vmem [#allocation5], 24
  %1421 = vst.msk [vmem:[%s1420] sm:$0xf] %vm526, %v1415
  %1422 = vst.msk [vmem:[%s1420 + $0x4] sm:$0xf] %vm526, %v1417
  %s1423 = scalar_lea.vmem [#allocation2], 80
  %v1424 = vld [vmem:[%s1423] sm:$0xff]
  %v1425 = vld [vmem:[%s1423 + $0x8] sm:$0xff]
  %1426 = vrot.lane.b32.xlu0 %v1298, 32
  %v1427 = vpop.permute.xlu0 %1426
  %v1429 = vsel %vm320, %v1427, 0
  %1431 = vmatprep.subr.bf16.mxu0 0
  %1432 = vmatpush1.bf16.msra.mxu0 0
  %1433 = vmatprep.subr.bf16.mxu0 0
  %1434 = vmatpush1.bf16.msra.mxu0 0
  %1435 = vmatprep.subr.bf16.mxu0 0
  %1436 = vmatpush1.bf16.msra.mxu0 0
  %1437 = vmatprep.subr.bf16.mxu0 0
  %1438 = vmatpush1.bf16.msra.mxu0 0
  %1439 = vmatprep.subr.bf16.mxu0 0
  %1440 = vmatpush1.bf16.msra.mxu0 0
  %1441 = vmatprep.subr.bf16.mxu0 0
  %1442 = vmatpush1.bf16.msra.mxu0 0
  %1443 = vmatprep.subr.bf16.mxu0 0
  %1444 = vmatpush1.bf16.msra.mxu0 %v317
  %1445 = vmatprep.subr.bf16.mxu0 0
  %1446 = vmatpush1.bf16.msra.mxu0 %v316
  %1447 = vmatprep.subr.bf16.mxu0 0
  %1448 = vmatpush2.bf16.msra.mxu0 0
  %1449 = vmatprep.subr.bf16.mxu0 0
  %1450 = vmatpush2.bf16.msra.mxu0 0
  %1451 = vmatprep.subr.bf16.mxu0 0
  %1452 = vmatpush2.bf16.msra.mxu0 0
  %1453 = vmatprep.subr.bf16.mxu0 0
  %1454 = vmatpush2.bf16.msra.mxu0 0
  %1455 = vmatprep.subr.bf16.mxu0 0
  %1456 = vmatpush2.bf16.msra.mxu0 0
  %1457 = vmatprep.subr.bf16.mxu0 0
  %1458 = vmatpush2.bf16.msra.mxu0 0
  %1459 = vmatprep.subr.bf16.mxu0 0
  %1460 = vmatpush2.bf16.msra.mxu0 0
  %1461 = vmatprep.subr.bf16.mxu0 0
  %1462 = vmatpush2.bf16.msra.mxu0 0
  %1463 = vmatprep.mubr.bf16.mxu0 0
  %1464 = vmatmul.mubr.bf16.gmra.mxu0 %v1429
  %v1465 = vpop.f32.mrf.mxu0
  %v1466 = vadd.f32 0.0, %v1465
  %v1467 = vpop.f32.mrf.mxu0
  %v1468 = vpop.f32.mrf.mxu0
  %v1469 = vadd.f32 0.0, %v1468
  %v1470 = vpop.f32.mrf.mxu0
  %1471 = vdwg.mxu0
  %v1472 = vadd.f32 %v1424, %v1466
  %v1473 = vadd.f32 %v1425, %v1469
  %v1474 = vmul.f32 %v1472, %v305
  %v1475 = vmul.f32 %v1473, %v305
  %v1476 = vtanh.pop %v1474
  %v1477 = vtanh.pop %v1475
  %v1478 = vmul.f32 %v1476, 0.5
  %v1479 = vmul.f32 %v1477, 0.5
  %v1480 = vadd.f32 %v1478, 0.5
  %v1481 = vadd.f32 %v1479, 0.5
  %v1482 = vsel %vm304, %v1476, %v1480
  %v1483 = vsel %vm304, %v1477, %v1481
  %v1484 = vmul.f32 %v1482, %v1284
  %v1485 = vmul.f32 %v1483, %v1285
  %1488 = vrot.lane.b32.xlu0 %v1482, 64
  %v1489 = vpop.permute.xlu0 %1488
  %1490 = vrot.lane.b32.xlu0 %v1483, 64
  %v1491 = vpop.permute.xlu0 %1490
  %v1494 = vmul.f32 %v1482, %v1489
  %v1495 = vmul.f32 %v1483, %v1491
  %1498 = vrot.lane.b32.xlu0 %v1494, 32
  %v1499 = vpop.permute.xlu0 %1498
  %1500 = vrot.lane.b32.xlu0 %v1495, 32
  %v1501 = vpop.permute.xlu0 %1500
  %v1504 = vadd.f32 %v1484, %v1499
  %v1505 = vadd.f32 %v1485, %v1501
  %v1506 = vtanh.pop %v1504
  %v1507 = vtanh.pop %v1505
  %1510 = vrot.lane.b32.xlu0 %v1506, 64
  %v1511 = vpop.permute.xlu0 %1510
  %1512 = vrot.lane.b32.xlu0 %v1507, 64
  %v1513 = vpop.permute.xlu0 %1512
  %v1516 = vmul.f32 %v1482, %v1511
  %v1517 = vmul.f32 %v1483, %v1513
  %v1518 = vpack.c.bf16 %v1517, %v1516
  %s1519 = scalar_lea.vmem [#allocation3], 32
  %v1520 = vld [vmem:[%s1519] sm:$0xff]
  %v1521 = vld [vmem:[%s1519 + $0x8] sm:$0xff]
  %1522 = vrot.lane.b32.xlu0 %v1394, 32
  %v1523 = vpop.permute.xlu0 %1522
  %v1525 = vsel %vm320, %v1523, 0
  %1527 = vmatprep.subr.bf16.mxu0 0
  %1528 = vmatpush1.bf16.msra.mxu0 0
  %1529 = vmatprep.subr.bf16.mxu0 0
  %1530 = vmatpush1.bf16.msra.mxu0 0
  %1531 = vmatprep.subr.bf16.mxu0 0
  %1532 = vmatpush1.bf16.msra.mxu0 0
  %1533 = vmatprep.subr.bf16.mxu0 0
  %1534 = vmatpush1.bf16.msra.mxu0 0
  %1535 = vmatprep.subr.bf16.mxu0 0
  %1536 = vmatpush1.bf16.msra.mxu0 0
  %1537 = vmatprep.subr.bf16.mxu0 0
  %1538 = vmatpush1.bf16.msra.mxu0 0
  %1539 = vmatprep.subr.bf16.mxu0 0
  %1540 = vmatpush1.bf16.msra.mxu0 %v424
  %1541 = vmatprep.subr.bf16.mxu0 0
  %1542 = vmatpush1.bf16.msra.mxu0 %v423
  %1543 = vmatprep.subr.bf16.mxu0 0
  %1544 = vmatpush2.bf16.msra.mxu0 0
  %1545 = vmatprep.subr.bf16.mxu0 0
  %1546 = vmatpush2.bf16.msra.mxu0 0
  %1547 = vmatprep.subr.bf16.mxu0 0
  %1548 = vmatpush2.bf16.msra.mxu0 0
  %1549 = vmatprep.subr.bf16.mxu0 0
  %1550 = vmatpush2.bf16.msra.mxu0 0
  %1551 = vmatprep.subr.bf16.mxu0 0
  %1552 = vmatpush2.bf16.msra.mxu0 0
  %1553 = vmatprep.subr.bf16.mxu0 0
  %1554 = vmatpush2.bf16.msra.mxu0 0
  %1555 = vmatprep.subr.bf16.mxu0 0
  %1556 = vmatpush2.bf16.msra.mxu0 0
  %1557 = vmatprep.subr.bf16.mxu0 0
  %1558 = vmatpush2.bf16.msra.mxu0 0
  %1559 = vmatprep.mubr.bf16.mxu0 0
  %1560 = vmatmul.mubr.bf16.gmra.mxu0 %v1525
  %v1561 = vpop.f32.mrf.mxu0
  %v1562 = vadd.f32 0.0, %v1561
  %v1563 = vpop.f32.mrf.mxu0
  %v1564 = vpop.f32.mrf.mxu0
  %v1565 = vadd.f32 0.0, %v1564
  %v1566 = vpop.f32.mrf.mxu0
  %1567 = vdwg.mxu0
  %v1568 = vadd.f32 %v1520, %v1562
  %v1569 = vadd.f32 %v1521, %v1565
  %v1570 = vmul.f32 %v1568, %v305
  %v1571 = vmul.f32 %v1569, %v305
  %v1572 = vtanh.pop %v1570
  %v1573 = vtanh.pop %v1571
  %v1574 = vmul.f32 %v1572, 0.5
  %v1575 = vmul.f32 %v1573, 0.5
  %v1576 = vadd.f32 %v1574, 0.5
  %v1577 = vadd.f32 %v1575, 0.5
  %v1578 = vsel %vm304, %v1572, %v1576
  %v1579 = vsel %vm304, %v1573, %v1577
  %v1580 = vmul.f32 %v1578, %v1380
  %v1581 = vmul.f32 %v1579, %v1381
  %1584 = vrot.lane.b32.xlu0 %v1578, 64
  %v1585 = vpop.permute.xlu0 %1584
  %1586 = vrot.lane.b32.xlu0 %v1579, 64
  %v1587 = vpop.permute.xlu0 %1586
  %v1590 = vmul.f32 %v1578, %v1585
  %v1591 = vmul.f32 %v1579, %v1587
  %1594 = vrot.lane.b32.xlu0 %v1590, 32
  %v1595 = vpop.permute.xlu0 %1594
  %1596 = vrot.lane.b32.xlu0 %v1591, 32
  %v1597 = vpop.permute.xlu0 %1596
  %v1600 = vadd.f32 %v1580, %v1595
  %v1601 = vadd.f32 %v1581, %v1597
  %v1602 = vtanh.pop %v1600
  %v1603 = vtanh.pop %v1601
  %1606 = vrot.lane.b32.xlu0 %v1602, 64
  %v1607 = vpop.permute.xlu0 %1606
  %1608 = vrot.lane.b32.xlu0 %v1603, 64
  %v1609 = vpop.permute.xlu0 %1608
  %v1612 = vmul.f32 %v1578, %v1607
  %v1613 = vmul.f32 %v1579, %v1609
  %v1614 = vpack.c.bf16 %v1613, %v1612
  %v1616 = vunpack.c.l.b16 %v1518
  %v1617 = vunpack.c.h.b16 %v1518
  %v1618 = vpack.c.b16 %v1616, %v1616
  %v1619 = vpack.c.b16 %v1617, %v1617
  %1620 = vrot.lane.b32.xlu0 %v1618, 32
  %v1621 = vpop.permute.xlu0 %1620
  %1622 = vrot.lane.b32.xlu0 %v1619, 32
  %v1623 = vpop.permute.xlu0 %1622
  %s1626 = scalar_lea.vmem [#allocation4], 40
  %1627 = vst.msk [vmem:[%s1626] sm:$0xf] %vm526, %v1621
  %1628 = vst.msk [vmem:[%s1626 + $0x4] sm:$0xf] %vm526, %v1623
  %v1630 = vunpack.c.l.b16 %v1614
  %v1631 = vunpack.c.h.b16 %v1614
  %v1632 = vpack.c.b16 %v1630, %v1630
  %v1633 = vpack.c.b16 %v1631, %v1631
  %1634 = vrot.lane.b32.xlu0 %v1632, 32
  %v1635 = vpop.permute.xlu0 %1634
  %1636 = vrot.lane.b32.xlu0 %v1633, 32
  %v1637 = vpop.permute.xlu0 %1636
  %s1640 = scalar_lea.vmem [#allocation5], 16
  %1641 = vst.msk [vmem:[%s1640] sm:$0xf] %vm526, %v1635
  %1642 = vst.msk [vmem:[%s1640 + $0x4] sm:$0xf] %vm526, %v1637
  %s1643 = scalar_lea.vmem [#allocation2], 96
  %v1644 = vld [vmem:[%s1643] sm:$0xff]
  %v1645 = vld [vmem:[%s1643 + $0x8] sm:$0xff]
  %1646 = vrot.lane.b32.xlu0 %v1518, 32
  %v1647 = vpop.permute.xlu0 %1646
  %v1649 = vsel %vm320, %v1647, 0
  %1651 = vmatprep.subr.bf16.mxu0 0
  %1652 = vmatpush1.bf16.msra.mxu0 0
  %1653 = vmatprep.subr.bf16.mxu0 0
  %1654 = vmatpush1.bf16.msra.mxu0 0
  %1655 = vmatprep.subr.bf16.mxu0 0
  %1656 = vmatpush1.bf16.msra.mxu0 0
  %1657 = vmatprep.subr.bf16.mxu0 0
  %1658 = vmatpush1.bf16.msra.mxu0 0
  %1659 = vmatprep.subr.bf16.mxu0 0
  %1660 = vmatpush1.bf16.msra.mxu0 0
  %1661 = vmatprep.subr.bf16.mxu0 0
  %1662 = vmatpush1.bf16.msra.mxu0 0
  %1663 = vmatprep.subr.bf16.mxu0 0
  %1664 = vmatpush1.bf16.msra.mxu0 %v317
  %1665 = vmatprep.subr.bf16.mxu0 0
  %1666 = vmatpush1.bf16.msra.mxu0 %v316
  %1667 = vmatprep.subr.bf16.mxu0 0
  %1668 = vmatpush2.bf16.msra.mxu0 0
  %1669 = vmatprep.subr.bf16.mxu0 0
  %1670 = vmatpush2.bf16.msra.mxu0 0
  %1671 = vmatprep.subr.bf16.mxu0 0
  %1672 = vmatpush2.bf16.msra.mxu0 0
  %1673 = vmatprep.subr.bf16.mxu0 0
  %1674 = vmatpush2.bf16.msra.mxu0 0
  %1675 = vmatprep.subr.bf16.mxu0 0
  %1676 = vmatpush2.bf16.msra.mxu0 0
  %1677 = vmatprep.subr.bf16.mxu0 0
  %1678 = vmatpush2.bf16.msra.mxu0 0
  %1679 = vmatprep.subr.bf16.mxu0 0
  %1680 = vmatpush2.bf16.msra.mxu0 0
  %1681 = vmatprep.subr.bf16.mxu0 0
  %1682 = vmatpush2.bf16.msra.mxu0 0
  %1683 = vmatprep.mubr.bf16.mxu0 0
  %1684 = vmatmul.mubr.bf16.gmra.mxu0 %v1649
  %v1685 = vpop.f32.mrf.mxu0
  %v1686 = vadd.f32 0.0, %v1685
  %v1687 = vpop.f32.mrf.mxu0
  %v1688 = vpop.f32.mrf.mxu0
  %v1689 = vadd.f32 0.0, %v1688
  %v1690 = vpop.f32.mrf.mxu0
  %1691 = vdwg.mxu0
  %v1692 = vadd.f32 %v1644, %v1686
  %v1693 = vadd.f32 %v1645, %v1689
  %v1694 = vmul.f32 %v1692, %v305
  %v1695 = vmul.f32 %v1693, %v305
  %v1696 = vtanh.pop %v1694
  %v1697 = vtanh.pop %v1695
  %v1698 = vmul.f32 %v1696, 0.5
  %v1699 = vmul.f32 %v1697, 0.5
  %v1700 = vadd.f32 %v1698, 0.5
  %v1701 = vadd.f32 %v1699, 0.5
  %v1702 = vsel %vm304, %v1696, %v1700
  %v1703 = vsel %vm304, %v1697, %v1701
  %v1704 = vmul.f32 %v1702, %v1504
  %v1705 = vmul.f32 %v1703, %v1505
  %1708 = vrot.lane.b32.xlu0 %v1702, 64
  %v1709 = vpop.permute.xlu0 %1708
  %1710 = vrot.lane.b32.xlu0 %v1703, 64
  %v1711 = vpop.permute.xlu0 %1710
  %v1714 = vmul.f32 %v1702, %v1709
  %v1715 = vmul.f32 %v1703, %v1711
  %1718 = vrot.lane.b32.xlu0 %v1714, 32
  %v1719 = vpop.permute.xlu0 %1718
  %1720 = vrot.lane.b32.xlu0 %v1715, 32
  %v1721 = vpop.permute.xlu0 %1720
  %v1724 = vadd.f32 %v1704, %v1719
  %v1725 = vadd.f32 %v1705, %v1721
  %v1726 = vtanh.pop %v1724
  %v1727 = vtanh.pop %v1725
  %1730 = vrot.lane.b32.xlu0 %v1726, 64
  %v1731 = vpop.permute.xlu0 %1730
  %1732 = vrot.lane.b32.xlu0 %v1727, 64
  %v1733 = vpop.permute.xlu0 %1732
  %v1736 = vmul.f32 %v1702, %v1731
  %v1737 = vmul.f32 %v1703, %v1733
  %v1738 = vpack.c.bf16 %v1737, %v1736
  %s1739 = scalar_lea.vmem [#allocation3], 16
  %v1740 = vld [vmem:[%s1739] sm:$0xff]
  %v1741 = vld [vmem:[%s1739 + $0x8] sm:$0xff]
  %1742 = vrot.lane.b32.xlu0 %v1614, 32
  %v1743 = vpop.permute.xlu0 %1742
  %v1745 = vsel %vm320, %v1743, 0
  %1747 = vmatprep.subr.bf16.mxu0 0
  %1748 = vmatpush1.bf16.msra.mxu0 0
  %1749 = vmatprep.subr.bf16.mxu0 0
  %1750 = vmatpush1.bf16.msra.mxu0 0
  %1751 = vmatprep.subr.bf16.mxu0 0
  %1752 = vmatpush1.bf16.msra.mxu0 0
  %1753 = vmatprep.subr.bf16.mxu0 0
  %1754 = vmatpush1.bf16.msra.mxu0 0
  %1755 = vmatprep.subr.bf16.mxu0 0
  %1756 = vmatpush1.bf16.msra.mxu0 0
  %1757 = vmatprep.subr.bf16.mxu0 0
  %1758 = vmatpush1.bf16.msra.mxu0 0
  %1759 = vmatprep.subr.bf16.mxu0 0
  %1760 = vmatpush1.bf16.msra.mxu0 %v424
  %1761 = vmatprep.subr.bf16.mxu0 0
  %1762 = vmatpush1.bf16.msra.mxu0 %v423
  %1763 = vmatprep.subr.bf16.mxu0 0
  %1764 = vmatpush2.bf16.msra.mxu0 0
  %1765 = vmatprep.subr.bf16.mxu0 0
  %1766 = vmatpush2.bf16.msra.mxu0 0
  %1767 = vmatprep.subr.bf16.mxu0 0
  %1768 = vmatpush2.bf16.msra.mxu0 0
  %1769 = vmatprep.subr.bf16.mxu0 0
  %1770 = vmatpush2.bf16.msra.mxu0 0
  %1771 = vmatprep.subr.bf16.mxu0 0
  %1772 = vmatpush2.bf16.msra.mxu0 0
  %1773 = vmatprep.subr.bf16.mxu0 0
  %1774 = vmatpush2.bf16.msra.mxu0 0
  %1775 = vmatprep.subr.bf16.mxu0 0
  %1776 = vmatpush2.bf16.msra.mxu0 0
  %1777 = vmatprep.subr.bf16.mxu0 0
  %1778 = vmatpush2.bf16.msra.mxu0 0
  %1779 = vmatprep.mubr.bf16.mxu0 0
  %1780 = vmatmul.mubr.bf16.gmra.mxu0 %v1745
  %v1781 = vpop.f32.mrf.mxu0
  %v1782 = vadd.f32 0.0, %v1781
  %v1783 = vpop.f32.mrf.mxu0
  %v1784 = vpop.f32.mrf.mxu0
  %v1785 = vadd.f32 0.0, %v1784
  %v1786 = vpop.f32.mrf.mxu0
  %1787 = vdwg.mxu0
  %v1788 = vadd.f32 %v1740, %v1782
  %v1789 = vadd.f32 %v1741, %v1785
  %v1790 = vmul.f32 %v1788, %v305
  %v1791 = vmul.f32 %v1789, %v305
  %v1792 = vtanh.pop %v1790
  %v1793 = vtanh.pop %v1791
  %v1794 = vmul.f32 %v1792, 0.5
  %v1795 = vmul.f32 %v1793, 0.5
  %v1796 = vadd.f32 %v1794, 0.5
  %v1797 = vadd.f32 %v1795, 0.5
  %v1798 = vsel %vm304, %v1792, %v1796
  %v1799 = vsel %vm304, %v1793, %v1797
  %v1800 = vmul.f32 %v1798, %v1600
  %v1801 = vmul.f32 %v1799, %v1601
  %1804 = vrot.lane.b32.xlu0 %v1798, 64
  %v1805 = vpop.permute.xlu0 %1804
  %1806 = vrot.lane.b32.xlu0 %v1799, 64
  %v1807 = vpop.permute.xlu0 %1806
  %v1810 = vmul.f32 %v1798, %v1805
  %v1811 = vmul.f32 %v1799, %v1807
  %1814 = vrot.lane.b32.xlu0 %v1810, 32
  %v1815 = vpop.permute.xlu0 %1814
  %1816 = vrot.lane.b32.xlu0 %v1811, 32
  %v1817 = vpop.permute.xlu0 %1816
  %v1820 = vadd.f32 %v1800, %v1815
  %v1821 = vadd.f32 %v1801, %v1817
  %v1822 = vtanh.pop %v1820
  %v1823 = vtanh.pop %v1821
  %1826 = vrot.lane.b32.xlu0 %v1822, 64
  %v1827 = vpop.permute.xlu0 %1826
  %1828 = vrot.lane.b32.xlu0 %v1823, 64
  %v1829 = vpop.permute.xlu0 %1828
  %v1832 = vmul.f32 %v1798, %v1827
  %v1833 = vmul.f32 %v1799, %v1829
  %v1834 = vpack.c.bf16 %v1833, %v1832
  %v1836 = vunpack.c.l.b16 %v1738
  %v1837 = vunpack.c.h.b16 %v1738
  %v1838 = vpack.c.b16 %v1836, %v1836
  %v1839 = vpack.c.b16 %v1837, %v1837
  %1840 = vrot.lane.b32.xlu0 %v1838, 32
  %v1841 = vpop.permute.xlu0 %1840
  %1842 = vrot.lane.b32.xlu0 %v1839, 32
  %v1843 = vpop.permute.xlu0 %1842
  %s1846 = scalar_lea.vmem [#allocation4], 48
  %1847 = vst.msk [vmem:[%s1846] sm:$0xf] %vm526, %v1841
  %1848 = vst.msk [vmem:[%s1846 + $0x4] sm:$0xf] %vm526, %v1843
  %v1850 = vunpack.c.l.b16 %v1834
  %v1851 = vunpack.c.h.b16 %v1834
  %v1852 = vpack.c.b16 %v1850, %v1850
  %v1853 = vpack.c.b16 %v1851, %v1851
  %1854 = vrot.lane.b32.xlu0 %v1852, 32
  %v1855 = vpop.permute.xlu0 %1854
  %1856 = vrot.lane.b32.xlu0 %v1853, 32
  %v1857 = vpop.permute.xlu0 %1856
  %s1860 = scalar_lea.vmem [#allocation5], 8
  %1861 = vst.msk [vmem:[%s1860] sm:$0xf] %vm526, %v1855
  %1862 = vst.msk [vmem:[%s1860 + $0x4] sm:$0xf] %vm526, %v1857
  %s1863 = scalar_lea.vmem [#allocation2], 112
  %v1864 = vld [vmem:[%s1863] sm:$0xff]
  %v1865 = vld [vmem:[%s1863 + $0x8] sm:$0xff]
  %1866 = vrot.lane.b32.xlu0 %v1738, 32
  %v1867 = vpop.permute.xlu0 %1866
  %v1869 = vsel %vm320, %v1867, 0
  %1871 = vmatprep.subr.bf16.mxu0 0
  %1872 = vmatpush1.bf16.msra.mxu0 0
  %1873 = vmatprep.subr.bf16.mxu0 0
  %1874 = vmatpush1.bf16.msra.mxu0 0
  %1875 = vmatprep.subr.bf16.mxu0 0
  %1876 = vmatpush1.bf16.msra.mxu0 0
  %1877 = vmatprep.subr.bf16.mxu0 0
  %1878 = vmatpush1.bf16.msra.mxu0 0
  %1879 = vmatprep.subr.bf16.mxu0 0
  %1880 = vmatpush1.bf16.msra.mxu0 0
  %1881 = vmatprep.subr.bf16.mxu0 0
  %1882 = vmatpush1.bf16.msra.mxu0 0
  %1883 = vmatprep.subr.bf16.mxu0 0
  %1884 = vmatpush1.bf16.msra.mxu0 %v317
  %1885 = vmatprep.subr.bf16.mxu0 0
  %1886 = vmatpush1.bf16.msra.mxu0 %v316
  %1887 = vmatprep.subr.bf16.mxu0 0
  %1888 = vmatpush2.bf16.msra.mxu0 0
  %1889 = vmatprep.subr.bf16.mxu0 0
  %1890 = vmatpush2.bf16.msra.mxu0 0
  %1891 = vmatprep.subr.bf16.mxu0 0
  %1892 = vmatpush2.bf16.msra.mxu0 0
  %1893 = vmatprep.subr.bf16.mxu0 0
  %1894 = vmatpush2.bf16.msra.mxu0 0
  %1895 = vmatprep.subr.bf16.mxu0 0
  %1896 = vmatpush2.bf16.msra.mxu0 0
  %1897 = vmatprep.subr.bf16.mxu0 0
  %1898 = vmatpush2.bf16.msra.mxu0 0
  %1899 = vmatprep.subr.bf16.mxu0 0
  %1900 = vmatpush2.bf16.msra.mxu0 0
  %1901 = vmatprep.subr.bf16.mxu0 0
  %1902 = vmatpush2.bf16.msra.mxu0 0
  %1903 = vmatprep.mubr.bf16.mxu0 0
  %1904 = vmatmul.mubr.bf16.gmra.mxu0 %v1869
  %v1905 = vpop.f32.mrf.mxu0
  %v1906 = vadd.f32 0.0, %v1905
  %v1907 = vpop.f32.mrf.mxu0
  %v1908 = vpop.f32.mrf.mxu0
  %v1909 = vadd.f32 0.0, %v1908
  %v1910 = vpop.f32.mrf.mxu0
  %1911 = vdwg.mxu0
  %v1912 = vadd.f32 %v1864, %v1906
  %v1913 = vadd.f32 %v1865, %v1909
  %v1914 = vmul.f32 %v1912, %v305
  %v1915 = vmul.f32 %v1913, %v305
  %v1916 = vtanh.pop %v1914
  %v1917 = vtanh.pop %v1915
  %v1918 = vmul.f32 %v1916, 0.5
  %v1919 = vmul.f32 %v1917, 0.5
  %v1920 = vadd.f32 %v1918, 0.5
  %v1921 = vadd.f32 %v1919, 0.5
  %v1922 = vsel %vm304, %v1916, %v1920
  %v1923 = vsel %vm304, %v1917, %v1921
  %v1924 = vmul.f32 %v1922, %v1724
  %v1925 = vmul.f32 %v1923, %v1725
  %1928 = vrot.lane.b32.xlu0 %v1922, 64
  %v1929 = vpop.permute.xlu0 %1928
  %1930 = vrot.lane.b32.xlu0 %v1923, 64
  %v1931 = vpop.permute.xlu0 %1930
  %v1934 = vmul.f32 %v1922, %v1929
  %v1935 = vmul.f32 %v1923, %v1931
  %1938 = vrot.lane.b32.xlu0 %v1934, 32
  %v1939 = vpop.permute.xlu0 %1938
  %1940 = vrot.lane.b32.xlu0 %v1935, 32
  %v1941 = vpop.permute.xlu0 %1940
  %v1944 = vadd.f32 %v1924, %v1939
  %v1945 = vadd.f32 %v1925, %v1941
  %v1946 = vtanh.pop %v1944
  %v1947 = vtanh.pop %v1945
  %1950 = vrot.lane.b32.xlu0 %v1946, 64
  %v1951 = vpop.permute.xlu0 %1950
  %1952 = vrot.lane.b32.xlu0 %v1947, 64
  %v1953 = vpop.permute.xlu0 %1952
  %v1956 = vmul.f32 %v1922, %v1951
  %v1957 = vmul.f32 %v1923, %v1953
  %v1958 = vpack.c.bf16 %v1957, %v1956
  %v1959 = vld [vmem:[#allocation3] sm:$0xff]
  %v1960 = vld [vmem:[#allocation3 + $0x8] sm:$0xff]
  %1961 = vrot.lane.b32.xlu0 %v1834, 32
  %v1962 = vpop.permute.xlu0 %1961
  %v1964 = vsel %vm320, %v1962, 0
  %1966 = vmatprep.subr.bf16.mxu0 0
  %1967 = vmatpush1.bf16.msra.mxu0 0
  %1968 = vmatprep.subr.bf16.mxu0 0
  %1969 = vmatpush1.bf16.msra.mxu0 0
  %1970 = vmatprep.subr.bf16.mxu0 0
  %1971 = vmatpush1.bf16.msra.mxu0 0
  %1972 = vmatprep.subr.bf16.mxu0 0
  %1973 = vmatpush1.bf16.msra.mxu0 0
  %1974 = vmatprep.subr.bf16.mxu0 0
  %1975 = vmatpush1.bf16.msra.mxu0 0
  %1976 = vmatprep.subr.bf16.mxu0 0
  %1977 = vmatpush1.bf16.msra.mxu0 0
  %1978 = vmatprep.subr.bf16.mxu0 0
  %1979 = vmatpush1.bf16.msra.mxu0 %v424
  %1980 = vmatprep.subr.bf16.mxu0 0
  %1981 = vmatpush1.bf16.msra.mxu0 %v423
  %1982 = vmatprep.subr.bf16.mxu0 0
  %1983 = vmatpush2.bf16.msra.mxu0 0
  %1984 = vmatprep.subr.bf16.mxu0 0
  %1985 = vmatpush2.bf16.msra.mxu0 0
  %1986 = vmatprep.subr.bf16.mxu0 0
  %1987 = vmatpush2.bf16.msra.mxu0 0
  %1988 = vmatprep.subr.bf16.mxu0 0
  %1989 = vmatpush2.bf16.msra.mxu0 0
  %1990 = vmatprep.subr.bf16.mxu0 0
  %1991 = vmatpush2.bf16.msra.mxu0 0
  %1992 = vmatprep.subr.bf16.mxu0 0
  %1993 = vmatpush2.bf16.msra.mxu0 0
  %1994 = vmatprep.subr.bf16.mxu0 0
  %1995 = vmatpush2.bf16.msra.mxu0 0
  %1996 = vmatprep.subr.bf16.mxu0 0
  %1997 = vmatpush2.bf16.msra.mxu0 0
  %1998 = vmatprep.mubr.bf16.mxu0 0
  %1999 = vmatmul.mubr.bf16.gmra.mxu0 %v1964
  %v2000 = vpop.f32.mrf.mxu0
  %v2001 = vadd.f32 0.0, %v2000
  %v2002 = vpop.f32.mrf.mxu0
  %v2003 = vpop.f32.mrf.mxu0
  %v2004 = vadd.f32 0.0, %v2003
  %v2005 = vpop.f32.mrf.mxu0
  %2006 = vdwg.mxu0
  %v2007 = vadd.f32 %v1959, %v2001
  %v2008 = vadd.f32 %v1960, %v2004
  %v2009 = vmul.f32 %v2007, %v305
  %v2010 = vmul.f32 %v2008, %v305
  %v2011 = vtanh.pop %v2009
  %v2012 = vtanh.pop %v2010
  %v2013 = vmul.f32 %v2011, 0.5
  %v2014 = vmul.f32 %v2012, 0.5
  %v2015 = vadd.f32 %v2013, 0.5
  %v2016 = vadd.f32 %v2014, 0.5
  %v2017 = vsel %vm304, %v2011, %v2015
  %v2018 = vsel %vm304, %v2012, %v2016
  %v2019 = vmul.f32 %v2017, %v1820
  %v2020 = vmul.f32 %v2018, %v1821
  %2023 = vrot.lane.b32.xlu0 %v2017, 64
  %v2024 = vpop.permute.xlu0 %2023
  %2025 = vrot.lane.b32.xlu0 %v2018, 64
  %v2026 = vpop.permute.xlu0 %2025
  %v2029 = vmul.f32 %v2017, %v2024
  %v2030 = vmul.f32 %v2018, %v2026
  %2033 = vrot.lane.b32.xlu0 %v2029, 32
  %v2034 = vpop.permute.xlu0 %2033
  %2035 = vrot.lane.b32.xlu0 %v2030, 32
  %v2036 = vpop.permute.xlu0 %2035
  %v2039 = vadd.f32 %v2019, %v2034
  %v2040 = vadd.f32 %v2020, %v2036
  %v2041 = vtanh.pop %v2039
  %v2042 = vtanh.pop %v2040
  %2045 = vrot.lane.b32.xlu0 %v2041, 64
  %v2046 = vpop.permute.xlu0 %2045
  %2047 = vrot.lane.b32.xlu0 %v2042, 64
  %v2048 = vpop.permute.xlu0 %2047
  %v2051 = vmul.f32 %v2017, %v2046
  %v2052 = vmul.f32 %v2018, %v2048
  %v2053 = vpack.c.bf16 %v2052, %v2051
  %v2055 = vunpack.c.l.b16 %v1958
  %v2056 = vunpack.c.h.b16 %v1958
  %v2057 = vpack.c.b16 %v2055, %v2055
  %v2058 = vpack.c.b16 %v2056, %v2056
  %2059 = vrot.lane.b32.xlu0 %v2057, 32
  %v2060 = vpop.permute.xlu0 %2059
  %2061 = vrot.lane.b32.xlu0 %v2058, 32
  %v2062 = vpop.permute.xlu0 %2061
  %s2065 = scalar_lea.vmem [#allocation4], 56
  %2066 = vst.msk [vmem:[%s2065] sm:$0xf] %vm526, %v2060
  %2067 = vst.msk [vmem:[%s2065 + $0x4] sm:$0xf] %vm526, %v2062
  %v2069 = vunpack.c.l.b16 %v2053
  %v2070 = vunpack.c.h.b16 %v2053
  %v2071 = vpack.c.b16 %v2069, %v2069
  %v2072 = vpack.c.b16 %v2070, %v2070
  %2073 = vrot.lane.b32.xlu0 %v2071, 32
  %v2074 = vpop.permute.xlu0 %2073
  %2075 = vrot.lane.b32.xlu0 %v2072, 32
  %v2076 = vpop.permute.xlu0 %2075
  %2079 = vst.msk [vmem:[#allocation5] sm:$0xf] %vm526, %v2074
  %2080 = vst.msk [vmem:[#allocation5 + $0x4] sm:$0xf] %vm526, %v2076
  %v2081 = vld [vmem:[#allocation4] sm:$0xf]
  %v2082 = vld [vmem:[#allocation4 + $0x4] sm:$0xf]
  %v2083 = vld [vmem:[#allocation4 + $0x8] sm:$0xf]
  %v2084 = vld [vmem:[#allocation4 + $0xc] sm:$0xf]
  %v2085 = vld [vmem:[#allocation4 + $0x10] sm:$0xf]
  %v2086 = vld [vmem:[#allocation4 + $0x14] sm:$0xf]
  %v2087 = vld [vmem:[#allocation4 + $0x18] sm:$0xf]
  %v2088 = vld [vmem:[#allocation4 + $0x1c] sm:$0xf]
  %v2089 = vld [vmem:[#allocation4 + $0x20] sm:$0xf]
  %v2090 = vld [vmem:[#allocation4 + $0x24] sm:$0xf]
  %v2091 = vld [vmem:[#allocation4 + $0x28] sm:$0xf]
  %v2092 = vld [vmem:[#allocation4 + $0x2c] sm:$0xf]
  %v2093 = vld [vmem:[#allocation4 + $0x30] sm:$0xf]
  %v2094 = vld [vmem:[#allocation4 + $0x34] sm:$0xf]
  %v2095 = vld [vmem:[#allocation4 + $0x38] sm:$0xf]
  %v2096 = vld [vmem:[#allocation4 + $0x3c] sm:$0xf]
  %v2097 = vld [vmem:[#allocation5] sm:$0xf]
  %v2098 = vld [vmem:[#allocation5 + $0x4] sm:$0xf]
  %v2099 = vld [vmem:[#allocation5 + $0x8] sm:$0xf]
  %v2100 = vld [vmem:[#allocation5 + $0xc] sm:$0xf]
  %v2101 = vld [vmem:[#allocation5 + $0x10] sm:$0xf]
  %v2102 = vld [vmem:[#allocation5 + $0x14] sm:$0xf]
  %v2103 = vld [vmem:[#allocation5 + $0x18] sm:$0xf]
  %v2104 = vld [vmem:[#allocation5 + $0x1c] sm:$0xf]
  %v2105 = vld [vmem:[#allocation5 + $0x20] sm:$0xf]
  %v2106 = vld [vmem:[#allocation5 + $0x24] sm:$0xf]
  %v2107 = vld [vmem:[#allocation5 + $0x28] sm:$0xf]
  %v2108 = vld [vmem:[#allocation5 + $0x2c] sm:$0xf]
  %v2109 = vld [vmem:[#allocation5 + $0x30] sm:$0xf]
  %v2110 = vld [vmem:[#allocation5 + $0x34] sm:$0xf]
  %v2111 = vld [vmem:[#allocation5 + $0x38] sm:$0xf]
  %v2112 = vld [vmem:[#allocation5 + $0x3c] sm:$0xf]
  %v2113 = vld [vmem:[%s6] sm:$0x1]
  %s2114 = scalar_lea.vmem %s6, 1
  %v2115 = vld [vmem:[%s2114] sm:$0x1]
  %v2116 = vunpack.c.l.bf16 %v2081
  %v2117 = vunpack.c.l.bf16 %v2082
  %v2118 = vunpack.c.l.bf16 %v2083
  %v2119 = vunpack.c.l.bf16 %v2084
  %v2120 = vunpack.c.l.bf16 %v2085
  %v2121 = vunpack.c.l.bf16 %v2086
  %v2122 = vunpack.c.l.bf16 %v2087
  %v2123 = vunpack.c.l.bf16 %v2088
  %v2124 = vunpack.c.l.bf16 %v2089
  %v2125 = vunpack.c.l.bf16 %v2090
  %v2126 = vunpack.c.l.bf16 %v2091
  %v2127 = vunpack.c.l.bf16 %v2092
  %v2128 = vunpack.c.l.bf16 %v2093
  %v2129 = vunpack.c.l.bf16 %v2094
  %v2130 = vunpack.c.l.bf16 %v2095
  %v2131 = vunpack.c.l.bf16 %v2096
  %v2133 = vlaneseq
  %v2134 = vshrl.u32 %v2133, 7
  %v2135 = vsub.s32 0, %v2134
  %v2136 = vrot.slane %v2113, %v2135
  %v2138 = vmul.f32 %v2116, %v2136
  %v2139 = vmul.f32 %v2117, %v2136
  %v2140 = vmul.f32 %v2118, %v2136
  %v2141 = vmul.f32 %v2119, %v2136
  %v2142 = vmul.f32 %v2120, %v2136
  %v2143 = vmul.f32 %v2121, %v2136
  %v2144 = vmul.f32 %v2122, %v2136
  %v2145 = vmul.f32 %v2123, %v2136
  %v2146 = vmul.f32 %v2124, %v2136
  %v2147 = vmul.f32 %v2125, %v2136
  %v2148 = vmul.f32 %v2126, %v2136
  %v2149 = vmul.f32 %v2127, %v2136
  %v2150 = vmul.f32 %v2128, %v2136
  %v2151 = vmul.f32 %v2129, %v2136
  %v2152 = vmul.f32 %v2130, %v2136
  %v2153 = vmul.f32 %v2131, %v2136
  %v2154 = vsel %vm320, %v2138, 0.0
  %2155 = vadd.xlane.f32.xlu0 %v2154
  %v2156 = vpop.xlane.xlu0 %2155
  %v2157 = vsel %vm320, %v2139, 0.0
  %2158 = vadd.xlane.f32.xlu0 %v2157
  %v2159 = vpop.xlane.xlu0 %2158
  %v2160 = vsel %vm320, %v2140, 0.0
  %2161 = vadd.xlane.f32.xlu0 %v2160
  %v2162 = vpop.xlane.xlu0 %2161
  %v2163 = vsel %vm320, %v2141, 0.0
  %2164 = vadd.xlane.f32.xlu0 %v2163
  %v2165 = vpop.xlane.xlu0 %2164
  %v2166 = vsel %vm320, %v2142, 0.0
  %2167 = vadd.xlane.f32.xlu0 %v2166
  %v2168 = vpop.xlane.xlu0 %2167
  %v2169 = vsel %vm320, %v2143, 0.0
  %2170 = vadd.xlane.f32.xlu0 %v2169
  %v2171 = vpop.xlane.xlu0 %2170
  %v2172 = vsel %vm320, %v2144, 0.0
  %2173 = vadd.xlane.f32.xlu0 %v2172
  %v2174 = vpop.xlane.xlu0 %2173
  %v2175 = vsel %vm320, %v2145, 0.0
  %2176 = vadd.xlane.f32.xlu0 %v2175
  %v2177 = vpop.xlane.xlu0 %2176
  %v2178 = vsel %vm320, %v2146, 0.0
  %2179 = vadd.xlane.f32.xlu0 %v2178
  %v2180 = vpop.xlane.xlu0 %2179
  %v2181 = vsel %vm320, %v2147, 0.0
  %2182 = vadd.xlane.f32.xlu0 %v2181
  %v2183 = vpop.xlane.xlu0 %2182
  %v2184 = vsel %vm320, %v2148, 0.0
  %2185 = vadd.xlane.f32.xlu0 %v2184
  %v2186 = vpop.xlane.xlu0 %2185
  %v2187 = vsel %vm320, %v2149, 0.0
  %2188 = vadd.xlane.f32.xlu0 %v2187
  %v2189 = vpop.xlane.xlu0 %2188
  %v2190 = vsel %vm320, %v2150, 0.0
  %2191 = vadd.xlane.f32.xlu0 %v2190
  %v2192 = vpop.xlane.xlu0 %2191
  %v2193 = vsel %vm320, %v2151, 0.0
  %2194 = vadd.xlane.f32.xlu0 %v2193
  %v2195 = vpop.xlane.xlu0 %2194
  %v2196 = vsel %vm320, %v2152, 0.0
  %2197 = vadd.xlane.f32.xlu0 %v2196
  %v2198 = vpop.xlane.xlu0 %2197
  %v2199 = vsel %vm320, %v2153, 0.0
  %2200 = vadd.xlane.f32.xlu0 %v2199
  %v2201 = vpop.xlane.xlu0 %2200
  %v2202 = vunpack.c.l.bf16 %v2097
  %v2203 = vunpack.c.l.bf16 %v2098
  %v2204 = vunpack.c.l.bf16 %v2099
  %v2205 = vunpack.c.l.bf16 %v2100
  %v2206 = vunpack.c.l.bf16 %v2101
  %v2207 = vunpack.c.l.bf16 %v2102
  %v2208 = vunpack.c.l.bf16 %v2103
  %v2209 = vunpack.c.l.bf16 %v2104
  %v2210 = vunpack.c.l.bf16 %v2105
  %v2211 = vunpack.c.l.bf16 %v2106
  %v2212 = vunpack.c.l.bf16 %v2107
  %v2213 = vunpack.c.l.bf16 %v2108
  %v2214 = vunpack.c.l.bf16 %v2109
  %v2215 = vunpack.c.l.bf16 %v2110
  %v2216 = vunpack.c.l.bf16 %v2111
  %v2217 = vunpack.c.l.bf16 %v2112
  %v2219 = vlaneseq
  %v2220 = vshrl.u32 %v2219, 7
  %v2221 = vsub.s32 0, %v2220
  %v2222 = vrot.slane %v2115, %v2221
  %v2224 = vmul.f32 %v2202, %v2222
  %v2225 = vmul.f32 %v2203, %v2222
  %v2226 = vmul.f32 %v2204, %v2222
  %v2227 = vmul.f32 %v2205, %v2222
  %v2228 = vmul.f32 %v2206, %v2222
  %v2229 = vmul.f32 %v2207, %v2222
  %v2230 = vmul.f32 %v2208, %v2222
  %v2231 = vmul.f32 %v2209, %v2222
  %v2232 = vmul.f32 %v2210, %v2222
  %v2233 = vmul.f32 %v2211, %v2222
  %v2234 = vmul.f32 %v2212, %v2222
  %v2235 = vmul.f32 %v2213, %v2222
  %v2236 = vmul.f32 %v2214, %v2222
  %v2237 = vmul.f32 %v2215, %v2222
  %v2238 = vmul.f32 %v2216, %v2222
  %v2239 = vmul.f32 %v2217, %v2222
  %v2240 = vsel %vm320, %v2224, 0.0
  %2241 = vadd.xlane.f32.xlu0 %v2240
  %v2242 = vpop.xlane.xlu0 %2241
  %v2243 = vsel %vm320, %v2225, 0.0
  %2244 = vadd.xlane.f32.xlu0 %v2243
  %v2245 = vpop.xlane.xlu0 %2244
  %v2246 = vsel %vm320, %v2226, 0.0
  %2247 = vadd.xlane.f32.xlu0 %v2246
  %v2248 = vpop.xlane.xlu0 %2247
  %v2249 = vsel %vm320, %v2227, 0.0
  %2250 = vadd.xlane.f32.xlu0 %v2249
  %v2251 = vpop.xlane.xlu0 %2250
  %v2252 = vsel %vm320, %v2228, 0.0
  %2253 = vadd.xlane.f32.xlu0 %v2252
  %v2254 = vpop.xlane.xlu0 %2253
  %v2255 = vsel %vm320, %v2229, 0.0
  %2256 = vadd.xlane.f32.xlu0 %v2255
  %v2257 = vpop.xlane.xlu0 %2256
  %v2258 = vsel %vm320, %v2230, 0.0
  %2259 = vadd.xlane.f32.xlu0 %v2258
  %v2260 = vpop.xlane.xlu0 %2259
  %v2261 = vsel %vm320, %v2231, 0.0
  %2262 = vadd.xlane.f32.xlu0 %v2261
  %v2263 = vpop.xlane.xlu0 %2262
  %v2264 = vsel %vm320, %v2232, 0.0
  %2265 = vadd.xlane.f32.xlu0 %v2264
  %v2266 = vpop.xlane.xlu0 %2265
  %v2267 = vsel %vm320, %v2233, 0.0
  %2268 = vadd.xlane.f32.xlu0 %v2267
  %v2269 = vpop.xlane.xlu0 %2268
  %v2270 = vsel %vm320, %v2234, 0.0
  %2271 = vadd.xlane.f32.xlu0 %v2270
  %v2272 = vpop.xlane.xlu0 %2271
  %v2273 = vsel %vm320, %v2235, 0.0
  %2274 = vadd.xlane.f32.xlu0 %v2273
  %v2275 = vpop.xlane.xlu0 %2274
  %v2276 = vsel %vm320, %v2236, 0.0
  %2277 = vadd.xlane.f32.xlu0 %v2276
  %v2278 = vpop.xlane.xlu0 %2277
  %v2279 = vsel %vm320, %v2237, 0.0
  %2280 = vadd.xlane.f32.xlu0 %v2279
  %v2281 = vpop.xlane.xlu0 %2280
  %v2282 = vsel %vm320, %v2238, 0.0
  %2283 = vadd.xlane.f32.xlu0 %v2282
  %v2284 = vpop.xlane.xlu0 %2283
  %v2285 = vsel %vm320, %v2239, 0.0
  %2286 = vadd.xlane.f32.xlu0 %v2285
  %v2287 = vpop.xlane.xlu0 %2286
  %v2288 = vadd.f32 %v2156, %v2242
  %v2289 = vadd.f32 %v2159, %v2245
  %v2290 = vadd.f32 %v2162, %v2248
  %v2291 = vadd.f32 %v2165, %v2251
  %v2292 = vadd.f32 %v2168, %v2254
  %v2293 = vadd.f32 %v2171, %v2257
  %v2294 = vadd.f32 %v2174, %v2260
  %v2295 = vadd.f32 %v2177, %v2263
  %v2296 = vadd.f32 %v2180, %v2266
  %v2297 = vadd.f32 %v2183, %v2269
  %v2298 = vadd.f32 %v2186, %v2272
  %v2299 = vadd.f32 %v2189, %v2275
  %v2300 = vadd.f32 %v2192, %v2278
  %v2301 = vadd.f32 %v2195, %v2281
  %v2302 = vadd.f32 %v2198, %v2284
  %v2303 = vadd.f32 %v2201, %v2287
  %s2304 = sld [smem:[#allocation6]]
  %v2305 = vstv %s2304
  %v2306 = vadd.f32 %v2288, %v2305
  %v2307 = vadd.f32 %v2289, %v2305
  %v2308 = vadd.f32 %v2290, %v2305
  %v2309 = vadd.f32 %v2291, %v2305
  %v2310 = vadd.f32 %v2292, %v2305
  %v2311 = vadd.f32 %v2293, %v2305
  %v2312 = vadd.f32 %v2294, %v2305
  %v2313 = vadd.f32 %v2295, %v2305
  %v2314 = vadd.f32 %v2296, %v2305
  %v2315 = vadd.f32 %v2297, %v2305
  %v2316 = vadd.f32 %v2298, %v2305
  %v2317 = vadd.f32 %v2299, %v2305
  %v2318 = vadd.f32 %v2300, %v2305
  %v2319 = vadd.f32 %v2301, %v2305
  %v2320 = vadd.f32 %v2302, %v2305
  %v2321 = vadd.f32 %v2303, %v2305
  %v2322 = vmax.f32 %v2306, %v2310
  %v2323 = vmax.f32 %v2308, %v2312
  %v2324 = vmax.f32 %v2322, %v2314
  %v2325 = vmax.f32 %v2323, %v2316
  %v2326 = vmax.f32 %v2324, %v2318
  %v2327 = vmax.f32 %v2325, %v2320
  %v2328 = vmax.f32 %v2326, %v2327
  %v2329 = vmax.f32 %v2307, %v2311
  %v2330 = vmax.f32 %v2309, %v2313
  %v2331 = vmax.f32 %v2329, %v2315
  %v2332 = vmax.f32 %v2330, %v2317
  %v2333 = vmax.f32 %v2331, %v2319
  %v2334 = vmax.f32 %v2332, %v2321
  %v2335 = vmax.f32 %v2333, %v2334
  %v2336 = vsub.f32 %v2306, %v2328
  %v2337 = vsub.f32 %v2307, %v2335
  %v2338 = vsub.f32 %v2308, %v2328
  %v2339 = vsub.f32 %v2309, %v2335
  %v2340 = vsub.f32 %v2310, %v2328
  %v2341 = vsub.f32 %v2311, %v2335
  %v2342 = vsub.f32 %v2312, %v2328
  %v2343 = vsub.f32 %v2313, %v2335
  %v2344 = vsub.f32 %v2314, %v2328
  %v2345 = vsub.f32 %v2315, %v2335
  %v2346 = vsub.f32 %v2316, %v2328
  %v2347 = vsub.f32 %v2317, %v2335
  %v2348 = vsub.f32 %v2318, %v2328
  %v2349 = vsub.f32 %v2319, %v2335
  %v2350 = vsub.f32 %v2320, %v2328
  %v2351 = vsub.f32 %v2321, %v2335
  %v2352 = vmul.f32 %v2336, 1.442695
  %v2353 = vpow.pop %v2352
  %v2354 = vmul.f32 %v2337, 1.442695
  %v2355 = vpow.pop %v2354
  %v2356 = vmul.f32 %v2338, 1.442695
  %v2357 = vpow.pop %v2356
  %v2358 = vmul.f32 %v2339, 1.442695
  %v2359 = vpow.pop %v2358
  %v2360 = vmul.f32 %v2340, 1.442695
  %v2361 = vpow.pop %v2360
  %v2362 = vmul.f32 %v2341, 1.442695
  %v2363 = vpow.pop %v2362
  %v2364 = vmul.f32 %v2342, 1.442695
  %v2365 = vpow.pop %v2364
  %v2366 = vmul.f32 %v2343, 1.442695
  %v2367 = vpow.pop %v2366
  %v2368 = vmul.f32 %v2344, 1.442695
  %v2369 = vpow.pop %v2368
  %v2370 = vmul.f32 %v2345, 1.442695
  %v2371 = vpow.pop %v2370
  %v2372 = vmul.f32 %v2346, 1.442695
  %v2373 = vpow.pop %v2372
  %v2374 = vmul.f32 %v2347, 1.442695
  %v2375 = vpow.pop %v2374
  %v2376 = vmul.f32 %v2348, 1.442695
  %v2377 = vpow.pop %v2376
  %v2378 = vmul.f32 %v2349, 1.442695
  %v2379 = vpow.pop %v2378
  %v2380 = vmul.f32 %v2350, 1.442695
  %v2381 = vpow.pop %v2380
  %v2382 = vmul.f32 %v2351, 1.442695
  %v2383 = vpow.pop %v2382
  %v2384 = vadd.f32 %v2353, %v2357
  %v2385 = vadd.f32 %v2384, %v2361
  %v2386 = vadd.f32 %v2385, %v2365
  %v2387 = vadd.f32 %v2386, %v2369
  %v2388 = vadd.f32 %v2387, %v2373
  %v2389 = vadd.f32 %v2388, %v2377
  %v2390 = vadd.f32 %v2389, %v2381
  %v2391 = vadd.f32 %v2355, %v2359
  %v2392 = vadd.f32 %v2391, %v2363
  %v2393 = vadd.f32 %v2392, %v2367
  %v2394 = vadd.f32 %v2393, %v2371
  %v2395 = vadd.f32 %v2394, %v2375
  %v2396 = vadd.f32 %v2395, %v2379
  %v2397 = vadd.f32 %v2396, %v2383
  %v2398 = vrcp.pop %v2390
  %v2399 = vrcp.pop %v2397
  %v2400 = vmul.f32 %v2353, %v2398
  %v2401 = vmul.f32 %v2355, %v2399
  %v2402 = vmul.f32 %v2357, %v2398
  %v2403 = vmul.f32 %v2359, %v2399
  %v2404 = vmul.f32 %v2361, %v2398
  %v2405 = vmul.f32 %v2363, %v2399
  %v2406 = vmul.f32 %v2365, %v2398
  %v2407 = vmul.f32 %v2367, %v2399
  %v2408 = vmul.f32 %v2369, %v2398
  %v2409 = vmul.f32 %v2371, %v2399
  %v2410 = vmul.f32 %v2373, %v2398
  %v2411 = vmul.f32 %v2375, %v2399
  %v2412 = vmul.f32 %v2377, %v2398
  %v2413 = vmul.f32 %v2379, %v2399
  %v2414 = vmul.f32 %v2381, %v2398
  %v2415 = vmul.f32 %v2383, %v2399
  %v2416 = vld [vmem:[%s1] sm:$0xff]
  %v2417 = vld [vmem:[%s1 + $0x8] sm:$0xff]
  %v2418 = vld [vmem:[%s1 + $0x10] sm:$0xff]
  %v2419 = vld [vmem:[%s1 + $0x18] sm:$0xff]
  %v2420 = vld [vmem:[%s1 + $0x20] sm:$0xff]
  %v2421 = vld [vmem:[%s1 + $0x28] sm:$0xff]
  %v2422 = vld [vmem:[%s1 + $0x30] sm:$0xff]
  %v2423 = vld [vmem:[%s1 + $0x38] sm:$0xff]
  %v2424 = vld [vmem:[%s1 + $0x40] sm:$0xff]
  %v2425 = vld [vmem:[%s1 + $0x48] sm:$0xff]
  %v2426 = vld [vmem:[%s1 + $0x50] sm:$0xff]
  %v2427 = vld [vmem:[%s1 + $0x58] sm:$0xff]
  %v2428 = vld [vmem:[%s1 + $0x60] sm:$0xff]
  %v2429 = vld [vmem:[%s1 + $0x68] sm:$0xff]
  %v2430 = vld [vmem:[%s1 + $0x70] sm:$0xff]
  %v2431 = vld [vmem:[%s1 + $0x78] sm:$0xff]
  %v2432 = vsub.f32 1.0, %v2416
  %v2433 = vsub.f32 1.0, %v2417
  %v2434 = vsub.f32 1.0, %v2418
  %v2435 = vsub.f32 1.0, %v2419
  %v2436 = vsub.f32 1.0, %v2420
  %v2437 = vsub.f32 1.0, %v2421
  %v2438 = vsub.f32 1.0, %v2422
  %v2439 = vsub.f32 1.0, %v2423
  %v2440 = vsub.f32 1.0, %v2424
  %v2441 = vsub.f32 1.0, %v2425
  %v2442 = vsub.f32 1.0, %v2426
  %v2443 = vsub.f32 1.0, %v2427
  %v2444 = vsub.f32 1.0, %v2428
  %v2445 = vsub.f32 1.0, %v2429
  %v2446 = vsub.f32 1.0, %v2430
  %v2447 = vsub.f32 1.0, %v2431
  %v2448 = vmul.f32 %v2432, %v2400
  %v2449 = vmul.f32 %v2433, %v2401
  %v2450 = vmul.f32 %v2434, %v2402
  %v2451 = vmul.f32 %v2435, %v2403
  %v2452 = vmul.f32 %v2436, %v2404
  %v2453 = vmul.f32 %v2437, %v2405
  %v2454 = vmul.f32 %v2438, %v2406
  %v2455 = vmul.f32 %v2439, %v2407
  %v2456 = vmul.f32 %v2440, %v2408
  %v2457 = vmul.f32 %v2441, %v2409
  %v2458 = vmul.f32 %v2442, %v2410
  %v2459 = vmul.f32 %v2443, %v2411
  %v2460 = vmul.f32 %v2444, %v2412
  %v2461 = vmul.f32 %v2445, %v2413
  %v2462 = vmul.f32 %v2446, %v2414
  %v2463 = vmul.f32 %v2447, %v2415
  %v2464 = vadd.f32 %v2448, 0.0
  %v2465 = vadd.f32 %v2449, 0.0
  %v2466 = vadd.f32 %v2450, 0.0
  %v2467 = vadd.f32 %v2451, 0.0
  %v2468 = vadd.f32 %v2452, 0.0
  %v2469 = vadd.f32 %v2453, 0.0
  %v2470 = vadd.f32 %v2454, 0.0
  %v2471 = vadd.f32 %v2455, 0.0
  %v2472 = vadd.f32 %v2456, 0.0
  %v2473 = vadd.f32 %v2457, 0.0
  %v2474 = vadd.f32 %v2458, 0.0
  %v2475 = vadd.f32 %v2459, 0.0
  %v2476 = vadd.f32 %v2460, 0.0
  %v2477 = vadd.f32 %v2461, 0.0
  %v2478 = vadd.f32 %v2462, 0.0
  %v2479 = vadd.f32 %v2463, 0.0
  %2496 = vset.pattern.permute.xlu0 0
  %2497 = vperm.xlu0 %2496, %v2464
  %v2498 = vpop.permute.xlu0 %2497
  %2499 = vset.pattern.permute.xlu0 0
  %2500 = vperm.xlu0 %2499, %v2465
  %v2501 = vpop.permute.xlu0 %2500
  %2502 = vset.pattern.permute.xlu0 0
  %2503 = vperm.xlu0 %2502, %v2466
  %v2504 = vpop.permute.xlu0 %2503
  %2505 = vset.pattern.permute.xlu0 0
  %2506 = vperm.xlu0 %2505, %v2467
  %v2507 = vpop.permute.xlu0 %2506
  %2508 = vset.pattern.permute.xlu0 0
  %2509 = vperm.xlu0 %2508, %v2468
  %v2510 = vpop.permute.xlu0 %2509
  %2511 = vset.pattern.permute.xlu0 0
  %2512 = vperm.xlu0 %2511, %v2469
  %v2513 = vpop.permute.xlu0 %2512
  %2514 = vset.pattern.permute.xlu0 0
  %2515 = vperm.xlu0 %2514, %v2470
  %v2516 = vpop.permute.xlu0 %2515
  %2517 = vset.pattern.permute.xlu0 0
  %2518 = vperm.xlu0 %2517, %v2471
  %v2519 = vpop.permute.xlu0 %2518
  %2520 = vset.pattern.permute.xlu0 0
  %2521 = vperm.xlu0 %2520, %v2472
  %v2522 = vpop.permute.xlu0 %2521
  %2523 = vset.pattern.permute.xlu0 0
  %2524 = vperm.xlu0 %2523, %v2473
  %v2525 = vpop.permute.xlu0 %2524
  %2526 = vset.pattern.permute.xlu0 0
  %2527 = vperm.xlu0 %2526, %v2474
  %v2528 = vpop.permute.xlu0 %2527
  %2529 = vset.pattern.permute.xlu0 0
  %2530 = vperm.xlu0 %2529, %v2475
  %v2531 = vpop.permute.xlu0 %2530
  %2532 = vset.pattern.permute.xlu0 0
  %2533 = vperm.xlu0 %2532, %v2476
  %v2534 = vpop.permute.xlu0 %2533
  %2535 = vset.pattern.permute.xlu0 0
  %2536 = vperm.xlu0 %2535, %v2477
  %v2537 = vpop.permute.xlu0 %2536
  %2538 = vset.pattern.permute.xlu0 0
  %2539 = vperm.xlu0 %2538, %v2478
  %v2540 = vpop.permute.xlu0 %2539
  %2541 = vset.pattern.permute.xlu0 0
  %2542 = vperm.xlu0 %2541, %v2479
  %v2543 = vpop.permute.xlu0 %2542
  %v2544 = vlaneseq
  %v2545 = vshrl.u32 %v2544, 7
  %v2546 = vsub.s32 %v301, %v2545
  %v2547 = vrot.slane %v2498, %v2546
  %v2548 = vadd.s32 %v301, 4294967288
  %v2549 = vlaneseq
  %v2550 = vshrl.u32 %v2549, 7
  %v2551 = vsub.s32 %v2548, %v2550
  %v2552 = vrot.slane %v2501, %v2551
  %vm2553 = vcmask 130112
  %v2554 = vsel %vm2553, %v2552, %v2547
  %v2555 = vlaneseq
  %v2556 = vshrl.u32 %v2555, 7
  %v2557 = vsub.s32 %v301, %v2556
  %v2558 = vrot.slane %v2504, %v2557
  %v2559 = vlaneseq
  %v2560 = vshrl.u32 %v2559, 7
  %v2561 = vsub.s32 %v2548, %v2560
  %v2562 = vrot.slane %v2507, %v2561
  %v2563 = vsel %vm2553, %v2562, %v2558
  %v2564 = vlaneseq
  %v2565 = vshrl.u32 %v2564, 7
  %v2566 = vsub.s32 %v301, %v2565
  %v2567 = vrot.slane %v2510, %v2566
  %v2568 = vlaneseq
  %v2569 = vshrl.u32 %v2568, 7
  %v2570 = vsub.s32 %v2548, %v2569
  %v2571 = vrot.slane %v2513, %v2570
  %v2572 = vsel %vm2553, %v2571, %v2567
  %v2573 = vlaneseq
  %v2574 = vshrl.u32 %v2573, 7
  %v2575 = vsub.s32 %v301, %v2574
  %v2576 = vrot.slane %v2516, %v2575
  %v2577 = vlaneseq
  %v2578 = vshrl.u32 %v2577, 7
  %v2579 = vsub.s32 %v2548, %v2578
  %v2580 = vrot.slane %v2519, %v2579
  %v2581 = vsel %vm2553, %v2580, %v2576
  %v2582 = vlaneseq
  %v2583 = vshrl.u32 %v2582, 7
  %v2584 = vsub.s32 %v301, %v2583
  %v2585 = vrot.slane %v2522, %v2584
  %v2586 = vlaneseq
  %v2587 = vshrl.u32 %v2586, 7
  %v2588 = vsub.s32 %v2548, %v2587
  %v2589 = vrot.slane %v2525, %v2588
  %v2590 = vsel %vm2553, %v2589, %v2585
  %v2591 = vlaneseq
  %v2592 = vshrl.u32 %v2591, 7
  %v2593 = vsub.s32 %v301, %v2592
  %v2594 = vrot.slane %v2528, %v2593
  %v2595 = vlaneseq
  %v2596 = vshrl.u32 %v2595, 7
  %v2597 = vsub.s32 %v2548, %v2596
  %v2598 = vrot.slane %v2531, %v2597
  %v2599 = vsel %vm2553, %v2598, %v2594
  %v2600 = vlaneseq
  %v2601 = vshrl.u32 %v2600, 7
  %v2602 = vsub.s32 %v301, %v2601
  %v2603 = vrot.slane %v2534, %v2602
  %v2604 = vlaneseq
  %v2605 = vshrl.u32 %v2604, 7
  %v2606 = vsub.s32 %v2548, %v2605
  %v2607 = vrot.slane %v2537, %v2606
  %v2608 = vsel %vm2553, %v2607, %v2603
  %v2609 = vlaneseq
  %v2610 = vshrl.u32 %v2609, 7
  %v2611 = vsub.s32 %v301, %v2610
  %v2612 = vrot.slane %v2540, %v2611
  %v2613 = vlaneseq
  %v2614 = vshrl.u32 %v2613, 7
  %v2615 = vsub.s32 %v2548, %v2614
  %v2616 = vrot.slane %v2543, %v2615
  %v2617 = vsel %vm2553, %v2616, %v2612
  %vm2618 = vcmask 1041409
  %v2619 = vsel %vm2618, %v2563, %v2554
  %vm2620 = vcmask 1042434
  %v2621 = vsel %vm2620, %v2572, %v2619
  %vm2622 = vcmask 1043459
  %v2623 = vsel %vm2622, %v2581, %v2621
  %vm2624 = vcmask 1044484
  %v2625 = vsel %vm2624, %v2590, %v2623
  %vm2626 = vcmask 1045509
  %v2627 = vsel %vm2626, %v2599, %v2625
  %vm2628 = vcmask 1046534
  %v2629 = vsel %vm2628, %v2608, %v2627
  %vm2630 = vcmask 1047559
  %v2631 = vsel %vm2630, %v2617, %v2629
  %2633 = vxpose.xlu0.b32.start [1/16] %v2631, 128
  %2634 = vxpose.xlu0.b32.cont [2/16] 0.0, 128
  %2635 = vxpose.xlu0.b32.cont [3/16] 0.0, 128
  %2636 = vxpose.xlu0.b32.cont [4/16] 0.0, 128
  %2637 = vxpose.xlu0.b32.cont [5/16] 0.0, 128
  %2638 = vxpose.xlu0.b32.cont [6/16] 0.0, 128
  %2639 = vxpose.xlu0.b32.cont [7/16] 0.0, 128
  %2640 = vxpose.xlu0.b32.cont [8/16] 0.0, 128
  %2641 = vxpose.xlu0.b32.cont [9/16] 0.0, 128
  %2642 = vxpose.xlu0.b32.cont [10/16] 0.0, 128
  %2643 = vxpose.xlu0.b32.cont [11/16] 0.0, 128
  %2644 = vxpose.xlu0.b32.cont [12/16] 0.0, 128
  %2645 = vxpose.xlu0.b32.cont [13/16] 0.0, 128
  %2646 = vxpose.xlu0.b32.cont [14/16] 0.0, 128
  %2647 = vxpose.xlu0.b32.cont [15/16] 0.0, 128
  %2648 = vxpose.xlu0.b32.end [16/16] 0.0, 128
  %v2649 = vpop.trf.xlu0
  %v2650 = vpop.trf.xlu0
  %v2651 = vpop.trf.xlu0
  %v2652 = vpop.trf.xlu0
  %v2653 = vpop.trf.xlu0
  %v2654 = vpop.trf.xlu0
  %v2655 = vpop.trf.xlu0
  %v2656 = vpop.trf.xlu0
  %v2657 = vpop.trf.xlu0
  %v2658 = vpop.trf.xlu0
  %v2659 = vpop.trf.xlu0
  %v2660 = vpop.trf.xlu0
  %v2661 = vpop.trf.xlu0
  %v2662 = vpop.trf.xlu0
  %v2663 = vpop.trf.xlu0
  %v2664 = vpop.trf.xlu0
  %vm2665 = vcmask 64512
  %2666 = vst.msk [vmem:[%s12] sm:$0xff] %vm2665, %v2649
  %2667 = vst.msk [vmem:[%s12 + $0x8] sm:$0xff] %vm2665, %v2650
  %2669 = vset.pattern.permute.xlu0 0
  %2670 = vperm.xlu0 %2669, %v2448
  %v2671 = vpop.permute.xlu0 %2670
  %2674 = vset.pattern.permute.xlu0 0
  %2675 = vperm.xlu0 %2674, %v2449
  %v2676 = vpop.permute.xlu0 %2675
  %2679 = vset.pattern.permute.xlu0 0
  %2680 = vperm.xlu0 %2679, %v2450
  %v2681 = vpop.permute.xlu0 %2680
  %2684 = vset.pattern.permute.xlu0 0
  %2685 = vperm.xlu0 %2684, %v2451
  %v2686 = vpop.permute.xlu0 %2685
  %2689 = vset.pattern.permute.xlu0 0
  %2690 = vperm.xlu0 %2689, %v2452
  %v2691 = vpop.permute.xlu0 %2690
  %2694 = vset.pattern.permute.xlu0 0
  %2695 = vperm.xlu0 %2694, %v2453
  %v2696 = vpop.permute.xlu0 %2695
  %2699 = vset.pattern.permute.xlu0 0
  %2700 = vperm.xlu0 %2699, %v2454
  %v2701 = vpop.permute.xlu0 %2700
  %2704 = vset.pattern.permute.xlu0 0
  %2705 = vperm.xlu0 %2704, %v2455
  %v2706 = vpop.permute.xlu0 %2705
  %2709 = vset.pattern.permute.xlu0 0
  %2710 = vperm.xlu0 %2709, %v2456
  %v2711 = vpop.permute.xlu0 %2710
  %2714 = vset.pattern.permute.xlu0 0
  %2715 = vperm.xlu0 %2714, %v2457
  %v2716 = vpop.permute.xlu0 %2715
  %2719 = vset.pattern.permute.xlu0 0
  %2720 = vperm.xlu0 %2719, %v2458
  %v2721 = vpop.permute.xlu0 %2720
  %2724 = vset.pattern.permute.xlu0 0
  %2725 = vperm.xlu0 %2724, %v2459
  %v2726 = vpop.permute.xlu0 %2725
  %2729 = vset.pattern.permute.xlu0 0
  %2730 = vperm.xlu0 %2729, %v2460
  %v2731 = vpop.permute.xlu0 %2730
  %2734 = vset.pattern.permute.xlu0 0
  %2735 = vperm.xlu0 %2734, %v2461
  %v2736 = vpop.permute.xlu0 %2735
  %2739 = vset.pattern.permute.xlu0 0
  %2740 = vperm.xlu0 %2739, %v2462
  %v2741 = vpop.permute.xlu0 %2740
  %2744 = vset.pattern.permute.xlu0 0
  %2745 = vperm.xlu0 %2744, %v2463
  %v2746 = vpop.permute.xlu0 %2745
  %v2748 = vmul.f32 %v2671, %v2116
  %v2749 = vmul.f32 %v2676, %v2117
  %v2750 = vmul.f32 %v2681, %v2118
  %v2751 = vmul.f32 %v2686, %v2119
  %v2752 = vmul.f32 %v2691, %v2120
  %v2753 = vmul.f32 %v2696, %v2121
  %v2754 = vmul.f32 %v2701, %v2122
  %v2755 = vmul.f32 %v2706, %v2123
  %v2756 = vmul.f32 %v2711, %v2124
  %v2757 = vmul.f32 %v2716, %v2125
  %v2758 = vmul.f32 %v2721, %v2126
  %v2759 = vmul.f32 %v2726, %v2127
  %v2760 = vmul.f32 %v2731, %v2128
  %v2761 = vmul.f32 %v2736, %v2129
  %v2762 = vmul.f32 %v2741, %v2130
  %v2763 = vmul.f32 %v2746, %v2131
  %v2764 = vsel %vm320, %v2748, 0.0
  %v2765 = vsel %vm320, %v2750, 0.0
  %v2766 = vadd.f32 %v2764, %v2765
  %v2767 = vsel %vm320, %v2752, 0.0
  %v2768 = vadd.f32 %v2766, %v2767
  %v2769 = vsel %vm320, %v2754, 0.0
  %v2770 = vadd.f32 %v2768, %v2769
  %v2771 = vsel %vm320, %v2756, 0.0
  %v2772 = vadd.f32 %v2770, %v2771
  %v2773 = vsel %vm320, %v2758, 0.0
  %v2774 = vadd.f32 %v2772, %v2773
  %v2775 = vsel %vm320, %v2760, 0.0
  %v2776 = vadd.f32 %v2774, %v2775
  %v2777 = vsel %vm320, %v2762, 0.0
  %v2778 = vadd.f32 %v2776, %v2777
  %v2779 = vsel %vm320, %v2749, 0.0
  %v2780 = vsel %vm320, %v2751, 0.0
  %v2781 = vadd.f32 %v2779, %v2780
  %v2782 = vsel %vm320, %v2753, 0.0
  %v2783 = vadd.f32 %v2781, %v2782
  %v2784 = vsel %vm320, %v2755, 0.0
  %v2785 = vadd.f32 %v2783, %v2784
  %v2786 = vsel %vm320, %v2757, 0.0
  %v2787 = vadd.f32 %v2785, %v2786
  %v2788 = vsel %vm320, %v2759, 0.0
  %v2789 = vadd.f32 %v2787, %v2788
  %v2790 = vsel %vm320, %v2761, 0.0
  %v2791 = vadd.f32 %v2789, %v2790
  %v2792 = vsel %vm320, %v2763, 0.0
  %v2793 = vadd.f32 %v2791, %v2792
  %v2794 = vmul.f32 %v2671, %v2202
  %v2795 = vmul.f32 %v2676, %v2203
  %v2796 = vmul.f32 %v2681, %v2204
  %v2797 = vmul.f32 %v2686, %v2205
  %v2798 = vmul.f32 %v2691, %v2206
  %v2799 = vmul.f32 %v2696, %v2207
  %v2800 = vmul.f32 %v2701, %v2208
  %v2801 = vmul.f32 %v2706, %v2209
  %v2802 = vmul.f32 %v2711, %v2210
  %v2803 = vmul.f32 %v2716, %v2211
  %v2804 = vmul.f32 %v2721, %v2212
  %v2805 = vmul.f32 %v2726, %v2213
  %v2806 = vmul.f32 %v2731, %v2214
  %v2807 = vmul.f32 %v2736, %v2215
  %v2808 = vmul.f32 %v2741, %v2216
  %v2809 = vmul.f32 %v2746, %v2217
  %v2810 = vsel %vm320, %v2794, 0.0
  %v2811 = vsel %vm320, %v2796, 0.0
  %v2812 = vadd.f32 %v2810, %v2811
  %v2813 = vsel %vm320, %v2798, 0.0
  %v2814 = vadd.f32 %v2812, %v2813
  %v2815 = vsel %vm320, %v2800, 0.0
  %v2816 = vadd.f32 %v2814, %v2815
  %v2817 = vsel %vm320, %v2802, 0.0
  %v2818 = vadd.f32 %v2816, %v2817
  %v2819 = vsel %vm320, %v2804, 0.0
  %v2820 = vadd.f32 %v2818, %v2819
  %v2821 = vsel %vm320, %v2806, 0.0
  %v2822 = vadd.f32 %v2820, %v2821
  %v2823 = vsel %vm320, %v2808, 0.0
  %v2824 = vadd.f32 %v2822, %v2823
  %v2825 = vsel %vm320, %v2795, 0.0
  %v2826 = vsel %vm320, %v2797, 0.0
  %v2827 = vadd.f32 %v2825, %v2826
  %v2828 = vsel %vm320, %v2799, 0.0
  %v2829 = vadd.f32 %v2827, %v2828
  %v2830 = vsel %vm320, %v2801, 0.0
  %v2831 = vadd.f32 %v2829, %v2830
  %v2832 = vsel %vm320, %v2803, 0.0
  %v2833 = vadd.f32 %v2831, %v2832
  %v2834 = vsel %vm320, %v2805, 0.0
  %v2835 = vadd.f32 %v2833, %v2834
  %v2836 = vsel %vm320, %v2807, 0.0
  %v2837 = vadd.f32 %v2835, %v2836
  %v2838 = vsel %vm320, %v2809, 0.0
  %v2839 = vadd.f32 %v2837, %v2838
  %v2840 = vld [vmem:[%s8] sm:$0xff]
  %v2841 = vld [vmem:[%s8 + $0x8] sm:$0xff]
  %v2842 = vld [vmem:[%s8 + $0x10] sm:$0xff]
  %v2843 = vld [vmem:[%s8 + $0x18] sm:$0xff]
  %v2844 = vld [vmem:[%s9] sm:$0xff]
  %v2845 = vld [vmem:[%s9 + $0x8] sm:$0xff]
  %v2846 = vld [vmem:[%s9 + $0x10] sm:$0xff]
  %v2847 = vld [vmem:[%s9 + $0x18] sm:$0xff]
  %v2849 = vsel %vm320, %v2824, 0
  %v2852 = vsel %vm320, %v2839, 0
  %2854 = vmatprep.subr.mxu0 0.0
  %2855 = vmatpush1.msra.mxu0 0.0
  %2856 = vmatprep.subr.mxu0 0.0
  %2857 = vmatpush1.msra.mxu0 0.0
  %2858 = vmatprep.subr.mxu0 0.0
  %2859 = vmatpush1.msra.mxu0 0.0
  %2860 = vmatprep.subr.mxu0 0.0
  %2861 = vmatpush1.msra.mxu0 0.0
  %2862 = vmatprep.subr.mxu0 0.0
  %2863 = vmatpush1.msra.mxu0 0.0
  %2864 = vmatprep.subr.mxu0 0.0
  %2865 = vmatpush1.msra.mxu0 0.0
  %2866 = vmatprep.subr.mxu0 0.0
  %2867 = vmatpush1.msra.mxu0 0.0
  %2868 = vmatprep.subr.mxu0 0.0
  %2869 = vmatpush1.msra.mxu0 0.0
  %2870 = vmatprep.subr.mxu0 0.0
  %2871 = vmatpush1.msra.mxu0 0.0
  %2872 = vmatprep.subr.mxu0 0.0
  %2873 = vmatpush1.msra.mxu0 0.0
  %2874 = vmatprep.subr.mxu0 0.0
  %2875 = vmatpush1.msra.mxu0 0.0
  %2876 = vmatprep.subr.mxu0 0.0
  %2877 = vmatpush1.msra.mxu0 0.0
  %2878 = vmatprep.subr.mxu0 0.0
  %2879 = vmatpush1.msra.mxu0 %v2847
  %2880 = vmatprep.subr.mxu0 0.0
  %2881 = vmatpush1.msra.mxu0 %v2846
  %2882 = vmatprep.subr.mxu0 0.0
  %2883 = vmatpush1.msra.mxu0 %v2845
  %2884 = vmatprep.subr.mxu0 0.0
  %2885 = vmatpush1.msra.mxu0 %v2844
  %2886 = vmatprep.subr.mxu0 0.0
  %2887 = vmatpush2.msra.mxu0 0.0
  %2888 = vmatprep.subr.mxu0 0.0
  %2889 = vmatpush2.msra.mxu0 0.0
  %2890 = vmatprep.subr.mxu0 0.0
  %2891 = vmatpush2.msra.mxu0 0.0
  %2892 = vmatprep.subr.mxu0 0.0
  %2893 = vmatpush2.msra.mxu0 0.0
  %2894 = vmatprep.subr.mxu0 0.0
  %2895 = vmatpush2.msra.mxu0 0.0
  %2896 = vmatprep.subr.mxu0 0.0
  %2897 = vmatpush2.msra.mxu0 0.0
  %2898 = vmatprep.subr.mxu0 0.0
  %2899 = vmatpush2.msra.mxu0 0.0
  %2900 = vmatprep.subr.mxu0 0.0
  %2901 = vmatpush2.msra.mxu0 0.0
  %2902 = vmatprep.subr.mxu0 0.0
  %2903 = vmatpush2.msra.mxu0 0.0
  %2904 = vmatprep.subr.mxu0 0.0
  %2905 = vmatpush2.msra.mxu0 0.0
  %2906 = vmatprep.subr.mxu0 0.0
  %2907 = vmatpush2.msra.mxu0 0.0
  %2908 = vmatprep.subr.mxu0 0.0
  %2909 = vmatpush2.msra.mxu0 0.0
  %2910 = vmatprep.subr.mxu0 0.0
  %2911 = vmatpush2.msra.mxu0 0.0
  %2912 = vmatprep.subr.mxu0 0.0
  %2913 = vmatpush2.msra.mxu0 0.0
  %2914 = vmatprep.subr.mxu0 0.0
  %2915 = vmatpush2.msra.mxu0 0.0
  %2916 = vmatprep.subr.mxu0 0.0
  %2917 = vmatpush2.msra.mxu0 0.0
  %2918 = vmatprep.mubr.f32.mxu0 0.0
  %2919 = vmatmul.mubr.f32.gmra.mxu0 %v2849
  %v2920 = vpop.f32.mrf.mxu0
  %v2921 = vadd.f32 0.0, %v2920
  %v2922 = vpop.f32.mrf.mxu0
  %2923 = vmatprep.mubr.f32.mxu0 0.0
  %2924 = vmatmul.mubr.f32.gmra.mxu0 %v2852
  %v2925 = vpop.f32.mrf.mxu0
  %v2926 = vadd.f32 0.0, %v2925
  %v2927 = vpop.f32.mrf.mxu0
  %2928 = vdwg.mxu0
  %v2930 = vsel %vm320, %v2778, 0
  %v2933 = vsel %vm320, %v2793, 0
  %2935 = vmatprep.subr.mxu0 0.0
  %2936 = vmatpush1.msra.mxu0 0.0
  %2937 = vmatprep.subr.mxu0 0.0
  %2938 = vmatpush1.msra.mxu0 0.0
  %2939 = vmatprep.subr.mxu0 0.0
  %2940 = vmatpush1.msra.mxu0 0.0
  %2941 = vmatprep.subr.mxu0 0.0
  %2942 = vmatpush1.msra.mxu0 0.0
  %2943 = vmatprep.subr.mxu0 0.0
  %2944 = vmatpush1.msra.mxu0 0.0
  %2945 = vmatprep.subr.mxu0 0.0
  %2946 = vmatpush1.msra.mxu0 0.0
  %2947 = vmatprep.subr.mxu0 0.0
  %2948 = vmatpush1.msra.mxu0 0.0
  %2949 = vmatprep.subr.mxu0 0.0
  %2950 = vmatpush1.msra.mxu0 0.0
  %2951 = vmatprep.subr.mxu0 0.0
  %2952 = vmatpush1.msra.mxu0 0.0
  %2953 = vmatprep.subr.mxu0 0.0
  %2954 = vmatpush1.msra.mxu0 0.0
  %2955 = vmatprep.subr.mxu0 0.0
  %2956 = vmatpush1.msra.mxu0 0.0
  %2957 = vmatprep.subr.mxu0 0.0
  %2958 = vmatpush1.msra.mxu0 0.0
  %2959 = vmatprep.subr.mxu0 0.0
  %2960 = vmatpush1.msra.mxu0 %v2843
  %2961 = vmatprep.subr.mxu0 0.0
  %2962 = vmatpush1.msra.mxu0 %v2842
  %2963 = vmatprep.subr.mxu0 0.0
  %2964 = vmatpush1.msra.mxu0 %v2841
  %2965 = vmatprep.subr.mxu0 0.0
  %2966 = vmatpush1.msra.mxu0 %v2840
  %2967 = vmatprep.subr.mxu0 0.0
  %2968 = vmatpush2.msra.mxu0 0.0
  %2969 = vmatprep.subr.mxu0 0.0
  %2970 = vmatpush2.msra.mxu0 0.0
  %2971 = vmatprep.subr.mxu0 0.0
  %2972 = vmatpush2.msra.mxu0 0.0
  %2973 = vmatprep.subr.mxu0 0.0
  %2974 = vmatpush2.msra.mxu0 0.0
  %2975 = vmatprep.subr.mxu0 0.0
  %2976 = vmatpush2.msra.mxu0 0.0
  %2977 = vmatprep.subr.mxu0 0.0
  %2978 = vmatpush2.msra.mxu0 0.0
  %2979 = vmatprep.subr.mxu0 0.0
  %2980 = vmatpush2.msra.mxu0 0.0
  %2981 = vmatprep.subr.mxu0 0.0
  %2982 = vmatpush2.msra.mxu0 0.0
  %2983 = vmatprep.subr.mxu0 0.0
  %2984 = vmatpush2.msra.mxu0 0.0
  %2985 = vmatprep.subr.mxu0 0.0
  %2986 = vmatpush2.msra.mxu0 0.0
  %2987 = vmatprep.subr.mxu0 0.0
  %2988 = vmatpush2.msra.mxu0 0.0
  %2989 = vmatprep.subr.mxu0 0.0
  %2990 = vmatpush2.msra.mxu0 0.0
  %2991 = vmatprep.subr.mxu0 0.0
  %2992 = vmatpush2.msra.mxu0 0.0
  %2993 = vmatprep.subr.mxu0 0.0
  %2994 = vmatpush2.msra.mxu0 0.0
  %2995 = vmatprep.subr.mxu0 0.0
  %2996 = vmatpush2.msra.mxu0 0.0
  %2997 = vmatprep.subr.mxu0 0.0
  %2998 = vmatpush2.msra.mxu0 0.0
  %2999 = vmatprep.mubr.f32.mxu0 0.0
  %3000 = vmatmul.mubr.f32.gmra.mxu0 %v2930
  %v3001 = vpop.f32.mrf.mxu0
  %v3002 = vadd.f32 %v2921, %v3001
  %v3003 = vpop.f32.mrf.mxu0
  %3004 = vmatprep.mubr.f32.mxu0 0.0
  %3005 = vmatmul.mubr.f32.gmra.mxu0 %v2933
  %v3006 = vpop.f32.mrf.mxu0
  %v3007 = vadd.f32 %v2926, %v3006
  %v3008 = vpop.f32.mrf.mxu0
  %3009 = vdwg.mxu0
  %v3010 = vld [vmem:[%s10] sm:$0x1]
  %v3012 = vlaneseq
  %v3013 = vshrl.u32 %v3012, 7
  %v3014 = vsub.s32 0, %v3013
  %v3015 = vrot.slane %v3010, %v3014
  %v3017 = vadd.f32 %v3002, %v3015
  %v3018 = vadd.f32 %v3007, %v3015
  %vm3019 = vcmask 31744
  %3020 = vst.msk [vmem:[%s11] sm:$0xff] %vm3019, %v3017
  %3021 = vst.msk [vmem:[%s11 + $0x8] sm:$0xff] %vm3019, %v3018
  // Predicated region
  $region46: #{bilstm_att_forward.1} parent=0 // pred_check
    _
  $region47: #{bilstm_att_forward.1} parent=0 // pred_check_branch
    %3023 = sbr.rel (0) target = $region49
  $region48: #{bilstm_att_forward.1} parent=0 // pred_region
    _
  $region49: #{bilstm_att_forward.1} parent=0 // pred_fallthru
    _
  // Predicated region
  $region50: #{bilstm_att_forward.1} parent=0 // pred_check
    _
  $region51: #{bilstm_att_forward.1} parent=0 // pred_check_branch
    %3025 = sbr.rel (0) target = $region53
  $region52: #{bilstm_att_forward.1} parent=0 // pred_region
    _
  $region53: #{bilstm_att_forward.1} parent=0 // pred_fallthru
    _
  // Predicated region
  $region54: #{bilstm_att_forward.1} parent=0 // pred_check
    _
  $region55: #{bilstm_att_forward.1} parent=0 // pred_check_branch
    %3027 = sbr.rel (0) target = $region57
  $region56: #{bilstm_att_forward.1} parent=0 // pred_region
    _
  $region57: #{bilstm_att_forward.1} parent=0 // pred_fallthru
    _
  // Predicated region
  $region58: #{bilstm_att_forward.1} parent=0 // pred_check
    _
  $region59: #{bilstm_att_forward.1} parent=0 // pred_check_branch
    %3029 = sbr.rel (0) target = $region61
  $region60: #{bilstm_att_forward.1} parent=0 // pred_region
    _
  $region61: #{bilstm_att_forward.1} parent=0 // pred_fallthru
    _

</llo_original>
